<compile_context>
chip_gen: v6e
topology: v6e:2x2x1
jax: 0.10.0
libtpu: 0.0.40
codegen_flags: <defaults>
</compile_context>

<pallas_src>
import math

import jax
import jax.numpy as jnp
import numpy as np
from jax.experimental import pallas as pl
from jax.experimental.pallas import tpu as pltpu

# ----- model hyper-parameters (small, consistent with the module's __init__) -----
D_MODEL = 32            # args.dmodel
NHEAD = 4
HEAD_DIM = D_MODEL // NHEAD
NUM_LAYERS = 2          # args.nlayer
WINDOW = 8              # args.window  -> seq_len
BATCH = 2
INPUT_DIM = 1
OUTPUT_DIM = 1
FF_DIM = 2 * D_MODEL    # dim_feedforward = d_model * 2
EPS = 1e-5              # PyTorch TransformerEncoderLayer layer_norm_eps default

# ----- packed-weight layout constants -----
PACK_W = 4 * D_MODEL                       # 128 lanes
WROWS_PER_LAYER = 2 * D_MODEL + FF_DIM     # 128 rows: [Wq|Wk|Wv|Wo](32) + W1(32) + W2(64)
VEC_BASE = BATCH * WINDOW + 3              # first per-layer vector row in vpack
VPACK_ROWS = 32                            # >= VEC_BASE + 3*NUM_LAYERS, 8-row aligned


# ---------------------------------------------------------------------------
# Single fused Pallas kernel: embedding + 2 encoder layers + fc head.
#   x_ref   : (B*S, 1)               f32   flattened input
#   v_ref   : (32, 128)              f32   vector pack (tiled pos+emb_b, emb_w,
#                                          fc_w, fc_b, per-layer biases & LN)
#   w_ref   : (NUM_LAYERS*128, 128)  bf16  matmul-weight pack
#   o_ref   : (B, 1)                 f32   prediction
#   ctx_ref : (B*S, D)               f32   VMEM scratch for attention context
# ---------------------------------------------------------------------------
def _fused_kernel(x_ref, v_ref, w_ref, o_ref, ctx_ref):
    D, S, B, H, Hd, FF = D_MODEL, WINDOW, BATCH, NHEAD, HEAD_DIM, FF_DIM
    scale = 1.0 / math.sqrt(Hd)
    bf16 = jnp.bfloat16

    x = x_ref[...]                                    # (B*S, 1)  f32
    vp = v_ref[...]                                   # (32, 128) f32
    posb = vp[0:B * S, 0:D]                           # (B*S, D)  pre-tiled pos + emb_b
    ew = vp[B * S:B * S + 1, 0:D]                     # (1, D)    embedding weight row
    fcw = vp[B * S + 1:B * S + 2, 0:D]                # (1, D)    fc weight row
    fcb = vp[B * S + 2:B * S + 3, 0:1]                # (1, 1)    fc bias

    # embedding (input_dim = 1) + positional embedding (already tiled over batch)
    h = x * ew + posb                                 # (B*S, D) f32

    for li in range(NUM_LAYERS):                      # static unroll
        wbase = li * WROWS_PER_LAYER
        A = w_ref[wbase:wbase + D, :]                              # (D, 4D)  bf16
        W1 = w_ref[wbase + D:wbase + 2 * D, 0:FF]                  # (D, FF)  bf16
        W2 = w_ref[wbase + 2 * D:wbase + 2 * D + FF, 0:D]          # (FF, D)  bf16
        Wqkv, Wo = A[:, :3 * D], A[:, 3 * D:]

        vrow = VEC_BASE + 3 * li
        brow = vp[vrow:vrow + 1, :]
        bqkv, bo = brow[:, :3 * D], brow[:, 3 * D:]
        frow = vp[vrow + 1:vrow + 2, :]
        b1, b2 = frow[:, :FF], frow[:, FF:FF + D]
        lrow = vp[vrow + 2:vrow + 3, :]
        ln1w, ln1b = lrow[:, :D], lrow[:, D:2 * D]
        ln2w, ln2b = lrow[:, 2 * D:3 * D], lrow[:, 3 * D:]

        # --- fused QKV projection: bf16 operands, f32 accumulation ---
        qkv = jnp.dot(h.astype(bf16), Wqkv,
                      preferred_element_type=jnp.float32) + bqkv    # (B*S, 3D) f32
        q_bf = qkv[:, :D].astype(bf16)
        k_bf = qkv[:, D:2 * D].astype(bf16)
        v_bf = qkv[:, 2 * D:].astype(bf16)

        # --- per (batch, head) attention; ctx blocks written straight to scratch ---
        for b in range(B):
            r0 = b * S
            for hh in range(H):
                c0 = hh * Hd
                qb = q_bf[r0:r0 + S, c0:c0 + Hd]
                kb = k_bf[r0:r0 + S, c0:c0 + Hd]
                vb = v_bf[r0:r0 + S, c0:c0 + Hd]
                # contract last dims of q and k -> no materialized transpose
                s = jax.lax.dot_general(
                    qb, kb, (((1,), (1,)), ((), ())),
                    preferred_element_type=jnp.float32) * scale      # (S, S) f32
                s = s - jnp.max(s, axis=-1, keepdims=True)
                p = jnp.exp(s)
                p = p * pl.reciprocal(jnp.sum(p, axis=-1, keepdims=True),
                                      approx=True)
                ctx_ref[r0:r0 + S, c0:c0 + Hd] = jnp.dot(
                    p.astype(bf16), vb, preferred_element_type=jnp.float32)
        ctx = ctx_ref[...]                                            # (B*S, D) f32

        # --- out-projection, residual, LayerNorm 1 (one-pass statistics) ---
        attn = jnp.dot(ctx.astype(bf16), Wo,
                       preferred_element_type=jnp.float32) + bo
        y = h + attn
        mu = jnp.mean(y, axis=-1, keepdims=True)
        ms = jnp.mean(y * y, axis=-1, keepdims=True)
        y = (y - mu) * jax.lax.rsqrt(ms - mu * mu + EPS) * ln1w + ln1b

        # --- feed-forward (ReLU), residual, LayerNorm 2 ---
        h1 = jnp.maximum(
            jnp.dot(y.astype(bf16), W1, preferred_element_type=jnp.float32) + b1,
            0.0)
        f = jnp.dot(h1.astype(bf16), W2, preferred_element_type=jnp.float32) + b2
        z = y + f
        mu2 = jnp.mean(z, axis=-1, keepdims=True)
        ms2 = jnp.mean(z * z, axis=-1, keepdims=True)
        h = (z - mu2) * jax.lax.rsqrt(ms2 - mu2 * mu2 + EPS) * ln2w + ln2b

    # --- fc head on all rows (one vreg multiply-reduce); store last row per batch ---
    t = jnp.sum(h * fcw, axis=-1, keepdims=True) + fcb                # (B*S, 1)
    for b in range(B):
        o_ref[b:b + 1, :] = t[(b + 1) * S - 1:(b + 1) * S, :]


# ---------------------------------------------------------------------------
# Wrapper: one grid-less pallas_call for the whole forward pass.
# ---------------------------------------------------------------------------
def forward(params, x):
    B, S, _ = x.shape
    assert B == BATCH and S == WINDOW
    x2d = x.reshape(B * S, INPUT_DIM).astype(jnp.float32)
    return pl.pallas_call(
        _fused_kernel,
        out_shape=jax.ShapeDtypeStruct((B, OUTPUT_DIM), jnp.float32),
        scratch_shapes=[pltpu.VMEM((B * S, D_MODEL), jnp.float32)],
    )(x2d, params["vpack"], params["wpack"])


# ---------------------------------------------------------------------------
# One-time weight packing (hoisted out of the per-call path).
# ---------------------------------------------------------------------------
def _pack_weights(layers):
    blocks = []
    for p in layers:
        A = jnp.concatenate([p["wqt"], p["wkt"], p["wvt"], p["wot"]], axis=1)   # (D, 4D)
        W1p = jnp.pad(p["w1t"], ((0, 0), (0, PACK_W - FF_DIM)))                 # (D, 128)
        W2p = jnp.pad(p["w2t"], ((0, 0), (0, PACK_W - D_MODEL)))                # (FF, 128)
        blocks.append(jnp.concatenate([A, W1p, W2p], axis=0))                   # (128, 128)
    return jnp.concatenate(blocks, axis=0).astype(jnp.bfloat16)                 # (L*128, 128)


def _pack_vectors(params):
    D, S, B, FF = D_MODEL, WINDOW, BATCH, FF_DIM
    vp = jnp.zeros((VPACK_ROWS, PACK_W), jnp.float32)
    posb = params["pos"] + params["emb_b"][None, :]                   # (S, D)
    vp = vp.at[0:B * S, 0:D].set(jnp.tile(posb, (B, 1)))              # pre-tiled over batch
    vp = vp.at[B * S, 0:D].set(params["emb_w"][:, 0])
    vp = vp.at[B * S + 1, 0:D].set(params["fc_w"][0])
    vp = vp.at[B * S + 2, 0].set(params["fc_b"][0])
    for li, p in enumerate(params["layers"]):
        r = VEC_BASE + 3 * li
        vp = vp.at[r, :].set(jnp.concatenate([p["bq"], p["bk"], p["bv"], p["bo"]]))
        vp = vp.at[r + 1, 0:FF].set(p["b1"])
        vp = vp.at[r + 1, FF:FF + D].set(p["b2"])
        vp = vp.at[r + 2, :].set(
            jnp.concatenate([p["ln1w"], p["ln1b"], p["ln2w"], p["ln2b"]]))
    return vp


# ---------------------------------------------------------------------------
# Parameters (deterministic synthetic init; PyTorch layouts, pre-transposed to
# (in, out) and packed once for the kernel).
# ---------------------------------------------------------------------------
def init_params(key):
    keys = iter(jax.random.split(key, 8 + NUM_LAYERS * 8))

    def w(shape):
        return (0.02 * jax.random.normal(next(keys), shape)).astype(jnp.float32)

    params = {
        "emb_w": w((D_MODEL, INPUT_DIM)),          # nn.Linear(input_dim, d_model)
        "emb_b": w((D_MODEL,)),
        "pos":   w((WINDOW, D_MODEL)),             # nn.Embedding(window_size, d_model)
        "fc_w":  w((OUTPUT_DIM, D_MODEL)),         # nn.Linear(d_model, output_dim)
        "fc_b":  w((OUTPUT_DIM,)),
        "layers": [],
    }
    for _ in range(NUM_LAYERS):
        in_proj_w = w((3 * D_MODEL, D_MODEL))      # MHA in_proj_weight
        in_proj_b = w((3 * D_MODEL,))
        Wq, Wk, Wv = jnp.split(in_proj_w, 3, axis=0)
        bq, bk, bv = jnp.split(in_proj_b, 3, axis=0)
        layer = dict(
            wqt=Wq.T, wkt=Wk.T, wvt=Wv.T,          # (D, D) each, y = x @ W
            bq=bq, bk=bk, bv=bv,                   # (D,)
            wot=w((D_MODEL, D_MODEL)).T,           # out_proj, transposed (D, D)
            bo=w((D_MODEL,)),
            ln1w=jnp.ones((D_MODEL,), jnp.float32),
            ln1b=jnp.zeros((D_MODEL,), jnp.float32),
            w1t=w((FF_DIM, D_MODEL)).T,            # linear1, transposed (D, FF)
            b1=w((FF_DIM,)),
            w2t=w((D_MODEL, FF_DIM)).T,            # linear2, transposed (FF, D)
            b2=w((D_MODEL,)),
            ln2w=jnp.ones((D_MODEL,), jnp.float32),
            ln2b=jnp.zeros((D_MODEL,), jnp.float32),
        )
        params["layers"].append(layer)

    # one-time packing for the fused kernel
    params["wpack"] = _pack_weights(params["layers"])   # (NUM_LAYERS*128, 128) bf16
    params["vpack"] = _pack_vectors(params)             # (32, 128) f32
    return params


# ---------------------------------------------------------------------------
# Pure-JAX f32 reference (same math, full-matrix form) for correctness check
# ---------------------------------------------------------------------------
def _ln(x, w, b):
    mu = jnp.mean(x, axis=-1, keepdims=True)
    var = jnp.mean((x - mu) ** 2, axis=-1, keepdims=True)
    return (x - mu) * jax.lax.rsqrt(var + EPS) * w + b


def ref_forward(params, x):
    B, S, _ = x.shape
    h = x @ params["emb_w"].T + params["emb_b"]
    h = (h + params["pos"][:S][None]).astype(jnp.float32)
    for p in params["layers"]:
        q = h @ p["wqt"] + p["bq"]
        k = h @ p["wkt"] + p["bk"]
        v = h @ p["wvt"] + p["bv"]

        def heads(t):
            return t.reshape(B, S, NHEAD, HEAD_DIM).transpose(0, 2, 1, 3)

        qh, kh, vh = heads(q), heads(k), heads(v)
        s = (qh @ kh.transpose(0, 1, 3, 2)) / math.sqrt(HEAD_DIM)
        a = jax.nn.softmax(s, axis=-1)
        o = (a @ vh).transpose(0, 2, 1, 3).reshape(B, S, D_MODEL)
        o = o @ p["wot"] + p["bo"]
        y = _ln(h + o, p["ln1w"], p["ln1b"])
        f = jnp.maximum(y @ p["w1t"] + p["b1"], 0.0) @ p["w2t"] + p["b2"]
        h = _ln(y + f, p["ln2w"], p["ln2b"])
    return h[:, -1, :] @ params["fc_w"].T + params["fc_b"]


if __name__ == "__main__":
    key = jax.random.PRNGKey(0)
    pkey, xkey = jax.random.split(key)
    params = init_params(pkey)
    # input: (batch, seq=window_size, input_dim=1)
    x = jax.random.normal(xkey, (BATCH, WINDOW, INPUT_DIM), dtype=jnp.float32)

    fwd = jax.jit(forward)
    out = jax.block_until_ready(fwd(params, x))

    ref = jax.block_until_ready(ref_forward(params, x))
    # tolerance relaxed vs pure-f32: matmul operands are bf16 (MXU single pass)
    # and the softmax denominator uses the EUP approximate reciprocal.
    np.testing.assert_allclose(np.asarray(out), np.asarray(ref), rtol=5e-3, atol=5e-3)
    assert out.shape == (BATCH, OUTPUT_DIM)
    print("KERNEL_OK")
</pallas_src>

<mosaic_0001>
module attributes {stable_mosaic.version = 11 : i64} {
  func.func @_fused_kernel(%arg0: memref<16x1xf32, #tpu.memory_space<vmem>>, %arg1: memref<32x128xf32, #tpu.memory_space<vmem>>, %arg2: memref<256x128xbf16, #tpu.memory_space<vmem>>, %arg3: memref<2x1xf32, #tpu.memory_space<vmem>>, %arg4: memref<16x32xf32, #tpu.memory_space<vmem>>) attributes {dimension_semantics = [], scalar_prefetch = 0 : i64, scratch_operands = 1 : i64, tpu.core_type = #tpu.core_type<tc>} {
    %c0 = arith.constant 0 : index
    %c0_0 = arith.constant 0 : index
    %0 = vector.load %arg0[%c0, %c0_0] : memref<16x1xf32, #tpu.memory_space<vmem>>, vector<16x1xf32>
    %c0_1 = arith.constant 0 : index
    %c0_2 = arith.constant 0 : index
    %1 = vector.load %arg1[%c0_1, %c0_2] : memref<32x128xf32, #tpu.memory_space<vmem>>, vector<32x128xf32>
    %2 = vector.extract_strided_slice %1 {offsets = [0, 0], sizes = [16, 32], strides = [1, 1]} : vector<32x128xf32> to vector<16x32xf32>
    %3 = vector.extract_strided_slice %1 {offsets = [16, 0], sizes = [1, 32], strides = [1, 1]} : vector<32x128xf32> to vector<1x32xf32>
    %4 = vector.extract_strided_slice %1 {offsets = [17, 0], sizes = [1, 32], strides = [1, 1]} : vector<32x128xf32> to vector<1x32xf32>
    %5 = vector.extract_strided_slice %1 {offsets = [18, 0], sizes = [1, 1], strides = [1, 1]} : vector<32x128xf32> to vector<1x1xf32>
    %6 = vector.broadcast %0 : vector<16x1xf32> to vector<16x32xf32>
    %7 = vector.broadcast %3 : vector<1x32xf32> to vector<16x32xf32>
    %8 = arith.mulf %6, %7 : vector<16x32xf32>
    %9 = arith.addf %8, %2 : vector<16x32xf32>
    %c0_3 = arith.constant 0 : index
    %c0_4 = arith.constant 0 : index
    %10 = vector.load %arg2[%c0_3, %c0_4] : memref<256x128xbf16, #tpu.memory_space<vmem>>, vector<32x128xbf16>
    %c32 = arith.constant 32 : index
    %c0_5 = arith.constant 0 : index
    %11 = vector.load %arg2[%c32, %c0_5] : memref<256x128xbf16, #tpu.memory_space<vmem>>, vector<32x64xbf16>
    %c64 = arith.constant 64 : index
    %c0_6 = arith.constant 0 : index
    %12 = vector.load %arg2[%c64, %c0_6] : memref<256x128xbf16, #tpu.memory_space<vmem>>, vector<64x32xbf16>
    %13 = vector.extract_strided_slice %10 {offsets = [0, 0], sizes = [32, 96], strides = [1, 1]} : vector<32x128xbf16> to vector<32x96xbf16>
    %14 = vector.extract_strided_slice %10 {offsets = [0, 96], sizes = [32, 32], strides = [1, 1]} : vector<32x128xbf16> to vector<32x32xbf16>
    %15 = vector.extract_strided_slice %1 {offsets = [19, 0], sizes = [1, 128], strides = [1, 1]} : vector<32x128xf32> to vector<1x128xf32>
    %16 = vector.extract_strided_slice %15 {offsets = [0, 0], sizes = [1, 96], strides = [1, 1]} : vector<1x128xf32> to vector<1x96xf32>
    %17 = vector.extract_strided_slice %15 {offsets = [0, 96], sizes = [1, 32], strides = [1, 1]} : vector<1x128xf32> to vector<1x32xf32>
    %18 = vector.extract_strided_slice %1 {offsets = [20, 0], sizes = [1, 128], strides = [1, 1]} : vector<32x128xf32> to vector<1x128xf32>
    %19 = vector.extract_strided_slice %18 {offsets = [0, 0], sizes = [1, 64], strides = [1, 1]} : vector<1x128xf32> to vector<1x64xf32>
    %20 = vector.extract_strided_slice %18 {offsets = [0, 64], sizes = [1, 32], strides = [1, 1]} : vector<1x128xf32> to vector<1x32xf32>
    %21 = vector.extract_strided_slice %1 {offsets = [21, 0], sizes = [1, 128], strides = [1, 1]} : vector<32x128xf32> to vector<1x128xf32>
    %22 = vector.extract_strided_slice %21 {offsets = [0, 0], sizes = [1, 32], strides = [1, 1]} : vector<1x128xf32> to vector<1x32xf32>
    %23 = vector.extract_strided_slice %21 {offsets = [0, 32], sizes = [1, 32], strides = [1, 1]} : vector<1x128xf32> to vector<1x32xf32>
    %24 = vector.extract_strided_slice %21 {offsets = [0, 64], sizes = [1, 32], strides = [1, 1]} : vector<1x128xf32> to vector<1x32xf32>
    %25 = vector.extract_strided_slice %21 {offsets = [0, 96], sizes = [1, 32], strides = [1, 1]} : vector<1x128xf32> to vector<1x32xf32>
    %26 = arith.truncf %9 : vector<16x32xf32> to vector<16x32xbf16>
    %cst = arith.constant dense<0.000000e+00> : vector<16x96xf32>
    %27 = tpu.matmul %26, %13, %cst {dimension_numbers = #tpu.dot_dimension_numbers<[1], [0], [0], [1], [0, 0, 1, 1], [], []>} : vector<16x32xbf16>, vector<32x96xbf16>, vector<16x96xf32> -> vector<16x96xf32>
    %28 = vector.broadcast %16 : vector<1x96xf32> to vector<16x96xf32>
    %29 = arith.addf %27, %28 : vector<16x96xf32>
    %30 = vector.extract_strided_slice %29 {offsets = [0, 0], sizes = [16, 32], strides = [1, 1]} : vector<16x96xf32> to vector<16x32xf32>
    %31 = arith.truncf %30 : vector<16x32xf32> to vector<16x32xbf16>
    %32 = vector.extract_strided_slice %29 {offsets = [0, 32], sizes = [16, 32], strides = [1, 1]} : vector<16x96xf32> to vector<16x32xf32>
    %33 = arith.truncf %32 : vector<16x32xf32> to vector<16x32xbf16>
    %34 = vector.extract_strided_slice %29 {offsets = [0, 64], sizes = [16, 32], strides = [1, 1]} : vector<16x96xf32> to vector<16x32xf32>
    %35 = arith.truncf %34 : vector<16x32xf32> to vector<16x32xbf16>
    %36 = vector.extract_strided_slice %31 {offsets = [0, 0], sizes = [8, 8], strides = [1, 1]} : vector<16x32xbf16> to vector<8x8xbf16>
    %37 = vector.extract_strided_slice %33 {offsets = [0, 0], sizes = [8, 8], strides = [1, 1]} : vector<16x32xbf16> to vector<8x8xbf16>
    %38 = vector.extract_strided_slice %35 {offsets = [0, 0], sizes = [8, 8], strides = [1, 1]} : vector<16x32xbf16> to vector<8x8xbf16>
    %cst_7 = arith.constant dense<0.000000e+00> : vector<8x8xf32>
    %39 = tpu.matmul %36, %37, %cst_7 {dimension_numbers = #tpu.dot_dimension_numbers<[1], [1], [0], [0], [0, 0, 1, 0], [], []>} : vector<8x8xbf16>, vector<8x8xbf16>, vector<8x8xf32> -> vector<8x8xf32>
    %cst_8 = arith.constant 0.353553385 : f32
    %40 = vector.broadcast %cst_8 : f32 to vector<8x8xf32>
    %41 = arith.mulf %39, %40 : vector<8x8xf32>
    %cst_9 = arith.constant dense<0xFF800000> : vector<8xf32>
    %42 = vector.multi_reduction <maximumf>, %41, %cst_9 [1] : vector<8x8xf32> to vector<8xf32>
    %43 = vector.shape_cast %42 : vector<8xf32> to vector<8x1xf32>
    %44 = vector.broadcast %43 : vector<8x1xf32> to vector<8x8xf32>
    %45 = arith.subf %41, %44 : vector<8x8xf32>
    %46 = math.exp %45 : vector<8x8xf32>
    %cst_10 = arith.constant dense<0.000000e+00> : vector<8xf32>
    %47 = vector.multi_reduction <add>, %46, %cst_10 [1] : vector<8x8xf32> to vector<8xf32>
    %48 = vector.shape_cast %47 : vector<8xf32> to vector<8x1xf32>
    %49 = tpu.reciprocal %48 {approx = true} : vector<8x1xf32> -> vector<8x1xf32>
    %50 = vector.broadcast %49 : vector<8x1xf32> to vector<8x8xf32>
    %51 = arith.mulf %46, %50 : vector<8x8xf32>
    %52 = arith.truncf %51 : vector<8x8xf32> to vector<8x8xbf16>
    %cst_11 = arith.constant dense<0.000000e+00> : vector<8x8xf32>
    %53 = tpu.matmul %52, %38, %cst_11 {dimension_numbers = #tpu.dot_dimension_numbers<[1], [0], [0], [1], [0, 0, 1, 1], [], []>} : vector<8x8xbf16>, vector<8x8xbf16>, vector<8x8xf32> -> vector<8x8xf32>
    %c0_12 = arith.constant 0 : index
    %c0_13 = arith.constant 0 : index
    %54 = vector.load %arg4[%c0_12, %c0_13] : memref<16x32xf32, #tpu.memory_space<vmem>>, vector<8x8xf32>
    tpu.vector_store %arg4[%c0_12, %c0_13], %53 {strides = array<i32>} : memref<16x32xf32, #tpu.memory_space<vmem>>, vector<8x8xf32>,
    %55 = vector.extract_strided_slice %31 {offsets = [0, 8], sizes = [8, 8], strides = [1, 1]} : vector<16x32xbf16> to vector<8x8xbf16>
    %56 = vector.extract_strided_slice %33 {offsets = [0, 8], sizes = [8, 8], strides = [1, 1]} : vector<16x32xbf16> to vector<8x8xbf16>
    %57 = vector.extract_strided_slice %35 {offsets = [0, 8], sizes = [8, 8], strides = [1, 1]} : vector<16x32xbf16> to vector<8x8xbf16>
    %cst_14 = arith.constant dense<0.000000e+00> : vector<8x8xf32>
    %58 = tpu.matmul %55, %56, %cst_14 {dimension_numbers = #tpu.dot_dimension_numbers<[1], [1], [0], [0], [0, 0, 1, 0], [], []>} : vector<8x8xbf16>, vector<8x8xbf16>, vector<8x8xf32> -> vector<8x8xf32>
    %cst_15 = arith.constant 0.353553385 : f32
    %59 = vector.broadcast %cst_15 : f32 to vector<8x8xf32>
    %60 = arith.mulf %58, %59 : vector<8x8xf32>
    %cst_16 = arith.constant dense<0xFF800000> : vector<8xf32>
    %61 = vector.multi_reduction <maximumf>, %60, %cst_16 [1] : vector<8x8xf32> to vector<8xf32>
    %62 = vector.shape_cast %61 : vector<8xf32> to vector<8x1xf32>
    %63 = vector.broadcast %62 : vector<8x1xf32> to vector<8x8xf32>
    %64 = arith.subf %60, %63 : vector<8x8xf32>
    %65 = math.exp %64 : vector<8x8xf32>
    %cst_17 = arith.constant dense<0.000000e+00> : vector<8xf32>
    %66 = vector.multi_reduction <add>, %65, %cst_17 [1] : vector<8x8xf32> to vector<8xf32>
    %67 = vector.shape_cast %66 : vector<8xf32> to vector<8x1xf32>
    %68 = tpu.reciprocal %67 {approx = true} : vector<8x1xf32> -> vector<8x1xf32>
    %69 = vector.broadcast %68 : vector<8x1xf32> to vector<8x8xf32>
    %70 = arith.mulf %65, %69 : vector<8x8xf32>
    %71 = arith.truncf %70 : vector<8x8xf32> to vector<8x8xbf16>
    %cst_18 = arith.constant dense<0.000000e+00> : vector<8x8xf32>
    %72 = tpu.matmul %71, %57, %cst_18 {dimension_numbers = #tpu.dot_dimension_numbers<[1], [0], [0], [1], [0, 0, 1, 1], [], []>} : vector<8x8xbf16>, vector<8x8xbf16>, vector<8x8xf32> -> vector<8x8xf32>
    %c0_19 = arith.constant 0 : index
    %c8 = arith.constant 8 : index
    %73 = vector.load %arg4[%c0_19, %c8] : memref<16x32xf32, #tpu.memory_space<vmem>>, vector<8x8xf32>
    tpu.vector_store %arg4[%c0_19, %c8], %72 {strides = array<i32>} : memref<16x32xf32, #tpu.memory_space<vmem>>, vector<8x8xf32>,
    %74 = vector.extract_strided_slice %31 {offsets = [0, 16], sizes = [8, 8], strides = [1, 1]} : vector<16x32xbf16> to vector<8x8xbf16>
    %75 = vector.extract_strided_slice %33 {offsets = [0, 16], sizes = [8, 8], strides = [1, 1]} : vector<16x32xbf16> to vector<8x8xbf16>
    %76 = vector.extract_strided_slice %35 {offsets = [0, 16], sizes = [8, 8], strides = [1, 1]} : vector<16x32xbf16> to vector<8x8xbf16>
    %cst_20 = arith.constant dense<0.000000e+00> : vector<8x8xf32>
    %77 = tpu.matmul %74, %75, %cst_20 {dimension_numbers = #tpu.dot_dimension_numbers<[1], [1], [0], [0], [0, 0, 1, 0], [], []>} : vector<8x8xbf16>, vector<8x8xbf16>, vector<8x8xf32> -> vector<8x8xf32>
    %cst_21 = arith.constant 0.353553385 : f32
    %78 = vector.broadcast %cst_21 : f32 to vector<8x8xf32>
    %79 = arith.mulf %77, %78 : vector<8x8xf32>
    %cst_22 = arith.constant dense<0xFF800000> : vector<8xf32>
    %80 = vector.multi_reduction <maximumf>, %79, %cst_22 [1] : vector<8x8xf32> to vector<8xf32>
    %81 = vector.shape_cast %80 : vector<8xf32> to vector<8x1xf32>
    %82 = vector.broadcast %81 : vector<8x1xf32> to vector<8x8xf32>
    %83 = arith.subf %79, %82 : vector<8x8xf32>
    %84 = math.exp %83 : vector<8x8xf32>
    %cst_23 = arith.constant dense<0.000000e+00> : vector<8xf32>
    %85 = vector.multi_reduction <add>, %84, %cst_23 [1] : vector<8x8xf32> to vector<8xf32>
    %86 = vector.shape_cast %85 : vector<8xf32> to vector<8x1xf32>
    %87 = tpu.reciprocal %86 {approx = true} : vector<8x1xf32> -> vector<8x1xf32>
    %88 = vector.broadcast %87 : vector<8x1xf32> to vector<8x8xf32>
    %89 = arith.mulf %84, %88 : vector<8x8xf32>
    %90 = arith.truncf %89 : vector<8x8xf32> to vector<8x8xbf16>
    %cst_24 = arith.constant dense<0.000000e+00> : vector<8x8xf32>
    %91 = tpu.matmul %90, %76, %cst_24 {dimension_numbers = #tpu.dot_dimension_numbers<[1], [0], [0], [1], [0, 0, 1, 1], [], []>} : vector<8x8xbf16>, vector<8x8xbf16>, vector<8x8xf32> -> vector<8x8xf32>
    %c0_25 = arith.constant 0 : index
    %c16 = arith.constant 16 : index
    %92 = vector.load %arg4[%c0_25, %c16] : memref<16x32xf32, #tpu.memory_space<vmem>>, vector<8x8xf32>
    tpu.vector_store %arg4[%c0_25, %c16], %91 {strides = array<i32>} : memref<16x32xf32, #tpu.memory_space<vmem>>, vector<8x8xf32>,
    %93 = vector.extract_strided_slice %31 {offsets = [0, 24], sizes = [8, 8], strides = [1, 1]} : vector<16x32xbf16> to vector<8x8xbf16>
    %94 = vector.extract_strided_slice %33 {offsets = [0, 24], sizes = [8, 8], strides = [1, 1]} : vector<16x32xbf16> to vector<8x8xbf16>
    %95 = vector.extract_strided_slice %35 {offsets = [0, 24], sizes = [8, 8], strides = [1, 1]} : vector<16x32xbf16> to vector<8x8xbf16>
    %cst_26 = arith.constant dense<0.000000e+00> : vector<8x8xf32>
    %96 = tpu.matmul %93, %94, %cst_26 {dimension_numbers = #tpu.dot_dimension_numbers<[1], [1], [0], [0], [0, 0, 1, 0], [], []>} : vector<8x8xbf16>, vector<8x8xbf16>, vector<8x8xf32> -> vector<8x8xf32>
    %cst_27 = arith.constant 0.353553385 : f32
    %97 = vector.broadcast %cst_27 : f32 to vector<8x8xf32>
    %98 = arith.mulf %96, %97 : vector<8x8xf32>
    %cst_28 = arith.constant dense<0xFF800000> : vector<8xf32>
    %99 = vector.multi_reduction <maximumf>, %98, %cst_28 [1] : vector<8x8xf32> to vector<8xf32>
    %100 = vector.shape_cast %99 : vector<8xf32> to vector<8x1xf32>
    %101 = vector.broadcast %100 : vector<8x1xf32> to vector<8x8xf32>
    %102 = arith.subf %98, %101 : vector<8x8xf32>
    %103 = math.exp %102 : vector<8x8xf32>
    %cst_29 = arith.constant dense<0.000000e+00> : vector<8xf32>
    %104 = vector.multi_reduction <add>, %103, %cst_29 [1] : vector<8x8xf32> to vector<8xf32>
    %105 = vector.shape_cast %104 : vector<8xf32> to vector<8x1xf32>
    %106 = tpu.reciprocal %105 {approx = true} : vector<8x1xf32> -> vector<8x1xf32>
    %107 = vector.broadcast %106 : vector<8x1xf32> to vector<8x8xf32>
    %108 = arith.mulf %103, %107 : vector<8x8xf32>
    %109 = arith.truncf %108 : vector<8x8xf32> to vector<8x8xbf16>
    %cst_30 = arith.constant dense<0.000000e+00> : vector<8x8xf32>
    %110 = tpu.matmul %109, %95, %cst_30 {dimension_numbers = #tpu.dot_dimension_numbers<[1], [0], [0], [1], [0, 0, 1, 1], [], []>} : vector<8x8xbf16>, vector<8x8xbf16>, vector<8x8xf32> -> vector<8x8xf32>
    %c0_31 = arith.constant 0 : index
    %c24 = arith.constant 24 : index
    %111 = vector.load %arg4[%c0_31, %c24] : memref<16x32xf32, #tpu.memory_space<vmem>>, vector<8x8xf32>
    tpu.vector_store %arg4[%c0_31, %c24], %110 {strides = array<i32>} : memref<16x32xf32, #tpu.memory_space<vmem>>, vector<8x8xf32>,
    %112 = vector.extract_strided_slice %31 {offsets = [8, 0], sizes = [8, 8], strides = [1, 1]} : vector<16x32xbf16> to vector<8x8xbf16>
    %113 = vector.extract_strided_slice %33 {offsets = [8, 0], sizes = [8, 8], strides = [1, 1]} : vector<16x32xbf16> to vector<8x8xbf16>
    %114 = vector.extract_strided_slice %35 {offsets = [8, 0], sizes = [8, 8], strides = [1, 1]} : vector<16x32xbf16> to vector<8x8xbf16>
    %cst_32 = arith.constant dense<0.000000e+00> : vector<8x8xf32>
    %115 = tpu.matmul %112, %113, %cst_32 {dimension_numbers = #tpu.dot_dimension_numbers<[1], [1], [0], [0], [0, 0, 1, 0], [], []>} : vector<8x8xbf16>, vector<8x8xbf16>, vector<8x8xf32> -> vector<8x8xf32>
    %cst_33 = arith.constant 0.353553385 : f32
    %116 = vector.broadcast %cst_33 : f32 to vector<8x8xf32>
    %117 = arith.mulf %115, %116 : vector<8x8xf32>
    %cst_34 = arith.constant dense<0xFF800000> : vector<8xf32>
    %118 = vector.multi_reduction <maximumf>, %117, %cst_34 [1] : vector<8x8xf32> to vector<8xf32>
    %119 = vector.shape_cast %118 : vector<8xf32> to vector<8x1xf32>
    %120 = vector.broadcast %119 : vector<8x1xf32> to vector<8x8xf32>
    %121 = arith.subf %117, %120 : vector<8x8xf32>
    %122 = math.exp %121 : vector<8x8xf32>
    %cst_35 = arith.constant dense<0.000000e+00> : vector<8xf32>
    %123 = vector.multi_reduction <add>, %122, %cst_35 [1] : vector<8x8xf32> to vector<8xf32>
    %124 = vector.shape_cast %123 : vector<8xf32> to vector<8x1xf32>
    %125 = tpu.reciprocal %124 {approx = true} : vector<8x1xf32> -> vector<8x1xf32>
    %126 = vector.broadcast %125 : vector<8x1xf32> to vector<8x8xf32>
    %127 = arith.mulf %122, %126 : vector<8x8xf32>
    %128 = arith.truncf %127 : vector<8x8xf32> to vector<8x8xbf16>
    %cst_36 = arith.constant dense<0.000000e+00> : vector<8x8xf32>
    %129 = tpu.matmul %128, %114, %cst_36 {dimension_numbers = #tpu.dot_dimension_numbers<[1], [0], [0], [1], [0, 0, 1, 1], [], []>} : vector<8x8xbf16>, vector<8x8xbf16>, vector<8x8xf32> -> vector<8x8xf32>
    %c8_37 = arith.constant 8 : index
    %c0_38 = arith.constant 0 : index
    %130 = vector.load %arg4[%c8_37, %c0_38] : memref<16x32xf32, #tpu.memory_space<vmem>>, vector<8x8xf32>
    tpu.vector_store %arg4[%c8_37, %c0_38], %129 {strides = array<i32>} : memref<16x32xf32, #tpu.memory_space<vmem>>, vector<8x8xf32>,
    %131 = vector.extract_strided_slice %31 {offsets = [8, 8], sizes = [8, 8], strides = [1, 1]} : vector<16x32xbf16> to vector<8x8xbf16>
    %132 = vector.extract_strided_slice %33 {offsets = [8, 8], sizes = [8, 8], strides = [1, 1]} : vector<16x32xbf16> to vector<8x8xbf16>
    %133 = vector.extract_strided_slice %35 {offsets = [8, 8], sizes = [8, 8], strides = [1, 1]} : vector<16x32xbf16> to vector<8x8xbf16>
    %cst_39 = arith.constant dense<0.000000e+00> : vector<8x8xf32>
    %134 = tpu.matmul %131, %132, %cst_39 {dimension_numbers = #tpu.dot_dimension_numbers<[1], [1], [0], [0], [0, 0, 1, 0], [], []>} : vector<8x8xbf16>, vector<8x8xbf16>, vector<8x8xf32> -> vector<8x8xf32>
    %cst_40 = arith.constant 0.353553385 : f32
    %135 = vector.broadcast %cst_40 : f32 to vector<8x8xf32>
    %136 = arith.mulf %134, %135 : vector<8x8xf32>
    %cst_41 = arith.constant dense<0xFF800000> : vector<8xf32>
    %137 = vector.multi_reduction <maximumf>, %136, %cst_41 [1] : vector<8x8xf32> to vector<8xf32>
    %138 = vector.shape_cast %137 : vector<8xf32> to vector<8x1xf32>
    %139 = vector.broadcast %138 : vector<8x1xf32> to vector<8x8xf32>
    %140 = arith.subf %136, %139 : vector<8x8xf32>
    %141 = math.exp %140 : vector<8x8xf32>
    %cst_42 = arith.constant dense<0.000000e+00> : vector<8xf32>
    %142 = vector.multi_reduction <add>, %141, %cst_42 [1] : vector<8x8xf32> to vector<8xf32>
    %143 = vector.shape_cast %142 : vector<8xf32> to vector<8x1xf32>
    %144 = tpu.reciprocal %143 {approx = true} : vector<8x1xf32> -> vector<8x1xf32>
    %145 = vector.broadcast %144 : vector<8x1xf32> to vector<8x8xf32>
    %146 = arith.mulf %141, %145 : vector<8x8xf32>
    %147 = arith.truncf %146 : vector<8x8xf32> to vector<8x8xbf16>
    %cst_43 = arith.constant dense<0.000000e+00> : vector<8x8xf32>
    %148 = tpu.matmul %147, %133, %cst_43 {dimension_numbers = #tpu.dot_dimension_numbers<[1], [0], [0], [1], [0, 0, 1, 1], [], []>} : vector<8x8xbf16>, vector<8x8xbf16>, vector<8x8xf32> -> vector<8x8xf32>
    %c8_44 = arith.constant 8 : index
    %c8_45 = arith.constant 8 : index
    %149 = vector.load %arg4[%c8_44, %c8_45] : memref<16x32xf32, #tpu.memory_space<vmem>>, vector<8x8xf32>
    tpu.vector_store %arg4[%c8_44, %c8_45], %148 {strides = array<i32>} : memref<16x32xf32, #tpu.memory_space<vmem>>, vector<8x8xf32>,
    %150 = vector.extract_strided_slice %31 {offsets = [8, 16], sizes = [8, 8], strides = [1, 1]} : vector<16x32xbf16> to vector<8x8xbf16>
    %151 = vector.extract_strided_slice %33 {offsets = [8, 16], sizes = [8, 8], strides = [1, 1]} : vector<16x32xbf16> to vector<8x8xbf16>
    %152 = vector.extract_strided_slice %35 {offsets = [8, 16], sizes = [8, 8], strides = [1, 1]} : vector<16x32xbf16> to vector<8x8xbf16>
    %cst_46 = arith.constant dense<0.000000e+00> : vector<8x8xf32>
    %153 = tpu.matmul %150, %151, %cst_46 {dimension_numbers = #tpu.dot_dimension_numbers<[1], [1], [0], [0], [0, 0, 1, 0], [], []>} : vector<8x8xbf16>, vector<8x8xbf16>, vector<8x8xf32> -> vector<8x8xf32>
    %cst_47 = arith.constant 0.353553385 : f32
    %154 = vector.broadcast %cst_47 : f32 to vector<8x8xf32>
    %155 = arith.mulf %153, %154 : vector<8x8xf32>
    %cst_48 = arith.constant dense<0xFF800000> : vector<8xf32>
    %156 = vector.multi_reduction <maximumf>, %155, %cst_48 [1] : vector<8x8xf32> to vector<8xf32>
    %157 = vector.shape_cast %156 : vector<8xf32> to vector<8x1xf32>
    %158 = vector.broadcast %157 : vector<8x1xf32> to vector<8x8xf32>
    %159 = arith.subf %155, %158 : vector<8x8xf32>
    %160 = math.exp %159 : vector<8x8xf32>
    %cst_49 = arith.constant dense<0.000000e+00> : vector<8xf32>
    %161 = vector.multi_reduction <add>, %160, %cst_49 [1] : vector<8x8xf32> to vector<8xf32>
    %162 = vector.shape_cast %161 : vector<8xf32> to vector<8x1xf32>
    %163 = tpu.reciprocal %162 {approx = true} : vector<8x1xf32> -> vector<8x1xf32>
    %164 = vector.broadcast %163 : vector<8x1xf32> to vector<8x8xf32>
    %165 = arith.mulf %160, %164 : vector<8x8xf32>
    %166 = arith.truncf %165 : vector<8x8xf32> to vector<8x8xbf16>
    %cst_50 = arith.constant dense<0.000000e+00> : vector<8x8xf32>
    %167 = tpu.matmul %166, %152, %cst_50 {dimension_numbers = #tpu.dot_dimension_numbers<[1], [0], [0], [1], [0, 0, 1, 1], [], []>} : vector<8x8xbf16>, vector<8x8xbf16>, vector<8x8xf32> -> vector<8x8xf32>
    %c8_51 = arith.constant 8 : index
    %c16_52 = arith.constant 16 : index
    %168 = vector.load %arg4[%c8_51, %c16_52] : memref<16x32xf32, #tpu.memory_space<vmem>>, vector<8x8xf32>
    tpu.vector_store %arg4[%c8_51, %c16_52], %167 {strides = array<i32>} : memref<16x32xf32, #tpu.memory_space<vmem>>, vector<8x8xf32>,
    %169 = vector.extract_strided_slice %31 {offsets = [8, 24], sizes = [8, 8], strides = [1, 1]} : vector<16x32xbf16> to vector<8x8xbf16>
    %170 = vector.extract_strided_slice %33 {offsets = [8, 24], sizes = [8, 8], strides = [1, 1]} : vector<16x32xbf16> to vector<8x8xbf16>
    %171 = vector.extract_strided_slice %35 {offsets = [8, 24], sizes = [8, 8], strides = [1, 1]} : vector<16x32xbf16> to vector<8x8xbf16>
    %cst_53 = arith.constant dense<0.000000e+00> : vector<8x8xf32>
    %172 = tpu.matmul %169, %170, %cst_53 {dimension_numbers = #tpu.dot_dimension_numbers<[1], [1], [0], [0], [0, 0, 1, 0], [], []>} : vector<8x8xbf16>, vector<8x8xbf16>, vector<8x8xf32> -> vector<8x8xf32>
    %cst_54 = arith.constant 0.353553385 : f32
    %173 = vector.broadcast %cst_54 : f32 to vector<8x8xf32>
    %174 = arith.mulf %172, %173 : vector<8x8xf32>
    %cst_55 = arith.constant dense<0xFF800000> : vector<8xf32>
    %175 = vector.multi_reduction <maximumf>, %174, %cst_55 [1] : vector<8x8xf32> to vector<8xf32>
    %176 = vector.shape_cast %175 : vector<8xf32> to vector<8x1xf32>
    %177 = vector.broadcast %176 : vector<8x1xf32> to vector<8x8xf32>
    %178 = arith.subf %174, %177 : vector<8x8xf32>
    %179 = math.exp %178 : vector<8x8xf32>
    %cst_56 = arith.constant dense<0.000000e+00> : vector<8xf32>
    %180 = vector.multi_reduction <add>, %179, %cst_56 [1] : vector<8x8xf32> to vector<8xf32>
    %181 = vector.shape_cast %180 : vector<8xf32> to vector<8x1xf32>
    %182 = tpu.reciprocal %181 {approx = true} : vector<8x1xf32> -> vector<8x1xf32>
    %183 = vector.broadcast %182 : vector<8x1xf32> to vector<8x8xf32>
    %184 = arith.mulf %179, %183 : vector<8x8xf32>
    %185 = arith.truncf %184 : vector<8x8xf32> to vector<8x8xbf16>
    %cst_57 = arith.constant dense<0.000000e+00> : vector<8x8xf32>
    %186 = tpu.matmul %185, %171, %cst_57 {dimension_numbers = #tpu.dot_dimension_numbers<[1], [0], [0], [1], [0, 0, 1, 1], [], []>} : vector<8x8xbf16>, vector<8x8xbf16>, vector<8x8xf32> -> vector<8x8xf32>
    %c8_58 = arith.constant 8 : index
    %c24_59 = arith.constant 24 : index
    %187 = vector.load %arg4[%c8_58, %c24_59] : memref<16x32xf32, #tpu.memory_space<vmem>>, vector<8x8xf32>
    tpu.vector_store %arg4[%c8_58, %c24_59], %186 {strides = array<i32>} : memref<16x32xf32, #tpu.memory_space<vmem>>, vector<8x8xf32>,
    %c0_60 = arith.constant 0 : index
    %c0_61 = arith.constant 0 : index
    %188 = vector.load %arg4[%c0_60, %c0_61] : memref<16x32xf32, #tpu.memory_space<vmem>>, vector<16x32xf32>
    %189 = arith.truncf %188 : vector<16x32xf32> to vector<16x32xbf16>
    %cst_62 = arith.constant dense<0.000000e+00> : vector<16x32xf32>
    %190 = tpu.matmul %189, %14, %cst_62 {dimension_numbers = #tpu.dot_dimension_numbers<[1], [0], [0], [1], [0, 0, 1, 1], [], []>} : vector<16x32xbf16>, vector<32x32xbf16>, vector<16x32xf32> -> vector<16x32xf32>
    %191 = vector.broadcast %17 : vector<1x32xf32> to vector<16x32xf32>
    %192 = arith.addf %190, %191 : vector<16x32xf32>
    %193 = arith.addf %9, %192 : vector<16x32xf32>
    %cst_63 = arith.constant dense<0.000000e+00> : vector<16xf32>
    %194 = vector.multi_reduction <add>, %193, %cst_63 [1] : vector<16x32xf32> to vector<16xf32>
    %195 = vector.shape_cast %194 : vector<16xf32> to vector<16x1xf32>
    %cst_64 = arith.constant 3.200000e+01 : f32
    %196 = vector.broadcast %cst_64 : f32 to vector<16x1xf32>
    %197 = arith.divf %195, %196 : vector<16x1xf32>
    %198 = arith.mulf %193, %193 : vector<16x32xf32>
    %cst_65 = arith.constant dense<0.000000e+00> : vector<16xf32>
    %199 = vector.multi_reduction <add>, %198, %cst_65 [1] : vector<16x32xf32> to vector<16xf32>
    %200 = vector.shape_cast %199 : vector<16xf32> to vector<16x1xf32>
    %cst_66 = arith.constant 3.200000e+01 : f32
    %201 = vector.broadcast %cst_66 : f32 to vector<16x1xf32>
    %202 = arith.divf %200, %201 : vector<16x1xf32>
    %203 = vector.broadcast %197 : vector<16x1xf32> to vector<16x32xf32>
    %204 = arith.subf %193, %203 : vector<16x32xf32>
    %205 = arith.mulf %197, %197 : vector<16x1xf32>
    %206 = arith.subf %202, %205 : vector<16x1xf32>
    %cst_67 = arith.constant 9.99999974E-6 : f32
    %207 = vector.broadcast %cst_67 : f32 to vector<16x1xf32>
    %208 = arith.addf %206, %207 : vector<16x1xf32>
    %209 = math.rsqrt %208 : vector<16x1xf32>
    %210 = vector.broadcast %209 : vector<16x1xf32> to vector<16x32xf32>
    %211 = arith.mulf %204, %210 : vector<16x32xf32>
    %212 = vector.broadcast %22 : vector<1x32xf32> to vector<16x32xf32>
    %213 = arith.mulf %211, %212 : vector<16x32xf32>
    %214 = vector.broadcast %23 : vector<1x32xf32> to vector<16x32xf32>
    %215 = arith.addf %213, %214 : vector<16x32xf32>
    %216 = arith.truncf %215 : vector<16x32xf32> to vector<16x32xbf16>
    %cst_68 = arith.constant dense<0.000000e+00> : vector<16x64xf32>
    %217 = tpu.matmul %216, %11, %cst_68 {dimension_numbers = #tpu.dot_dimension_numbers<[1], [0], [0], [1], [0, 0, 1, 1], [], []>} : vector<16x32xbf16>, vector<32x64xbf16>, vector<16x64xf32> -> vector<16x64xf32>
    %218 = vector.broadcast %19 : vector<1x64xf32> to vector<16x64xf32>
    %219 = arith.addf %217, %218 : vector<16x64xf32>
    %cst_69 = arith.constant 0.000000e+00 : f32
    %220 = vector.broadcast %cst_69 : f32 to vector<16x64xf32>
    %221 = arith.maximumf %219, %220 : vector<16x64xf32>
    %222 = arith.truncf %221 : vector<16x64xf32> to vector<16x64xbf16>
    %cst_70 = arith.constant dense<0.000000e+00> : vector<16x32xf32>
    %223 = tpu.matmul %222, %12, %cst_70 {dimension_numbers = #tpu.dot_dimension_numbers<[1], [0], [0], [1], [0, 0, 1, 1], [], []>} : vector<16x64xbf16>, vector<64x32xbf16>, vector<16x32xf32> -> vector<16x32xf32>
    %224 = vector.broadcast %20 : vector<1x32xf32> to vector<16x32xf32>
    %225 = arith.addf %223, %224 : vector<16x32xf32>
    %226 = arith.addf %215, %225 : vector<16x32xf32>
    %cst_71 = arith.constant dense<0.000000e+00> : vector<16xf32>
    %227 = vector.multi_reduction <add>, %226, %cst_71 [1] : vector<16x32xf32> to vector<16xf32>
    %228 = vector.shape_cast %227 : vector<16xf32> to vector<16x1xf32>
    %cst_72 = arith.constant 3.200000e+01 : f32
    %229 = vector.broadcast %cst_72 : f32 to vector<16x1xf32>
    %230 = arith.divf %228, %229 : vector<16x1xf32>
    %231 = arith.mulf %226, %226 : vector<16x32xf32>
    %cst_73 = arith.constant dense<0.000000e+00> : vector<16xf32>
    %232 = vector.multi_reduction <add>, %231, %cst_73 [1] : vector<16x32xf32> to vector<16xf32>
    %233 = vector.shape_cast %232 : vector<16xf32> to vector<16x1xf32>
    %cst_74 = arith.constant 3.200000e+01 : f32
    %234 = vector.broadcast %cst_74 : f32 to vector<16x1xf32>
    %235 = arith.divf %233, %234 : vector<16x1xf32>
    %236 = vector.broadcast %230 : vector<16x1xf32> to vector<16x32xf32>
    %237 = arith.subf %226, %236 : vector<16x32xf32>
    %238 = arith.mulf %230, %230 : vector<16x1xf32>
    %239 = arith.subf %235, %238 : vector<16x1xf32>
    %cst_75 = arith.constant 9.99999974E-6 : f32
    %240 = vector.broadcast %cst_75 : f32 to vector<16x1xf32>
    %241 = arith.addf %239, %240 : vector<16x1xf32>
    %242 = math.rsqrt %241 : vector<16x1xf32>
    %243 = vector.broadcast %242 : vector<16x1xf32> to vector<16x32xf32>
    %244 = arith.mulf %237, %243 : vector<16x32xf32>
    %245 = vector.broadcast %24 : vector<1x32xf32> to vector<16x32xf32>
    %246 = arith.mulf %244, %245 : vector<16x32xf32>
    %247 = vector.broadcast %25 : vector<1x32xf32> to vector<16x32xf32>
    %248 = arith.addf %246, %247 : vector<16x32xf32>
    %c128 = arith.constant 128 : index
    %c0_76 = arith.constant 0 : index
    %249 = vector.load %arg2[%c128, %c0_76] : memref<256x128xbf16, #tpu.memory_space<vmem>>, vector<32x128xbf16>
    %c160 = arith.constant 160 : index
    %c0_77 = arith.constant 0 : index
    %250 = vector.load %arg2[%c160, %c0_77] : memref<256x128xbf16, #tpu.memory_space<vmem>>, vector<32x64xbf16>
    %c192 = arith.constant 192 : index
    %c0_78 = arith.constant 0 : index
    %251 = vector.load %arg2[%c192, %c0_78] : memref<256x128xbf16, #tpu.memory_space<vmem>>, vector<64x32xbf16>
    %252 = vector.extract_strided_slice %249 {offsets = [0, 0], sizes = [32, 96], strides = [1, 1]} : vector<32x128xbf16> to vector<32x96xbf16>
    %253 = vector.extract_strided_slice %249 {offsets = [0, 96], sizes = [32, 32], strides = [1, 1]} : vector<32x128xbf16> to vector<32x32xbf16>
    %254 = vector.extract_strided_slice %1 {offsets = [22, 0], sizes = [1, 128], strides = [1, 1]} : vector<32x128xf32> to vector<1x128xf32>
    %255 = vector.extract_strided_slice %254 {offsets = [0, 0], sizes = [1, 96], strides = [1, 1]} : vector<1x128xf32> to vector<1x96xf32>
    %256 = vector.extract_strided_slice %254 {offsets = [0, 96], sizes = [1, 32], strides = [1, 1]} : vector<1x128xf32> to vector<1x32xf32>
    %257 = vector.extract_strided_slice %1 {offsets = [23, 0], sizes = [1, 128], strides = [1, 1]} : vector<32x128xf32> to vector<1x128xf32>
    %258 = vector.extract_strided_slice %257 {offsets = [0, 0], sizes = [1, 64], strides = [1, 1]} : vector<1x128xf32> to vector<1x64xf32>
    %259 = vector.extract_strided_slice %257 {offsets = [0, 64], sizes = [1, 32], strides = [1, 1]} : vector<1x128xf32> to vector<1x32xf32>
    %260 = vector.extract_strided_slice %1 {offsets = [24, 0], sizes = [1, 128], strides = [1, 1]} : vector<32x128xf32> to vector<1x128xf32>
    %261 = vector.extract_strided_slice %260 {offsets = [0, 0], sizes = [1, 32], strides = [1, 1]} : vector<1x128xf32> to vector<1x32xf32>
    %262 = vector.extract_strided_slice %260 {offsets = [0, 32], sizes = [1, 32], strides = [1, 1]} : vector<1x128xf32> to vector<1x32xf32>
    %263 = vector.extract_strided_slice %260 {offsets = [0, 64], sizes = [1, 32], strides = [1, 1]} : vector<1x128xf32> to vector<1x32xf32>
    %264 = vector.extract_strided_slice %260 {offsets = [0, 96], sizes = [1, 32], strides = [1, 1]} : vector<1x128xf32> to vector<1x32xf32>
    %265 = arith.truncf %248 : vector<16x32xf32> to vector<16x32xbf16>
    %cst_79 = arith.constant dense<0.000000e+00> : vector<16x96xf32>
    %266 = tpu.matmul %265, %252, %cst_79 {dimension_numbers = #tpu.dot_dimension_numbers<[1], [0], [0], [1], [0, 0, 1, 1], [], []>} : vector<16x32xbf16>, vector<32x96xbf16>, vector<16x96xf32> -> vector<16x96xf32>
    %267 = vector.broadcast %255 : vector<1x96xf32> to vector<16x96xf32>
    %268 = arith.addf %266, %267 : vector<16x96xf32>
    %269 = vector.extract_strided_slice %268 {offsets = [0, 0], sizes = [16, 32], strides = [1, 1]} : vector<16x96xf32> to vector<16x32xf32>
    %270 = arith.truncf %269 : vector<16x32xf32> to vector<16x32xbf16>
    %271 = vector.extract_strided_slice %268 {offsets = [0, 32], sizes = [16, 32], strides = [1, 1]} : vector<16x96xf32> to vector<16x32xf32>
    %272 = arith.truncf %271 : vector<16x32xf32> to vector<16x32xbf16>
    %273 = vector.extract_strided_slice %268 {offsets = [0, 64], sizes = [16, 32], strides = [1, 1]} : vector<16x96xf32> to vector<16x32xf32>
    %274 = arith.truncf %273 : vector<16x32xf32> to vector<16x32xbf16>
    %275 = vector.extract_strided_slice %270 {offsets = [0, 0], sizes = [8, 8], strides = [1, 1]} : vector<16x32xbf16> to vector<8x8xbf16>
    %276 = vector.extract_strided_slice %272 {offsets = [0, 0], sizes = [8, 8], strides = [1, 1]} : vector<16x32xbf16> to vector<8x8xbf16>
    %277 = vector.extract_strided_slice %274 {offsets = [0, 0], sizes = [8, 8], strides = [1, 1]} : vector<16x32xbf16> to vector<8x8xbf16>
    %cst_80 = arith.constant dense<0.000000e+00> : vector<8x8xf32>
    %278 = tpu.matmul %275, %276, %cst_80 {dimension_numbers = #tpu.dot_dimension_numbers<[1], [1], [0], [0], [0, 0, 1, 0], [], []>} : vector<8x8xbf16>, vector<8x8xbf16>, vector<8x8xf32> -> vector<8x8xf32>
    %cst_81 = arith.constant 0.353553385 : f32
    %279 = vector.broadcast %cst_81 : f32 to vector<8x8xf32>
    %280 = arith.mulf %278, %279 : vector<8x8xf32>
    %cst_82 = arith.constant dense<0xFF800000> : vector<8xf32>
    %281 = vector.multi_reduction <maximumf>, %280, %cst_82 [1] : vector<8x8xf32> to vector<8xf32>
    %282 = vector.shape_cast %281 : vector<8xf32> to vector<8x1xf32>
    %283 = vector.broadcast %282 : vector<8x1xf32> to vector<8x8xf32>
    %284 = arith.subf %280, %283 : vector<8x8xf32>
    %285 = math.exp %284 : vector<8x8xf32>
    %cst_83 = arith.constant dense<0.000000e+00> : vector<8xf32>
    %286 = vector.multi_reduction <add>, %285, %cst_83 [1] : vector<8x8xf32> to vector<8xf32>
    %287 = vector.shape_cast %286 : vector<8xf32> to vector<8x1xf32>
    %288 = tpu.reciprocal %287 {approx = true} : vector<8x1xf32> -> vector<8x1xf32>
    %289 = vector.broadcast %288 : vector<8x1xf32> to vector<8x8xf32>
    %290 = arith.mulf %285, %289 : vector<8x8xf32>
    %291 = arith.truncf %290 : vector<8x8xf32> to vector<8x8xbf16>
    %cst_84 = arith.constant dense<0.000000e+00> : vector<8x8xf32>
    %292 = tpu.matmul %291, %277, %cst_84 {dimension_numbers = #tpu.dot_dimension_numbers<[1], [0], [0], [1], [0, 0, 1, 1], [], []>} : vector<8x8xbf16>, vector<8x8xbf16>, vector<8x8xf32> -> vector<8x8xf32>
    %c0_85 = arith.constant 0 : index
    %c0_86 = arith.constant 0 : index
    %293 = vector.load %arg4[%c0_85, %c0_86] : memref<16x32xf32, #tpu.memory_space<vmem>>, vector<8x8xf32>
    tpu.vector_store %arg4[%c0_85, %c0_86], %292 {strides = array<i32>} : memref<16x32xf32, #tpu.memory_space<vmem>>, vector<8x8xf32>,
    %294 = vector.extract_strided_slice %270 {offsets = [0, 8], sizes = [8, 8], strides = [1, 1]} : vector<16x32xbf16> to vector<8x8xbf16>
    %295 = vector.extract_strided_slice %272 {offsets = [0, 8], sizes = [8, 8], strides = [1, 1]} : vector<16x32xbf16> to vector<8x8xbf16>
    %296 = vector.extract_strided_slice %274 {offsets = [0, 8], sizes = [8, 8], strides = [1, 1]} : vector<16x32xbf16> to vector<8x8xbf16>
    %cst_87 = arith.constant dense<0.000000e+00> : vector<8x8xf32>
    %297 = tpu.matmul %294, %295, %cst_87 {dimension_numbers = #tpu.dot_dimension_numbers<[1], [1], [0], [0], [0, 0, 1, 0], [], []>} : vector<8x8xbf16>, vector<8x8xbf16>, vector<8x8xf32> -> vector<8x8xf32>
    %cst_88 = arith.constant 0.353553385 : f32
    %298 = vector.broadcast %cst_88 : f32 to vector<8x8xf32>
    %299 = arith.mulf %297, %298 : vector<8x8xf32>
    %cst_89 = arith.constant dense<0xFF800000> : vector<8xf32>
    %300 = vector.multi_reduction <maximumf>, %299, %cst_89 [1] : vector<8x8xf32> to vector<8xf32>
    %301 = vector.shape_cast %300 : vector<8xf32> to vector<8x1xf32>
    %302 = vector.broadcast %301 : vector<8x1xf32> to vector<8x8xf32>
    %303 = arith.subf %299, %302 : vector<8x8xf32>
    %304 = math.exp %303 : vector<8x8xf32>
    %cst_90 = arith.constant dense<0.000000e+00> : vector<8xf32>
    %305 = vector.multi_reduction <add>, %304, %cst_90 [1] : vector<8x8xf32> to vector<8xf32>
    %306 = vector.shape_cast %305 : vector<8xf32> to vector<8x1xf32>
    %307 = tpu.reciprocal %306 {approx = true} : vector<8x1xf32> -> vector<8x1xf32>
    %308 = vector.broadcast %307 : vector<8x1xf32> to vector<8x8xf32>
    %309 = arith.mulf %304, %308 : vector<8x8xf32>
    %310 = arith.truncf %309 : vector<8x8xf32> to vector<8x8xbf16>
    %cst_91 = arith.constant dense<0.000000e+00> : vector<8x8xf32>
    %311 = tpu.matmul %310, %296, %cst_91 {dimension_numbers = #tpu.dot_dimension_numbers<[1], [0], [0], [1], [0, 0, 1, 1], [], []>} : vector<8x8xbf16>, vector<8x8xbf16>, vector<8x8xf32> -> vector<8x8xf32>
    %c0_92 = arith.constant 0 : index
    %c8_93 = arith.constant 8 : index
    %312 = vector.load %arg4[%c0_92, %c8_93] : memref<16x32xf32, #tpu.memory_space<vmem>>, vector<8x8xf32>
    tpu.vector_store %arg4[%c0_92, %c8_93], %311 {strides = array<i32>} : memref<16x32xf32, #tpu.memory_space<vmem>>, vector<8x8xf32>,
    %313 = vector.extract_strided_slice %270 {offsets = [0, 16], sizes = [8, 8], strides = [1, 1]} : vector<16x32xbf16> to vector<8x8xbf16>
    %314 = vector.extract_strided_slice %272 {offsets = [0, 16], sizes = [8, 8], strides = [1, 1]} : vector<16x32xbf16> to vector<8x8xbf16>
    %315 = vector.extract_strided_slice %274 {offsets = [0, 16], sizes = [8, 8], strides = [1, 1]} : vector<16x32xbf16> to vector<8x8xbf16>
    %cst_94 = arith.constant dense<0.000000e+00> : vector<8x8xf32>
    %316 = tpu.matmul %313, %314, %cst_94 {dimension_numbers = #tpu.dot_dimension_numbers<[1], [1], [0], [0], [0, 0, 1, 0], [], []>} : vector<8x8xbf16>, vector<8x8xbf16>, vector<8x8xf32> -> vector<8x8xf32>
    %cst_95 = arith.constant 0.353553385 : f32
    %317 = vector.broadcast %cst_95 : f32 to vector<8x8xf32>
    %318 = arith.mulf %316, %317 : vector<8x8xf32>
    %cst_96 = arith.constant dense<0xFF800000> : vector<8xf32>
    %319 = vector.multi_reduction <maximumf>, %318, %cst_96 [1] : vector<8x8xf32> to vector<8xf32>
    %320 = vector.shape_cast %319 : vector<8xf32> to vector<8x1xf32>
    %321 = vector.broadcast %320 : vector<8x1xf32> to vector<8x8xf32>
    %322 = arith.subf %318, %321 : vector<8x8xf32>
    %323 = math.exp %322 : vector<8x8xf32>
    %cst_97 = arith.constant dense<0.000000e+00> : vector<8xf32>
    %324 = vector.multi_reduction <add>, %323, %cst_97 [1] : vector<8x8xf32> to vector<8xf32>
    %325 = vector.shape_cast %324 : vector<8xf32> to vector<8x1xf32>
    %326 = tpu.reciprocal %325 {approx = true} : vector<8x1xf32> -> vector<8x1xf32>
    %327 = vector.broadcast %326 : vector<8x1xf32> to vector<8x8xf32>
    %328 = arith.mulf %323, %327 : vector<8x8xf32>
    %329 = arith.truncf %328 : vector<8x8xf32> to vector<8x8xbf16>
    %cst_98 = arith.constant dense<0.000000e+00> : vector<8x8xf32>
    %330 = tpu.matmul %329, %315, %cst_98 {dimension_numbers = #tpu.dot_dimension_numbers<[1], [0], [0], [1], [0, 0, 1, 1], [], []>} : vector<8x8xbf16>, vector<8x8xbf16>, vector<8x8xf32> -> vector<8x8xf32>
    %c0_99 = arith.constant 0 : index
    %c16_100 = arith.constant 16 : index
    %331 = vector.load %arg4[%c0_99, %c16_100] : memref<16x32xf32, #tpu.memory_space<vmem>>, vector<8x8xf32>
    tpu.vector_store %arg4[%c0_99, %c16_100], %330 {strides = array<i32>} : memref<16x32xf32, #tpu.memory_space<vmem>>, vector<8x8xf32>,
    %332 = vector.extract_strided_slice %270 {offsets = [0, 24], sizes = [8, 8], strides = [1, 1]} : vector<16x32xbf16> to vector<8x8xbf16>
    %333 = vector.extract_strided_slice %272 {offsets = [0, 24], sizes = [8, 8], strides = [1, 1]} : vector<16x32xbf16> to vector<8x8xbf16>
    %334 = vector.extract_strided_slice %274 {offsets = [0, 24], sizes = [8, 8], strides = [1, 1]} : vector<16x32xbf16> to vector<8x8xbf16>
    %cst_101 = arith.constant dense<0.000000e+00> : vector<8x8xf32>
    %335 = tpu.matmul %332, %333, %cst_101 {dimension_numbers = #tpu.dot_dimension_numbers<[1], [1], [0], [0], [0, 0, 1, 0], [], []>} : vector<8x8xbf16>, vector<8x8xbf16>, vector<8x8xf32> -> vector<8x8xf32>
    %cst_102 = arith.constant 0.353553385 : f32
    %336 = vector.broadcast %cst_102 : f32 to vector<8x8xf32>
    %337 = arith.mulf %335, %336 : vector<8x8xf32>
    %cst_103 = arith.constant dense<0xFF800000> : vector<8xf32>
    %338 = vector.multi_reduction <maximumf>, %337, %cst_103 [1] : vector<8x8xf32> to vector<8xf32>
    %339 = vector.shape_cast %338 : vector<8xf32> to vector<8x1xf32>
    %340 = vector.broadcast %339 : vector<8x1xf32> to vector<8x8xf32>
    %341 = arith.subf %337, %340 : vector<8x8xf32>
    %342 = math.exp %341 : vector<8x8xf32>
    %cst_104 = arith.constant dense<0.000000e+00> : vector<8xf32>
    %343 = vector.multi_reduction <add>, %342, %cst_104 [1] : vector<8x8xf32> to vector<8xf32>
    %344 = vector.shape_cast %343 : vector<8xf32> to vector<8x1xf32>
    %345 = tpu.reciprocal %344 {approx = true} : vector<8x1xf32> -> vector<8x1xf32>
    %346 = vector.broadcast %345 : vector<8x1xf32> to vector<8x8xf32>
    %347 = arith.mulf %342, %346 : vector<8x8xf32>
    %348 = arith.truncf %347 : vector<8x8xf32> to vector<8x8xbf16>
    %cst_105 = arith.constant dense<0.000000e+00> : vector<8x8xf32>
    %349 = tpu.matmul %348, %334, %cst_105 {dimension_numbers = #tpu.dot_dimension_numbers<[1], [0], [0], [1], [0, 0, 1, 1], [], []>} : vector<8x8xbf16>, vector<8x8xbf16>, vector<8x8xf32> -> vector<8x8xf32>
    %c0_106 = arith.constant 0 : index
    %c24_107 = arith.constant 24 : index
    %350 = vector.load %arg4[%c0_106, %c24_107] : memref<16x32xf32, #tpu.memory_space<vmem>>, vector<8x8xf32>
    tpu.vector_store %arg4[%c0_106, %c24_107], %349 {strides = array<i32>} : memref<16x32xf32, #tpu.memory_space<vmem>>, vector<8x8xf32>,
    %351 = vector.extract_strided_slice %270 {offsets = [8, 0], sizes = [8, 8], strides = [1, 1]} : vector<16x32xbf16> to vector<8x8xbf16>
    %352 = vector.extract_strided_slice %272 {offsets = [8, 0], sizes = [8, 8], strides = [1, 1]} : vector<16x32xbf16> to vector<8x8xbf16>
    %353 = vector.extract_strided_slice %274 {offsets = [8, 0], sizes = [8, 8], strides = [1, 1]} : vector<16x32xbf16> to vector<8x8xbf16>
    %cst_108 = arith.constant dense<0.000000e+00> : vector<8x8xf32>
    %354 = tpu.matmul %351, %352, %cst_108 {dimension_numbers = #tpu.dot_dimension_numbers<[1], [1], [0], [0], [0, 0, 1, 0], [], []>} : vector<8x8xbf16>, vector<8x8xbf16>, vector<8x8xf32> -> vector<8x8xf32>
    %cst_109 = arith.constant 0.353553385 : f32
    %355 = vector.broadcast %cst_109 : f32 to vector<8x8xf32>
    %356 = arith.mulf %354, %355 : vector<8x8xf32>
    %cst_110 = arith.constant dense<0xFF800000> : vector<8xf32>
    %357 = vector.multi_reduction <maximumf>, %356, %cst_110 [1] : vector<8x8xf32> to vector<8xf32>
    %358 = vector.shape_cast %357 : vector<8xf32> to vector<8x1xf32>
    %359 = vector.broadcast %358 : vector<8x1xf32> to vector<8x8xf32>
    %360 = arith.subf %356, %359 : vector<8x8xf32>
    %361 = math.exp %360 : vector<8x8xf32>
    %cst_111 = arith.constant dense<0.000000e+00> : vector<8xf32>
    %362 = vector.multi_reduction <add>, %361, %cst_111 [1] : vector<8x8xf32> to vector<8xf32>
    %363 = vector.shape_cast %362 : vector<8xf32> to vector<8x1xf32>
    %364 = tpu.reciprocal %363 {approx = true} : vector<8x1xf32> -> vector<8x1xf32>
    %365 = vector.broadcast %364 : vector<8x1xf32> to vector<8x8xf32>
    %366 = arith.mulf %361, %365 : vector<8x8xf32>
    %367 = arith.truncf %366 : vector<8x8xf32> to vector<8x8xbf16>
    %cst_112 = arith.constant dense<0.000000e+00> : vector<8x8xf32>
    %368 = tpu.matmul %367, %353, %cst_112 {dimension_numbers = #tpu.dot_dimension_numbers<[1], [0], [0], [1], [0, 0, 1, 1], [], []>} : vector<8x8xbf16>, vector<8x8xbf16>, vector<8x8xf32> -> vector<8x8xf32>
    %c8_113 = arith.constant 8 : index
    %c0_114 = arith.constant 0 : index
    %369 = vector.load %arg4[%c8_113, %c0_114] : memref<16x32xf32, #tpu.memory_space<vmem>>, vector<8x8xf32>
    tpu.vector_store %arg4[%c8_113, %c0_114], %368 {strides = array<i32>} : memref<16x32xf32, #tpu.memory_space<vmem>>, vector<8x8xf32>,
    %370 = vector.extract_strided_slice %270 {offsets = [8, 8], sizes = [8, 8], strides = [1, 1]} : vector<16x32xbf16> to vector<8x8xbf16>
    %371 = vector.extract_strided_slice %272 {offsets = [8, 8], sizes = [8, 8], strides = [1, 1]} : vector<16x32xbf16> to vector<8x8xbf16>
    %372 = vector.extract_strided_slice %274 {offsets = [8, 8], sizes = [8, 8], strides = [1, 1]} : vector<16x32xbf16> to vector<8x8xbf16>
    %cst_115 = arith.constant dense<0.000000e+00> : vector<8x8xf32>
    %373 = tpu.matmul %370, %371, %cst_115 {dimension_numbers = #tpu.dot_dimension_numbers<[1], [1], [0], [0], [0, 0, 1, 0], [], []>} : vector<8x8xbf16>, vector<8x8xbf16>, vector<8x8xf32> -> vector<8x8xf32>
    %cst_116 = arith.constant 0.353553385 : f32
    %374 = vector.broadcast %cst_116 : f32 to vector<8x8xf32>
    %375 = arith.mulf %373, %374 : vector<8x8xf32>
    %cst_117 = arith.constant dense<0xFF800000> : vector<8xf32>
    %376 = vector.multi_reduction <maximumf>, %375, %cst_117 [1] : vector<8x8xf32> to vector<8xf32>
    %377 = vector.shape_cast %376 : vector<8xf32> to vector<8x1xf32>
    %378 = vector.broadcast %377 : vector<8x1xf32> to vector<8x8xf32>
    %379 = arith.subf %375, %378 : vector<8x8xf32>
    %380 = math.exp %379 : vector<8x8xf32>
    %cst_118 = arith.constant dense<0.000000e+00> : vector<8xf32>
    %381 = vector.multi_reduction <add>, %380, %cst_118 [1] : vector<8x8xf32> to vector<8xf32>
    %382 = vector.shape_cast %381 : vector<8xf32> to vector<8x1xf32>
    %383 = tpu.reciprocal %382 {approx = true} : vector<8x1xf32> -> vector<8x1xf32>
    %384 = vector.broadcast %383 : vector<8x1xf32> to vector<8x8xf32>
    %385 = arith.mulf %380, %384 : vector<8x8xf32>
    %386 = arith.truncf %385 : vector<8x8xf32> to vector<8x8xbf16>
    %cst_119 = arith.constant dense<0.000000e+00> : vector<8x8xf32>
    %387 = tpu.matmul %386, %372, %cst_119 {dimension_numbers = #tpu.dot_dimension_numbers<[1], [0], [0], [1], [0, 0, 1, 1], [], []>} : vector<8x8xbf16>, vector<8x8xbf16>, vector<8x8xf32> -> vector<8x8xf32>
    %c8_120 = arith.constant 8 : index
    %c8_121 = arith.constant 8 : index
    %388 = vector.load %arg4[%c8_120, %c8_121] : memref<16x32xf32, #tpu.memory_space<vmem>>, vector<8x8xf32>
    tpu.vector_store %arg4[%c8_120, %c8_121], %387 {strides = array<i32>} : memref<16x32xf32, #tpu.memory_space<vmem>>, vector<8x8xf32>,
    %389 = vector.extract_strided_slice %270 {offsets = [8, 16], sizes = [8, 8], strides = [1, 1]} : vector<16x32xbf16> to vector<8x8xbf16>
    %390 = vector.extract_strided_slice %272 {offsets = [8, 16], sizes = [8, 8], strides = [1, 1]} : vector<16x32xbf16> to vector<8x8xbf16>
    %391 = vector.extract_strided_slice %274 {offsets = [8, 16], sizes = [8, 8], strides = [1, 1]} : vector<16x32xbf16> to vector<8x8xbf16>
    %cst_122 = arith.constant dense<0.000000e+00> : vector<8x8xf32>
    %392 = tpu.matmul %389, %390, %cst_122 {dimension_numbers = #tpu.dot_dimension_numbers<[1], [1], [0], [0], [0, 0, 1, 0], [], []>} : vector<8x8xbf16>, vector<8x8xbf16>, vector<8x8xf32> -> vector<8x8xf32>
    %cst_123 = arith.constant 0.353553385 : f32
    %393 = vector.broadcast %cst_123 : f32 to vector<8x8xf32>
    %394 = arith.mulf %392, %393 : vector<8x8xf32>
    %cst_124 = arith.constant dense<0xFF800000> : vector<8xf32>
    %395 = vector.multi_reduction <maximumf>, %394, %cst_124 [1] : vector<8x8xf32> to vector<8xf32>
    %396 = vector.shape_cast %395 : vector<8xf32> to vector<8x1xf32>
    %397 = vector.broadcast %396 : vector<8x1xf32> to vector<8x8xf32>
    %398 = arith.subf %394, %397 : vector<8x8xf32>
    %399 = math.exp %398 : vector<8x8xf32>
    %cst_125 = arith.constant dense<0.000000e+00> : vector<8xf32>
    %400 = vector.multi_reduction <add>, %399, %cst_125 [1] : vector<8x8xf32> to vector<8xf32>
    %401 = vector.shape_cast %400 : vector<8xf32> to vector<8x1xf32>
    %402 = tpu.reciprocal %401 {approx = true} : vector<8x1xf32> -> vector<8x1xf32>
    %403 = vector.broadcast %402 : vector<8x1xf32> to vector<8x8xf32>
    %404 = arith.mulf %399, %403 : vector<8x8xf32>
    %405 = arith.truncf %404 : vector<8x8xf32> to vector<8x8xbf16>
    %cst_126 = arith.constant dense<0.000000e+00> : vector<8x8xf32>
    %406 = tpu.matmul %405, %391, %cst_126 {dimension_numbers = #tpu.dot_dimension_numbers<[1], [0], [0], [1], [0, 0, 1, 1], [], []>} : vector<8x8xbf16>, vector<8x8xbf16>, vector<8x8xf32> -> vector<8x8xf32>
    %c8_127 = arith.constant 8 : index
    %c16_128 = arith.constant 16 : index
    %407 = vector.load %arg4[%c8_127, %c16_128] : memref<16x32xf32, #tpu.memory_space<vmem>>, vector<8x8xf32>
    tpu.vector_store %arg4[%c8_127, %c16_128], %406 {strides = array<i32>} : memref<16x32xf32, #tpu.memory_space<vmem>>, vector<8x8xf32>,
    %408 = vector.extract_strided_slice %270 {offsets = [8, 24], sizes = [8, 8], strides = [1, 1]} : vector<16x32xbf16> to vector<8x8xbf16>
    %409 = vector.extract_strided_slice %272 {offsets = [8, 24], sizes = [8, 8], strides = [1, 1]} : vector<16x32xbf16> to vector<8x8xbf16>
    %410 = vector.extract_strided_slice %274 {offsets = [8, 24], sizes = [8, 8], strides = [1, 1]} : vector<16x32xbf16> to vector<8x8xbf16>
    %cst_129 = arith.constant dense<0.000000e+00> : vector<8x8xf32>
    %411 = tpu.matmul %408, %409, %cst_129 {dimension_numbers = #tpu.dot_dimension_numbers<[1], [1], [0], [0], [0, 0, 1, 0], [], []>} : vector<8x8xbf16>, vector<8x8xbf16>, vector<8x8xf32> -> vector<8x8xf32>
    %cst_130 = arith.constant 0.353553385 : f32
    %412 = vector.broadcast %cst_130 : f32 to vector<8x8xf32>
    %413 = arith.mulf %411, %412 : vector<8x8xf32>
    %cst_131 = arith.constant dense<0xFF800000> : vector<8xf32>
    %414 = vector.multi_reduction <maximumf>, %413, %cst_131 [1] : vector<8x8xf32> to vector<8xf32>
    %415 = vector.shape_cast %414 : vector<8xf32> to vector<8x1xf32>
    %416 = vector.broadcast %415 : vector<8x1xf32> to vector<8x8xf32>
    %417 = arith.subf %413, %416 : vector<8x8xf32>
    %418 = math.exp %417 : vector<8x8xf32>
    %cst_132 = arith.constant dense<0.000000e+00> : vector<8xf32>
    %419 = vector.multi_reduction <add>, %418, %cst_132 [1] : vector<8x8xf32> to vector<8xf32>
    %420 = vector.shape_cast %419 : vector<8xf32> to vector<8x1xf32>
    %421 = tpu.reciprocal %420 {approx = true} : vector<8x1xf32> -> vector<8x1xf32>
    %422 = vector.broadcast %421 : vector<8x1xf32> to vector<8x8xf32>
    %423 = arith.mulf %418, %422 : vector<8x8xf32>
    %424 = arith.truncf %423 : vector<8x8xf32> to vector<8x8xbf16>
    %cst_133 = arith.constant dense<0.000000e+00> : vector<8x8xf32>
    %425 = tpu.matmul %424, %410, %cst_133 {dimension_numbers = #tpu.dot_dimension_numbers<[1], [0], [0], [1], [0, 0, 1, 1], [], []>} : vector<8x8xbf16>, vector<8x8xbf16>, vector<8x8xf32> -> vector<8x8xf32>
    %c8_134 = arith.constant 8 : index
    %c24_135 = arith.constant 24 : index
    %426 = vector.load %arg4[%c8_134, %c24_135] : memref<16x32xf32, #tpu.memory_space<vmem>>, vector<8x8xf32>
    tpu.vector_store %arg4[%c8_134, %c24_135], %425 {strides = array<i32>} : memref<16x32xf32, #tpu.memory_space<vmem>>, vector<8x8xf32>,
    %c0_136 = arith.constant 0 : index
    %c0_137 = arith.constant 0 : index
    %427 = vector.load %arg4[%c0_136, %c0_137] : memref<16x32xf32, #tpu.memory_space<vmem>>, vector<16x32xf32>
    %428 = arith.truncf %427 : vector<16x32xf32> to vector<16x32xbf16>
    %cst_138 = arith.constant dense<0.000000e+00> : vector<16x32xf32>
    %429 = tpu.matmul %428, %253, %cst_138 {dimension_numbers = #tpu.dot_dimension_numbers<[1], [0], [0], [1], [0, 0, 1, 1], [], []>} : vector<16x32xbf16>, vector<32x32xbf16>, vector<16x32xf32> -> vector<16x32xf32>
    %430 = vector.broadcast %256 : vector<1x32xf32> to vector<16x32xf32>
    %431 = arith.addf %429, %430 : vector<16x32xf32>
    %432 = arith.addf %248, %431 : vector<16x32xf32>
    %cst_139 = arith.constant dense<0.000000e+00> : vector<16xf32>
    %433 = vector.multi_reduction <add>, %432, %cst_139 [1] : vector<16x32xf32> to vector<16xf32>
    %434 = vector.shape_cast %433 : vector<16xf32> to vector<16x1xf32>
    %cst_140 = arith.constant 3.200000e+01 : f32
    %435 = vector.broadcast %cst_140 : f32 to vector<16x1xf32>
    %436 = arith.divf %434, %435 : vector<16x1xf32>
    %437 = arith.mulf %432, %432 : vector<16x32xf32>
    %cst_141 = arith.constant dense<0.000000e+00> : vector<16xf32>
    %438 = vector.multi_reduction <add>, %437, %cst_141 [1] : vector<16x32xf32> to vector<16xf32>
    %439 = vector.shape_cast %438 : vector<16xf32> to vector<16x1xf32>
    %cst_142 = arith.constant 3.200000e+01 : f32
    %440 = vector.broadcast %cst_142 : f32 to vector<16x1xf32>
    %441 = arith.divf %439, %440 : vector<16x1xf32>
    %442 = vector.broadcast %436 : vector<16x1xf32> to vector<16x32xf32>
    %443 = arith.subf %432, %442 : vector<16x32xf32>
    %444 = arith.mulf %436, %436 : vector<16x1xf32>
    %445 = arith.subf %441, %444 : vector<16x1xf32>
    %cst_143 = arith.constant 9.99999974E-6 : f32
    %446 = vector.broadcast %cst_143 : f32 to vector<16x1xf32>
    %447 = arith.addf %445, %446 : vector<16x1xf32>
    %448 = math.rsqrt %447 : vector<16x1xf32>
    %449 = vector.broadcast %448 : vector<16x1xf32> to vector<16x32xf32>
    %450 = arith.mulf %443, %449 : vector<16x32xf32>
    %451 = vector.broadcast %261 : vector<1x32xf32> to vector<16x32xf32>
    %452 = arith.mulf %450, %451 : vector<16x32xf32>
    %453 = vector.broadcast %262 : vector<1x32xf32> to vector<16x32xf32>
    %454 = arith.addf %452, %453 : vector<16x32xf32>
    %455 = arith.truncf %454 : vector<16x32xf32> to vector<16x32xbf16>
    %cst_144 = arith.constant dense<0.000000e+00> : vector<16x64xf32>
    %456 = tpu.matmul %455, %250, %cst_144 {dimension_numbers = #tpu.dot_dimension_numbers<[1], [0], [0], [1], [0, 0, 1, 1], [], []>} : vector<16x32xbf16>, vector<32x64xbf16>, vector<16x64xf32> -> vector<16x64xf32>
    %457 = vector.broadcast %258 : vector<1x64xf32> to vector<16x64xf32>
    %458 = arith.addf %456, %457 : vector<16x64xf32>
    %cst_145 = arith.constant 0.000000e+00 : f32
    %459 = vector.broadcast %cst_145 : f32 to vector<16x64xf32>
    %460 = arith.maximumf %458, %459 : vector<16x64xf32>
    %461 = arith.truncf %460 : vector<16x64xf32> to vector<16x64xbf16>
    %cst_146 = arith.constant dense<0.000000e+00> : vector<16x32xf32>
    %462 = tpu.matmul %461, %251, %cst_146 {dimension_numbers = #tpu.dot_dimension_numbers<[1], [0], [0], [1], [0, 0, 1, 1], [], []>} : vector<16x64xbf16>, vector<64x32xbf16>, vector<16x32xf32> -> vector<16x32xf32>
    %463 = vector.broadcast %259 : vector<1x32xf32> to vector<16x32xf32>
    %464 = arith.addf %462, %463 : vector<16x32xf32>
    %465 = arith.addf %454, %464 : vector<16x32xf32>
    %cst_147 = arith.constant dense<0.000000e+00> : vector<16xf32>
    %466 = vector.multi_reduction <add>, %465, %cst_147 [1] : vector<16x32xf32> to vector<16xf32>
    %467 = vector.shape_cast %466 : vector<16xf32> to vector<16x1xf32>
    %cst_148 = arith.constant 3.200000e+01 : f32
    %468 = vector.broadcast %cst_148 : f32 to vector<16x1xf32>
    %469 = arith.divf %467, %468 : vector<16x1xf32>
    %470 = arith.mulf %465, %465 : vector<16x32xf32>
    %cst_149 = arith.constant dense<0.000000e+00> : vector<16xf32>
    %471 = vector.multi_reduction <add>, %470, %cst_149 [1] : vector<16x32xf32> to vector<16xf32>
    %472 = vector.shape_cast %471 : vector<16xf32> to vector<16x1xf32>
    %cst_150 = arith.constant 3.200000e+01 : f32
    %473 = vector.broadcast %cst_150 : f32 to vector<16x1xf32>
    %474 = arith.divf %472, %473 : vector<16x1xf32>
    %475 = vector.broadcast %469 : vector<16x1xf32> to vector<16x32xf32>
    %476 = arith.subf %465, %475 : vector<16x32xf32>
    %477 = arith.mulf %469, %469 : vector<16x1xf32>
    %478 = arith.subf %474, %477 : vector<16x1xf32>
    %cst_151 = arith.constant 9.99999974E-6 : f32
    %479 = vector.broadcast %cst_151 : f32 to vector<16x1xf32>
    %480 = arith.addf %478, %479 : vector<16x1xf32>
    %481 = math.rsqrt %480 : vector<16x1xf32>
    %482 = vector.broadcast %481 : vector<16x1xf32> to vector<16x32xf32>
    %483 = arith.mulf %476, %482 : vector<16x32xf32>
    %484 = vector.broadcast %263 : vector<1x32xf32> to vector<16x32xf32>
    %485 = arith.mulf %483, %484 : vector<16x32xf32>
    %486 = vector.broadcast %264 : vector<1x32xf32> to vector<16x32xf32>
    %487 = arith.addf %485, %486 : vector<16x32xf32>
    %488 = vector.broadcast %4 : vector<1x32xf32> to vector<16x32xf32>
    %489 = arith.mulf %487, %488 : vector<16x32xf32>
    %cst_152 = arith.constant dense<0.000000e+00> : vector<16xf32>
    %490 = vector.multi_reduction <add>, %489, %cst_152 [1] : vector<16x32xf32> to vector<16xf32>
    %491 = vector.shape_cast %490 : vector<16xf32> to vector<16x1xf32>
    %492 = vector.broadcast %5 : vector<1x1xf32> to vector<16x1xf32>
    %493 = arith.addf %491, %492 : vector<16x1xf32>
    %494 = vector.extract_strided_slice %493 {offsets = [7, 0], sizes = [1, 1], strides = [1, 1]} : vector<16x1xf32> to vector<1x1xf32>
    %c0_153 = arith.constant 0 : index
    %c0_154 = arith.constant 0 : index
    %495 = vector.load %arg3[%c0_153, %c0_154] : memref<2x1xf32, #tpu.memory_space<vmem>>, vector<1x1xf32>
    tpu.vector_store %arg3[%c0_153, %c0_154], %494 {strides = array<i32>} : memref<2x1xf32, #tpu.memory_space<vmem>>, vector<1x1xf32>,
    %496 = vector.extract_strided_slice %493 {offsets = [15, 0], sizes = [1, 1], strides = [1, 1]} : vector<16x1xf32> to vector<1x1xf32>
    %c1 = arith.constant 1 : index
    %c0_155 = arith.constant 0 : index
    %497 = vector.load %arg3[%c1, %c0_155] : memref<2x1xf32, #tpu.memory_space<vmem>>, vector<1x1xf32>
    tpu.vector_store %arg3[%c1, %c0_155], %496 {strides = array<i32>} : memref<2x1xf32, #tpu.memory_space<vmem>>, vector<1x1xf32>,
    return
  }
}

</mosaic_0001>

<llo_original>
// kernel: forward.1
$region0: #{forward.1}
  #allocation0 [shape = 'u32[]', space=smem, size = 0x4, offset = 0x4, fixed_abs, tag = 'smem constant byte address 0x4 - core index']
  #allocation1 [shape = 'u32[144,128]{1,0:T(1,128)}', space=vmem, size = 0x12000, scoped, tag = 'internal scratch']
  #allocation2 [shape = 'f32[16,32]{1,0:T(8,128)}', space=vmem, size = 0x2000, scoped, tag = 'scratch operand']
  %s0 = inlined_call_operand.vmem [shape: f32[16,1], index: 0, kind: input, shape index: {}]
  %s1 = inlined_call_operand.hbm [shape: f32[32,128], index: 1, kind: input, shape index: {}]
  %s2 = inlined_call_operand.hbm [shape: bf16[256,128], index: 2, kind: input, shape index: {}]
  %s3 = inlined_call_operand.vmem [shape: f32[2,1], index: 3, kind: output, shape index: {}]
  %s4 = sld [smem:[#allocation0]]
  $region30: #{forward.1} parent=0
    _
  %s6 = ssub.s32 1, %s4
  %s7 = scalar_select 0, %s6, %s4
  $region1: #{forward.1} parent=0
    #allocation3 [shape = 'u8[16384]{0}', space=vmem, size = 0x4000, scoped, tag = 'input window, operand 1, single buffered']
    #allocation4 [shape = 's32[1]{0}', space=sflag, size = 0x4, scoped, tag = 'scoped memory for forward.1']
    #allocation5 [shape = 'u8[65536]{0}', space=vmem, size = 0x10000, scoped, tag = 'input window, operand 2, single buffered']
    #allocation6 [shape = 's32[1]{0}', space=sflag, size = 0x4, scoped, tag = 'scoped memory for forward.1']
    %8 = vsyncpa [#allocation4], 0
    %9 = vsyncpa [#allocation6], 0
    // Predicated region
    $region2: #{forward.1} parent=1 // pred_check
      _
    $region3: #{forward.1} parent=1 // pred_check_branch
      %11 = sbr.rel (0) target = $region5
    $region4: #{forward.1} parent=1 // pred_region
      _
    $region5: #{forward.1} parent=1 // pred_fallthru
      _
    // Predicated region
    $region6: #{forward.1} parent=1 // pred_check
      _
    $region7: #{forward.1} parent=1 // pred_check_branch
      %13 = sbr.rel (0) target = $region9
    $region8: #{forward.1} parent=1 // pred_region
      %s15 = ssub.s32 512, 512
      %16 = vsyncadd [#allocation4], %s15
      %s17 = sshll.u32 [#allocation3], 4
      %s18 = int_to_ptr.vmem [resolvable:$true] %s17
      %23 = dma.hbm_to_vmem [thread:$0]  %s1, 512, %s18, [#allocation4], 128, 128, 8
    $region9: #{forward.1} parent=1 // pred_fallthru
      _
    // Predicated region
    $region10: #{forward.1} parent=1 // pred_check
      _
    $region11: #{forward.1} parent=1 // pred_check_branch
      %25 = sbr.rel (0) target = $region13
    $region12: #{forward.1} parent=1 // pred_region
      %s27 = ssub.s32 2048, 2048
      %28 = vsyncadd [#allocation6], %s27
      %s29 = sshll.u32 [#allocation5], 4
      %s30 = int_to_ptr.vmem [resolvable:$true] %s29
      %35 = dma.hbm_to_vmem [thread:$0]  %s2, 2048, %s30, [#allocation6], 64, 64, 4
    $region13: #{forward.1} parent=1 // pred_fallthru
      _
    // Predicated region
    $region14: #{forward.1} parent=1 // pred_check
      _
    $region15: #{forward.1} parent=1 // pred_check_branch
      %37 = sbr.rel (0) target = $region17
    $region16: #{forward.1} parent=1 // pred_region
      %38 = dma.done [#allocation4], 512
    $region17: #{forward.1} parent=1 // pred_fallthru
      _
    // Predicated region
    $region18: #{forward.1} parent=1 // pred_check
      _
    $region19: #{forward.1} parent=1 // pred_check_branch
      %40 = sbr.rel (0) target = $region21
    $region20: #{forward.1} parent=1 // pred_region
      %41 = dma.done [#allocation6], 2048
    $region21: #{forward.1} parent=1 // pred_fallthru
      _
    %v43 = vld [vmem:[%s0] sm:$0xff]
    %v44 = vld [vmem:[%s0 + $0x8] sm:$0xff]
    %v45 = vld [vmem:[#allocation3] sm:$0xff]
    %v46 = vld [vmem:[#allocation3 + $0x8] sm:$0xff]
    %v47 = vld [vmem:[#allocation3 + $0x10] sm:$0xff]
    %v48 = vld [vmem:[#allocation3 + $0x18] sm:$0xff]
    %50 = vset.pattern.permute.xlu0 0
    %51 = vperm.xlu0 %50, %v43
    %v52 = vpop.permute.xlu0 %51
    %55 = vset.pattern.permute.xlu0 0
    %56 = vperm.xlu0 %55, %v44
    %v57 = vpop.permute.xlu0 %56
    %v59 = vlaneseq
    %v60 = vshrl.u32 %v59, 7
    %v61 = vsub.s32 0, %v60
    %v62 = vrot.slane %v47, %v61
    %v63 = vmul.f32 %v52, %v62
    %v64 = vmul.f32 %v57, %v62
    %v65 = vadd.f32 %v63, %v45
    %v66 = vadd.f32 %v64, %v46
    %v67 = vld [vmem:[#allocation5] sm:$0xf]
    %v68 = vld [vmem:[#allocation5 + $0x4] sm:$0xf]
    %v69 = vld [vmem:[#allocation5 + $0x8] sm:$0xf]
    %v70 = vld [vmem:[#allocation5 + $0xc] sm:$0xf]
    %v71 = vld [vmem:[#allocation5 + $0x10] sm:$0xf]
    %v72 = vld [vmem:[#allocation5 + $0x14] sm:$0xf]
    %v73 = vld [vmem:[#allocation5 + $0x18] sm:$0xf]
    %v74 = vld [vmem:[#allocation5 + $0x1c] sm:$0xf]
    %v75 = vld [vmem:[#allocation5 + $0x20] sm:$0xf]
    %v76 = vld [vmem:[#allocation5 + $0x24] sm:$0xf]
    %v77 = vld [vmem:[#allocation5 + $0x28] sm:$0xf]
    %v78 = vld [vmem:[#allocation5 + $0x2c] sm:$0xf]
    %v79 = vld [vmem:[#allocation5 + $0x30] sm:$0xf]
    %v80 = vld [vmem:[#allocation5 + $0x34] sm:$0xf]
    %v81 = vld [vmem:[#allocation5 + $0x38] sm:$0xf]
    %v82 = vld [vmem:[#allocation5 + $0x3c] sm:$0xf]
    %v83 = vpack.c.bf16 %v66, %v65
    %v84 = vlaneseq
    %v85 = vshrl.u32 %v84, 7
    %v86 = vsub.s32 3, %v85
    %v87 = vrot.slane %v47, %v86
    %v92 = vunpack.c.l.b16 %v67
    %v93 = vunpack.c.l.b16 %v68
    %v94 = vunpack.c.l.b16 %v69
    %v95 = vunpack.c.l.b16 %v70
    %v96 = vpack.c.b16 %v93, %v92
    %v97 = vpack.c.b16 %v95, %v94
    %vm100 = vcmask 261120
    %v102 = vsel %vm100, %v83, 0
    %104 = vmatprep.subr.bf16.mxu0 0
    %105 = vmatpush1.bf16.msra.mxu0 0
    %106 = vmatprep.subr.bf16.mxu0 0
    %107 = vmatpush1.bf16.msra.mxu0 0
    %108 = vmatprep.subr.bf16.mxu0 0
    %109 = vmatpush1.bf16.msra.mxu0 0
    %110 = vmatprep.subr.bf16.mxu0 0
    %111 = vmatpush1.bf16.msra.mxu0 0
    %112 = vmatprep.subr.bf16.mxu0 0
    %113 = vmatpush1.bf16.msra.mxu0 0
    %114 = vmatprep.subr.bf16.mxu0 0
    %115 = vmatpush1.bf16.msra.mxu0 0
    %116 = vmatprep.subr.bf16.mxu0 0
    %117 = vmatpush1.bf16.msra.mxu0 %v97
    %118 = vmatprep.subr.bf16.mxu0 0
    %119 = vmatpush1.bf16.msra.mxu0 %v96
    %120 = vmatprep.subr.bf16.mxu0 0
    %121 = vmatpush2.bf16.msra.mxu0 0
    %122 = vmatprep.subr.bf16.mxu0 0
    %123 = vmatpush2.bf16.msra.mxu0 0
    %124 = vmatprep.subr.bf16.mxu0 0
    %125 = vmatpush2.bf16.msra.mxu0 0
    %126 = vmatprep.subr.bf16.mxu0 0
    %127 = vmatpush2.bf16.msra.mxu0 0
    %128 = vmatprep.subr.bf16.mxu0 0
    %129 = vmatpush2.bf16.msra.mxu0 0
    %130 = vmatprep.subr.bf16.mxu0 0
    %131 = vmatpush2.bf16.msra.mxu0 0
    %132 = vmatprep.subr.bf16.mxu0 0
    %133 = vmatpush2.bf16.msra.mxu0 0
    %134 = vmatprep.subr.bf16.mxu0 0
    %135 = vmatpush2.bf16.msra.mxu0 0
    %136 = vmatprep.mubr.bf16.mxu0 0
    %137 = vmatmul.mubr.bf16.gmra.mxu0 %v102
    %v138 = vpop.f32.mrf.mxu0
    %v139 = vadd.f32 %v87, %v138
    %v140 = vpop.f32.mrf.mxu0
    %v141 = vpop.f32.mrf.mxu0
    %v142 = vadd.f32 %v87, %v141
    %v143 = vpop.f32.mrf.mxu0
    %144 = vdwg.mxu0
    %v145 = vpack.c.bf16 %v142, %v139
    %147 = vrot.lane.b32.xlu0 %v145, 96
    %v148 = vpop.permute.xlu0 %147
    %vm149 = vcmask 64512
    %v151 = vsel %vm149, %v145, 0
    %v154 = vsel %vm149, %v148, 0
    %156 = vmatprep.subr.bf16.mxu0 0
    %157 = vmatpush1.bf16.xpose.msra.mxu0 0
    %158 = vmatprep.subr.bf16.mxu0 0
    %159 = vmatpush1.bf16.xpose.msra.mxu0 0
    %160 = vmatprep.subr.bf16.mxu0 0
    %161 = vmatpush1.bf16.xpose.msra.mxu0 0
    %162 = vmatprep.subr.bf16.mxu0 0
    %163 = vmatpush1.bf16.xpose.msra.mxu0 0
    %164 = vmatprep.subr.bf16.mxu0 0
    %165 = vmatpush1.bf16.xpose.msra.mxu0 0
    %166 = vmatprep.subr.bf16.mxu0 0
    %167 = vmatpush1.bf16.xpose.msra.mxu0 0
    %168 = vmatprep.subr.bf16.mxu0 0
    %169 = vmatpush1.bf16.xpose.msra.mxu0 0
    %170 = vmatprep.subr.bf16.mxu0 0
    %171 = vmatpush1.bf16.xpose.msra.mxu0 %v154
    %172 = vmatprep.subr.bf16.mxu0 0
    %173 = vmatpush2.bf16.xpose.msra.mxu0 0
    %174 = vmatprep.subr.bf16.mxu0 0
    %175 = vmatpush2.bf16.xpose.msra.mxu0 0
    %176 = vmatprep.subr.bf16.mxu0 0
    %177 = vmatpush2.bf16.xpose.msra.mxu0 0
    %178 = vmatprep.subr.bf16.mxu0 0
    %179 = vmatpush2.bf16.xpose.msra.mxu0 0
    %180 = vmatprep.subr.bf16.mxu0 0
    %181 = vmatpush2.bf16.xpose.msra.mxu0 0
    %182 = vmatprep.subr.bf16.mxu0 0
    %183 = vmatpush2.bf16.xpose.msra.mxu0 0
    %184 = vmatprep.subr.bf16.mxu0 0
    %185 = vmatpush2.bf16.xpose.msra.mxu0 0
    %186 = vmatprep.subr.bf16.mxu0 0
    %187 = vmatpush2.bf16.xpose.msra.mxu0 0
    %188 = vmatprep.mubr.bf16.mxu0 0
    %189 = vmatmul.mubr.bf16.gmra.mxu0 %v151
    %v190 = vpop.f32.mrf.mxu0
    %v191 = vadd.f32 0.0, %v190
    %v192 = vpop.f32.mrf.mxu0
    %v193 = vpop.f32.mrf.mxu0
    %v194 = vpop.f32.mrf.mxu0
    %195 = vdwg.mxu0
    %v196 = vmul.f32 %v191, 0.35355338
    %v197 = vsel %vm149, %v196, -inf
    %198 = vmax.xlane.f32.xlu0 %v197
    %v199 = vpop.xlane.xlu0 %198
    %v200 = vsub.f32 %v196, %v199
    %v201 = vmul.f32 %v200, 1.442695
    %v202 = vpow.pop %v201
    %v203 = vsel %vm149, %v202, 0.0
    %204 = vadd.xlane.f32.xlu0 %v203
    %v205 = vpop.xlane.xlu0 %204
    %v206 = vrcp.pop %v205
    %v207 = vmul.f32 %v202, %v206
    %v208 = vpack.c.bf16 %v207, %v207
    %209 = vrot.lane.b32.xlu0 %v145, 64
    %v210 = vpop.permute.xlu0 %209
    %v212 = vsel %vm149, %v208, 0
    %vm214 = vcmask 1043456
    %v216 = vsel %vm214, %v210, 0
    %218 = vmatprep.subr.bf16.mxu0 0
    %219 = vmatpush1.bf16.msra.mxu0 0
    %220 = vmatprep.subr.bf16.mxu0 0
    %221 = vmatpush1.bf16.msra.mxu0 0
    %222 = vmatprep.subr.bf16.mxu0 0
    %223 = vmatpush1.bf16.msra.mxu0 0
    %224 = vmatprep.subr.bf16.mxu0 0
    %225 = vmatpush1.bf16.msra.mxu0 0
    %226 = vmatprep.subr.bf16.mxu0 0
    %227 = vmatpush1.bf16.msra.mxu0 0
    %228 = vmatprep.subr.bf16.mxu0 0
    %229 = vmatpush1.bf16.msra.mxu0 0
    %230 = vmatprep.subr.bf16.mxu0 0
    %231 = vmatpush1.bf16.msra.mxu0 0
    %232 = vmatprep.subr.bf16.mxu0 0
    %233 = vmatpush1.bf16.msra.mxu0 %v216
    %234 = vmatprep.subr.bf16.mxu0 0
    %235 = vmatpush2.bf16.msra.mxu0 0
    %236 = vmatprep.subr.bf16.mxu0 0
    %237 = vmatpush2.bf16.msra.mxu0 0
    %238 = vmatprep.subr.bf16.mxu0 0
    %239 = vmatpush2.bf16.msra.mxu0 0
    %240 = vmatprep.subr.bf16.mxu0 0
    %241 = vmatpush2.bf16.msra.mxu0 0
    %242 = vmatprep.subr.bf16.mxu0 0
    %243 = vmatpush2.bf16.msra.mxu0 0
    %244 = vmatprep.subr.bf16.mxu0 0
    %245 = vmatpush2.bf16.msra.mxu0 0
    %246 = vmatprep.subr.bf16.mxu0 0
    %247 = vmatpush2.bf16.msra.mxu0 0
    %248 = vmatprep.subr.bf16.mxu0 0
    %249 = vmatpush2.bf16.msra.mxu0 0
    %250 = vmatprep.mubr.bf16.mxu0 0
    %251 = vmatmul.mubr.bf16.gmra.mxu0 %v212
    %v252 = vpop.f32.mrf.mxu0
    %v253 = vadd.f32 0.0, %v252
    %v254 = vpop.f32.mrf.mxu0
    %v255 = vpop.f32.mrf.mxu0
    %v256 = vpop.f32.mrf.mxu0
    %257 = vdwg.mxu0
    %258 = vst.msk [vmem:[#allocation2] sm:$0xff] %vm149, %v253
    %259 = vrot.lane.b32.xlu0 %v145, 120
    %v260 = vpop.permute.xlu0 %259
    %261 = vrot.lane.b32.xlu0 %v145, 88
    %v262 = vpop.permute.xlu0 %261
    %v264 = vsel %vm149, %v260, 0
    %v267 = vsel %vm149, %v262, 0
    %269 = vmatprep.subr.bf16.mxu0 0
    %270 = vmatpush1.bf16.xpose.msra.mxu0 0
    %271 = vmatprep.subr.bf16.mxu0 0
    %272 = vmatpush1.bf16.xpose.msra.mxu0 0
    %273 = vmatprep.subr.bf16.mxu0 0
    %274 = vmatpush1.bf16.xpose.msra.mxu0 0
    %275 = vmatprep.subr.bf16.mxu0 0
    %276 = vmatpush1.bf16.xpose.msra.mxu0 0
    %277 = vmatprep.subr.bf16.mxu0 0
    %278 = vmatpush1.bf16.xpose.msra.mxu0 0
    %279 = vmatprep.subr.bf16.mxu0 0
    %280 = vmatpush1.bf16.xpose.msra.mxu0 0
    %281 = vmatprep.subr.bf16.mxu0 0
    %282 = vmatpush1.bf16.xpose.msra.mxu0 0
    %283 = vmatprep.subr.bf16.mxu0 0
    %284 = vmatpush1.bf16.xpose.msra.mxu0 %v267
    %285 = vmatprep.subr.bf16.mxu0 0
    %286 = vmatpush2.bf16.xpose.msra.mxu0 0
    %287 = vmatprep.subr.bf16.mxu0 0
    %288 = vmatpush2.bf16.xpose.msra.mxu0 0
    %289 = vmatprep.subr.bf16.mxu0 0
    %290 = vmatpush2.bf16.xpose.msra.mxu0 0
    %291 = vmatprep.subr.bf16.mxu0 0
    %292 = vmatpush2.bf16.xpose.msra.mxu0 0
    %293 = vmatprep.subr.bf16.mxu0 0
    %294 = vmatpush2.bf16.xpose.msra.mxu0 0
    %295 = vmatprep.subr.bf16.mxu0 0
    %296 = vmatpush2.bf16.xpose.msra.mxu0 0
    %297 = vmatprep.subr.bf16.mxu0 0
    %298 = vmatpush2.bf16.xpose.msra.mxu0 0
    %299 = vmatprep.subr.bf16.mxu0 0
    %300 = vmatpush2.bf16.xpose.msra.mxu0 0
    %301 = vmatprep.mubr.bf16.mxu0 0
    %302 = vmatmul.mubr.bf16.gmra.mxu0 %v264
    %v303 = vpop.f32.mrf.mxu0
    %v304 = vadd.f32 0.0, %v303
    %v305 = vpop.f32.mrf.mxu0
    %v306 = vpop.f32.mrf.mxu0
    %v307 = vpop.f32.mrf.mxu0
    %308 = vdwg.mxu0
    %v309 = vmul.f32 %v304, 0.35355338
    %v310 = vsel %vm149, %v309, -inf
    %311 = vmax.xlane.f32.xlu0 %v310
    %v312 = vpop.xlane.xlu0 %311
    %v313 = vsub.f32 %v309, %v312
    %v314 = vmul.f32 %v313, 1.442695
    %v315 = vpow.pop %v314
    %v316 = vsel %vm149, %v315, 0.0
    %317 = vadd.xlane.f32.xlu0 %v316
    %v318 = vpop.xlane.xlu0 %317
    %v319 = vrcp.pop %v318
    %v320 = vmul.f32 %v315, %v319
    %v321 = vpack.c.bf16 %v320, %v320
    %322 = vrot.lane.b32.xlu0 %v145, 56
    %v323 = vpop.permute.xlu0 %322
    %v325 = vsel %vm149, %v321, 0
    %v328 = vsel %vm214, %v323, 0
    %330 = vmatprep.subr.bf16.mxu0 0
    %331 = vmatpush1.bf16.msra.mxu0 0
    %332 = vmatprep.subr.bf16.mxu0 0
    %333 = vmatpush1.bf16.msra.mxu0 0
    %334 = vmatprep.subr.bf16.mxu0 0
    %335 = vmatpush1.bf16.msra.mxu0 0
    %336 = vmatprep.subr.bf16.mxu0 0
    %337 = vmatpush1.bf16.msra.mxu0 0
    %338 = vmatprep.subr.bf16.mxu0 0
    %339 = vmatpush1.bf16.msra.mxu0 0
    %340 = vmatprep.subr.bf16.mxu0 0
    %341 = vmatpush1.bf16.msra.mxu0 0
    %342 = vmatprep.subr.bf16.mxu0 0
    %343 = vmatpush1.bf16.msra.mxu0 0
    %344 = vmatprep.subr.bf16.mxu0 0
    %345 = vmatpush1.bf16.msra.mxu0 %v328
    %346 = vmatprep.subr.bf16.mxu0 0
    %347 = vmatpush2.bf16.msra.mxu0 0
    %348 = vmatprep.subr.bf16.mxu0 0
    %349 = vmatpush2.bf16.msra.mxu0 0
    %350 = vmatprep.subr.bf16.mxu0 0
    %351 = vmatpush2.bf16.msra.mxu0 0
    %352 = vmatprep.subr.bf16.mxu0 0
    %353 = vmatpush2.bf16.msra.mxu0 0
    %354 = vmatprep.subr.bf16.mxu0 0
    %355 = vmatpush2.bf16.msra.mxu0 0
    %356 = vmatprep.subr.bf16.mxu0 0
    %357 = vmatpush2.bf16.msra.mxu0 0
    %358 = vmatprep.subr.bf16.mxu0 0
    %359 = vmatpush2.bf16.msra.mxu0 0
    %360 = vmatprep.subr.bf16.mxu0 0
    %361 = vmatpush2.bf16.msra.mxu0 0
    %362 = vmatprep.mubr.bf16.mxu0 0
    %363 = vmatmul.mubr.bf16.gmra.mxu0 %v325
    %v364 = vpop.f32.mrf.mxu0
    %v365 = vadd.f32 0.0, %v364
    %v366 = vpop.f32.mrf.mxu0
    %v367 = vpop.f32.mrf.mxu0
    %v368 = vpop.f32.mrf.mxu0
    %369 = vdwg.mxu0
    %371 = vrot.lane.b32.xlu0 %v365, 8
    %v372 = vpop.permute.xlu0 %371
    %vm374 = vcmask 130112
    %375 = vst.msk [vmem:[#allocation2] sm:$0xff] %vm374, %v372
    %376 = vrot.lane.b32.xlu0 %v145, 112
    %v377 = vpop.permute.xlu0 %376
    %378 = vrot.lane.b32.xlu0 %v145, 80
    %v379 = vpop.permute.xlu0 %378
    %v381 = vsel %vm149, %v377, 0
    %v384 = vsel %vm149, %v379, 0
    %386 = vmatprep.subr.bf16.mxu0 0
    %387 = vmatpush1.bf16.xpose.msra.mxu0 0
    %388 = vmatprep.subr.bf16.mxu0 0
    %389 = vmatpush1.bf16.xpose.msra.mxu0 0
    %390 = vmatprep.subr.bf16.mxu0 0
    %391 = vmatpush1.bf16.xpose.msra.mxu0 0
    %392 = vmatprep.subr.bf16.mxu0 0
    %393 = vmatpush1.bf16.xpose.msra.mxu0 0
    %394 = vmatprep.subr.bf16.mxu0 0
    %395 = vmatpush1.bf16.xpose.msra.mxu0 0
    %396 = vmatprep.subr.bf16.mxu0 0
    %397 = vmatpush1.bf16.xpose.msra.mxu0 0
    %398 = vmatprep.subr.bf16.mxu0 0
    %399 = vmatpush1.bf16.xpose.msra.mxu0 0
    %400 = vmatprep.subr.bf16.mxu0 0
    %401 = vmatpush1.bf16.xpose.msra.mxu0 %v384
    %402 = vmatprep.subr.bf16.mxu0 0
    %403 = vmatpush2.bf16.xpose.msra.mxu0 0
    %404 = vmatprep.subr.bf16.mxu0 0
    %405 = vmatpush2.bf16.xpose.msra.mxu0 0
    %406 = vmatprep.subr.bf16.mxu0 0
    %407 = vmatpush2.bf16.xpose.msra.mxu0 0
    %408 = vmatprep.subr.bf16.mxu0 0
    %409 = vmatpush2.bf16.xpose.msra.mxu0 0
    %410 = vmatprep.subr.bf16.mxu0 0
    %411 = vmatpush2.bf16.xpose.msra.mxu0 0
    %412 = vmatprep.subr.bf16.mxu0 0
    %413 = vmatpush2.bf16.xpose.msra.mxu0 0
    %414 = vmatprep.subr.bf16.mxu0 0
    %415 = vmatpush2.bf16.xpose.msra.mxu0 0
    %416 = vmatprep.subr.bf16.mxu0 0
    %417 = vmatpush2.bf16.xpose.msra.mxu0 0
    %418 = vmatprep.mubr.bf16.mxu0 0
    %419 = vmatmul.mubr.bf16.gmra.mxu0 %v381
    %v420 = vpop.f32.mrf.mxu0
    %v421 = vadd.f32 0.0, %v420
    %v422 = vpop.f32.mrf.mxu0
    %v423 = vpop.f32.mrf.mxu0
    %v424 = vpop.f32.mrf.mxu0
    %425 = vdwg.mxu0
    %v426 = vmul.f32 %v421, 0.35355338
    %v427 = vsel %vm149, %v426, -inf
    %428 = vmax.xlane.f32.xlu0 %v427
    %v429 = vpop.xlane.xlu0 %428
    %v430 = vsub.f32 %v426, %v429
    %v431 = vmul.f32 %v430, 1.442695
    %v432 = vpow.pop %v431
    %v433 = vsel %vm149, %v432, 0.0
    %434 = vadd.xlane.f32.xlu0 %v433
    %v435 = vpop.xlane.xlu0 %434
    %v436 = vrcp.pop %v435
    %v437 = vmul.f32 %v432, %v436
    %v438 = vpack.c.bf16 %v437, %v437
    %439 = vrot.lane.b32.xlu0 %v145, 48
    %v440 = vpop.permute.xlu0 %439
    %v442 = vsel %vm149, %v438, 0
    %v445 = vsel %vm214, %v440, 0
    %447 = vmatprep.subr.bf16.mxu0 0
    %448 = vmatpush1.bf16.msra.mxu0 0
    %449 = vmatprep.subr.bf16.mxu0 0
    %450 = vmatpush1.bf16.msra.mxu0 0
    %451 = vmatprep.subr.bf16.mxu0 0
    %452 = vmatpush1.bf16.msra.mxu0 0
    %453 = vmatprep.subr.bf16.mxu0 0
    %454 = vmatpush1.bf16.msra.mxu0 0
    %455 = vmatprep.subr.bf16.mxu0 0
    %456 = vmatpush1.bf16.msra.mxu0 0
    %457 = vmatprep.subr.bf16.mxu0 0
    %458 = vmatpush1.bf16.msra.mxu0 0
    %459 = vmatprep.subr.bf16.mxu0 0
    %460 = vmatpush1.bf16.msra.mxu0 0
    %461 = vmatprep.subr.bf16.mxu0 0
    %462 = vmatpush1.bf16.msra.mxu0 %v445
    %463 = vmatprep.subr.bf16.mxu0 0
    %464 = vmatpush2.bf16.msra.mxu0 0
    %465 = vmatprep.subr.bf16.mxu0 0
    %466 = vmatpush2.bf16.msra.mxu0 0
    %467 = vmatprep.subr.bf16.mxu0 0
    %468 = vmatpush2.bf16.msra.mxu0 0
    %469 = vmatprep.subr.bf16.mxu0 0
    %470 = vmatpush2.bf16.msra.mxu0 0
    %471 = vmatprep.subr.bf16.mxu0 0
    %472 = vmatpush2.bf16.msra.mxu0 0
    %473 = vmatprep.subr.bf16.mxu0 0
    %474 = vmatpush2.bf16.msra.mxu0 0
    %475 = vmatprep.subr.bf16.mxu0 0
    %476 = vmatpush2.bf16.msra.mxu0 0
    %477 = vmatprep.subr.bf16.mxu0 0
    %478 = vmatpush2.bf16.msra.mxu0 0
    %479 = vmatprep.mubr.bf16.mxu0 0
    %480 = vmatmul.mubr.bf16.gmra.mxu0 %v442
    %v481 = vpop.f32.mrf.mxu0
    %v482 = vadd.f32 0.0, %v481
    %v483 = vpop.f32.mrf.mxu0
    %v484 = vpop.f32.mrf.mxu0
    %v485 = vpop.f32.mrf.mxu0
    %486 = vdwg.mxu0
    %488 = vrot.lane.b32.xlu0 %v482, 16
    %v489 = vpop.permute.xlu0 %488
    %vm491 = vcmask 195712
    %492 = vst.msk [vmem:[#allocation2] sm:$0xff] %vm491, %v489
    %493 = vrot.lane.b32.xlu0 %v145, 104
    %v494 = vpop.permute.xlu0 %493
    %495 = vrot.lane.b32.xlu0 %v145, 72
    %v496 = vpop.permute.xlu0 %495
    %v498 = vsel %vm149, %v494, 0
    %v501 = vsel %vm149, %v496, 0
    %503 = vmatprep.subr.bf16.mxu0 0
    %504 = vmatpush1.bf16.xpose.msra.mxu0 0
    %505 = vmatprep.subr.bf16.mxu0 0
    %506 = vmatpush1.bf16.xpose.msra.mxu0 0
    %507 = vmatprep.subr.bf16.mxu0 0
    %508 = vmatpush1.bf16.xpose.msra.mxu0 0
    %509 = vmatprep.subr.bf16.mxu0 0
    %510 = vmatpush1.bf16.xpose.msra.mxu0 0
    %511 = vmatprep.subr.bf16.mxu0 0
    %512 = vmatpush1.bf16.xpose.msra.mxu0 0
    %513 = vmatprep.subr.bf16.mxu0 0
    %514 = vmatpush1.bf16.xpose.msra.mxu0 0
    %515 = vmatprep.subr.bf16.mxu0 0
    %516 = vmatpush1.bf16.xpose.msra.mxu0 0
    %517 = vmatprep.subr.bf16.mxu0 0
    %518 = vmatpush1.bf16.xpose.msra.mxu0 %v501
    %519 = vmatprep.subr.bf16.mxu0 0
    %520 = vmatpush2.bf16.xpose.msra.mxu0 0
    %521 = vmatprep.subr.bf16.mxu0 0
    %522 = vmatpush2.bf16.xpose.msra.mxu0 0
    %523 = vmatprep.subr.bf16.mxu0 0
    %524 = vmatpush2.bf16.xpose.msra.mxu0 0
    %525 = vmatprep.subr.bf16.mxu0 0
    %526 = vmatpush2.bf16.xpose.msra.mxu0 0
    %527 = vmatprep.subr.bf16.mxu0 0
    %528 = vmatpush2.bf16.xpose.msra.mxu0 0
    %529 = vmatprep.subr.bf16.mxu0 0
    %530 = vmatpush2.bf16.xpose.msra.mxu0 0
    %531 = vmatprep.subr.bf16.mxu0 0
    %532 = vmatpush2.bf16.xpose.msra.mxu0 0
    %533 = vmatprep.subr.bf16.mxu0 0
    %534 = vmatpush2.bf16.xpose.msra.mxu0 0
    %535 = vmatprep.mubr.bf16.mxu0 0
    %536 = vmatmul.mubr.bf16.gmra.mxu0 %v498
    %v537 = vpop.f32.mrf.mxu0
    %v538 = vadd.f32 0.0, %v537
    %v539 = vpop.f32.mrf.mxu0
    %v540 = vpop.f32.mrf.mxu0
    %v541 = vpop.f32.mrf.mxu0
    %542 = vdwg.mxu0
    %v543 = vmul.f32 %v538, 0.35355338
    %v544 = vsel %vm149, %v543, -inf
    %545 = vmax.xlane.f32.xlu0 %v544
    %v546 = vpop.xlane.xlu0 %545
    %v547 = vsub.f32 %v543, %v546
    %v548 = vmul.f32 %v547, 1.442695
    %v549 = vpow.pop %v548
    %v550 = vsel %vm149, %v549, 0.0
    %551 = vadd.xlane.f32.xlu0 %v550
    %v552 = vpop.xlane.xlu0 %551
    %v553 = vrcp.pop %v552
    %v554 = vmul.f32 %v549, %v553
    %v555 = vpack.c.bf16 %v554, %v554
    %556 = vrot.lane.b32.xlu0 %v145, 40
    %v557 = vpop.permute.xlu0 %556
    %v559 = vsel %vm149, %v555, 0
    %v562 = vsel %vm214, %v557, 0
    %564 = vmatprep.subr.bf16.mxu0 0
    %565 = vmatpush1.bf16.msra.mxu0 0
    %566 = vmatprep.subr.bf16.mxu0 0
    %567 = vmatpush1.bf16.msra.mxu0 0
    %568 = vmatprep.subr.bf16.mxu0 0
    %569 = vmatpush1.bf16.msra.mxu0 0
    %570 = vmatprep.subr.bf16.mxu0 0
    %571 = vmatpush1.bf16.msra.mxu0 0
    %572 = vmatprep.subr.bf16.mxu0 0
    %573 = vmatpush1.bf16.msra.mxu0 0
    %574 = vmatprep.subr.bf16.mxu0 0
    %575 = vmatpush1.bf16.msra.mxu0 0
    %576 = vmatprep.subr.bf16.mxu0 0
    %577 = vmatpush1.bf16.msra.mxu0 0
    %578 = vmatprep.subr.bf16.mxu0 0
    %579 = vmatpush1.bf16.msra.mxu0 %v562
    %580 = vmatprep.subr.bf16.mxu0 0
    %581 = vmatpush2.bf16.msra.mxu0 0
    %582 = vmatprep.subr.bf16.mxu0 0
    %583 = vmatpush2.bf16.msra.mxu0 0
    %584 = vmatprep.subr.bf16.mxu0 0
    %585 = vmatpush2.bf16.msra.mxu0 0
    %586 = vmatprep.subr.bf16.mxu0 0
    %587 = vmatpush2.bf16.msra.mxu0 0
    %588 = vmatprep.subr.bf16.mxu0 0
    %589 = vmatpush2.bf16.msra.mxu0 0
    %590 = vmatprep.subr.bf16.mxu0 0
    %591 = vmatpush2.bf16.msra.mxu0 0
    %592 = vmatprep.subr.bf16.mxu0 0
    %593 = vmatpush2.bf16.msra.mxu0 0
    %594 = vmatprep.subr.bf16.mxu0 0
    %595 = vmatpush2.bf16.msra.mxu0 0
    %596 = vmatprep.mubr.bf16.mxu0 0
    %597 = vmatmul.mubr.bf16.gmra.mxu0 %v559
    %v598 = vpop.f32.mrf.mxu0
    %v599 = vadd.f32 0.0, %v598
    %v600 = vpop.f32.mrf.mxu0
    %v601 = vpop.f32.mrf.mxu0
    %v602 = vpop.f32.mrf.mxu0
    %603 = vdwg.mxu0
    %605 = vrot.lane.b32.xlu0 %v599, 24
    %v606 = vpop.permute.xlu0 %605
    %vm608 = vcmask 261312
    %609 = vst.msk [vmem:[#allocation2] sm:$0xff] %vm608, %v606
    %v610 = vrot.slane %v145, 4
    %611 = vrot.lane.b32.xlu0 %v610, 96
    %v612 = vpop.permute.xlu0 %611
    %v614 = vsel %vm149, %v610, 0
    %v617 = vsel %vm149, %v612, 0
    %619 = vmatprep.subr.bf16.mxu0 0
    %620 = vmatpush1.bf16.xpose.msra.mxu0 0
    %621 = vmatprep.subr.bf16.mxu0 0
    %622 = vmatpush1.bf16.xpose.msra.mxu0 0
    %623 = vmatprep.subr.bf16.mxu0 0
    %624 = vmatpush1.bf16.xpose.msra.mxu0 0
    %625 = vmatprep.subr.bf16.mxu0 0
    %626 = vmatpush1.bf16.xpose.msra.mxu0 0
    %627 = vmatprep.subr.bf16.mxu0 0
    %628 = vmatpush1.bf16.xpose.msra.mxu0 0
    %629 = vmatprep.subr.bf16.mxu0 0
    %630 = vmatpush1.bf16.xpose.msra.mxu0 0
    %631 = vmatprep.subr.bf16.mxu0 0
    %632 = vmatpush1.bf16.xpose.msra.mxu0 0
    %633 = vmatprep.subr.bf16.mxu0 0
    %634 = vmatpush1.bf16.xpose.msra.mxu0 %v617
    %635 = vmatprep.subr.bf16.mxu0 0
    %636 = vmatpush2.bf16.xpose.msra.mxu0 0
    %637 = vmatprep.subr.bf16.mxu0 0
    %638 = vmatpush2.bf16.xpose.msra.mxu0 0
    %639 = vmatprep.subr.bf16.mxu0 0
    %640 = vmatpush2.bf16.xpose.msra.mxu0 0
    %641 = vmatprep.subr.bf16.mxu0 0
    %642 = vmatpush2.bf16.xpose.msra.mxu0 0
    %643 = vmatprep.subr.bf16.mxu0 0
    %644 = vmatpush2.bf16.xpose.msra.mxu0 0
    %645 = vmatprep.subr.bf16.mxu0 0
    %646 = vmatpush2.bf16.xpose.msra.mxu0 0
    %647 = vmatprep.subr.bf16.mxu0 0
    %648 = vmatpush2.bf16.xpose.msra.mxu0 0
    %649 = vmatprep.subr.bf16.mxu0 0
    %650 = vmatpush2.bf16.xpose.msra.mxu0 0
    %651 = vmatprep.mubr.bf16.mxu0 0
    %652 = vmatmul.mubr.bf16.gmra.mxu0 %v614
    %v653 = vpop.f32.mrf.mxu0
    %v654 = vadd.f32 0.0, %v653
    %v655 = vpop.f32.mrf.mxu0
    %v656 = vpop.f32.mrf.mxu0
    %v657 = vpop.f32.mrf.mxu0
    %658 = vdwg.mxu0
    %v659 = vmul.f32 %v654, 0.35355338
    %v660 = vsel %vm149, %v659, -inf
    %661 = vmax.xlane.f32.xlu0 %v660
    %v662 = vpop.xlane.xlu0 %661
    %v663 = vsub.f32 %v659, %v662
    %v664 = vmul.f32 %v663, 1.442695
    %v665 = vpow.pop %v664
    %v666 = vsel %vm149, %v665, 0.0
    %667 = vadd.xlane.f32.xlu0 %v666
    %v668 = vpop.xlane.xlu0 %667
    %v669 = vrcp.pop %v668
    %v670 = vmul.f32 %v665, %v669
    %v671 = vpack.c.bf16 %v670, %v670
    %672 = vrot.lane.b32.xlu0 %v610, 64
    %v673 = vpop.permute.xlu0 %672
    %v675 = vsel %vm149, %v671, 0
    %v678 = vsel %vm214, %v673, 0
    %680 = vmatprep.subr.bf16.mxu0 0
    %681 = vmatpush1.bf16.msra.mxu0 0
    %682 = vmatprep.subr.bf16.mxu0 0
    %683 = vmatpush1.bf16.msra.mxu0 0
    %684 = vmatprep.subr.bf16.mxu0 0
    %685 = vmatpush1.bf16.msra.mxu0 0
    %686 = vmatprep.subr.bf16.mxu0 0
    %687 = vmatpush1.bf16.msra.mxu0 0
    %688 = vmatprep.subr.bf16.mxu0 0
    %689 = vmatpush1.bf16.msra.mxu0 0
    %690 = vmatprep.subr.bf16.mxu0 0
    %691 = vmatpush1.bf16.msra.mxu0 0
    %692 = vmatprep.subr.bf16.mxu0 0
    %693 = vmatpush1.bf16.msra.mxu0 0
    %694 = vmatprep.subr.bf16.mxu0 0
    %695 = vmatpush1.bf16.msra.mxu0 %v678
    %696 = vmatprep.subr.bf16.mxu0 0
    %697 = vmatpush2.bf16.msra.mxu0 0
    %698 = vmatprep.subr.bf16.mxu0 0
    %699 = vmatpush2.bf16.msra.mxu0 0
    %700 = vmatprep.subr.bf16.mxu0 0
    %701 = vmatpush2.bf16.msra.mxu0 0
    %702 = vmatprep.subr.bf16.mxu0 0
    %703 = vmatpush2.bf16.msra.mxu0 0
    %704 = vmatprep.subr.bf16.mxu0 0
    %705 = vmatpush2.bf16.msra.mxu0 0
    %706 = vmatprep.subr.bf16.mxu0 0
    %707 = vmatpush2.bf16.msra.mxu0 0
    %708 = vmatprep.subr.bf16.mxu0 0
    %709 = vmatpush2.bf16.msra.mxu0 0
    %710 = vmatprep.subr.bf16.mxu0 0
    %711 = vmatpush2.bf16.msra.mxu0 0
    %712 = vmatprep.mubr.bf16.mxu0 0
    %713 = vmatmul.mubr.bf16.gmra.mxu0 %v675
    %v714 = vpop.f32.mrf.mxu0
    %v715 = vadd.f32 0.0, %v714
    %v716 = vpop.f32.mrf.mxu0
    %v717 = vpop.f32.mrf.mxu0
    %v718 = vpop.f32.mrf.mxu0
    %719 = vdwg.mxu0
    %720 = vst.msk [vmem:[#allocation2 + $0x8] sm:$0xff] %vm149, %v715
    %721 = vrot.lane.b32.xlu0 %v610, 120
    %v722 = vpop.permute.xlu0 %721
    %723 = vrot.lane.b32.xlu0 %v610, 88
    %v724 = vpop.permute.xlu0 %723
    %v726 = vsel %vm149, %v722, 0
    %v729 = vsel %vm149, %v724, 0
    %731 = vmatprep.subr.bf16.mxu0 0
    %732 = vmatpush1.bf16.xpose.msra.mxu0 0
    %733 = vmatprep.subr.bf16.mxu0 0
    %734 = vmatpush1.bf16.xpose.msra.mxu0 0
    %735 = vmatprep.subr.bf16.mxu0 0
    %736 = vmatpush1.bf16.xpose.msra.mxu0 0
    %737 = vmatprep.subr.bf16.mxu0 0
    %738 = vmatpush1.bf16.xpose.msra.mxu0 0
    %739 = vmatprep.subr.bf16.mxu0 0
    %740 = vmatpush1.bf16.xpose.msra.mxu0 0
    %741 = vmatprep.subr.bf16.mxu0 0
    %742 = vmatpush1.bf16.xpose.msra.mxu0 0
    %743 = vmatprep.subr.bf16.mxu0 0
    %744 = vmatpush1.bf16.xpose.msra.mxu0 0
    %745 = vmatprep.subr.bf16.mxu0 0
    %746 = vmatpush1.bf16.xpose.msra.mxu0 %v729
    %747 = vmatprep.subr.bf16.mxu0 0
    %748 = vmatpush2.bf16.xpose.msra.mxu0 0
    %749 = vmatprep.subr.bf16.mxu0 0
    %750 = vmatpush2.bf16.xpose.msra.mxu0 0
    %751 = vmatprep.subr.bf16.mxu0 0
    %752 = vmatpush2.bf16.xpose.msra.mxu0 0
    %753 = vmatprep.subr.bf16.mxu0 0
    %754 = vmatpush2.bf16.xpose.msra.mxu0 0
    %755 = vmatprep.subr.bf16.mxu0 0
    %756 = vmatpush2.bf16.xpose.msra.mxu0 0
    %757 = vmatprep.subr.bf16.mxu0 0
    %758 = vmatpush2.bf16.xpose.msra.mxu0 0
    %759 = vmatprep.subr.bf16.mxu0 0
    %760 = vmatpush2.bf16.xpose.msra.mxu0 0
    %761 = vmatprep.subr.bf16.mxu0 0
    %762 = vmatpush2.bf16.xpose.msra.mxu0 0
    %763 = vmatprep.mubr.bf16.mxu0 0
    %764 = vmatmul.mubr.bf16.gmra.mxu0 %v726
    %v765 = vpop.f32.mrf.mxu0
    %v766 = vadd.f32 0.0, %v765
    %v767 = vpop.f32.mrf.mxu0
    %v768 = vpop.f32.mrf.mxu0
    %v769 = vpop.f32.mrf.mxu0
    %770 = vdwg.mxu0
    %v771 = vmul.f32 %v766, 0.35355338
    %v772 = vsel %vm149, %v771, -inf
    %773 = vmax.xlane.f32.xlu0 %v772
    %v774 = vpop.xlane.xlu0 %773
    %v775 = vsub.f32 %v771, %v774
    %v776 = vmul.f32 %v775, 1.442695
    %v777 = vpow.pop %v776
    %v778 = vsel %vm149, %v777, 0.0
    %779 = vadd.xlane.f32.xlu0 %v778
    %v780 = vpop.xlane.xlu0 %779
    %v781 = vrcp.pop %v780
    %v782 = vmul.f32 %v777, %v781
    %v783 = vpack.c.bf16 %v782, %v782
    %784 = vrot.lane.b32.xlu0 %v610, 56
    %v785 = vpop.permute.xlu0 %784
    %v787 = vsel %vm149, %v783, 0
    %v790 = vsel %vm214, %v785, 0
    %792 = vmatprep.subr.bf16.mxu0 0
    %793 = vmatpush1.bf16.msra.mxu0 0
    %794 = vmatprep.subr.bf16.mxu0 0
    %795 = vmatpush1.bf16.msra.mxu0 0
    %796 = vmatprep.subr.bf16.mxu0 0
    %797 = vmatpush1.bf16.msra.mxu0 0
    %798 = vmatprep.subr.bf16.mxu0 0
    %799 = vmatpush1.bf16.msra.mxu0 0
    %800 = vmatprep.subr.bf16.mxu0 0
    %801 = vmatpush1.bf16.msra.mxu0 0
    %802 = vmatprep.subr.bf16.mxu0 0
    %803 = vmatpush1.bf16.msra.mxu0 0
    %804 = vmatprep.subr.bf16.mxu0 0
    %805 = vmatpush1.bf16.msra.mxu0 0
    %806 = vmatprep.subr.bf16.mxu0 0
    %807 = vmatpush1.bf16.msra.mxu0 %v790
    %808 = vmatprep.subr.bf16.mxu0 0
    %809 = vmatpush2.bf16.msra.mxu0 0
    %810 = vmatprep.subr.bf16.mxu0 0
    %811 = vmatpush2.bf16.msra.mxu0 0
    %812 = vmatprep.subr.bf16.mxu0 0
    %813 = vmatpush2.bf16.msra.mxu0 0
    %814 = vmatprep.subr.bf16.mxu0 0
    %815 = vmatpush2.bf16.msra.mxu0 0
    %816 = vmatprep.subr.bf16.mxu0 0
    %817 = vmatpush2.bf16.msra.mxu0 0
    %818 = vmatprep.subr.bf16.mxu0 0
    %819 = vmatpush2.bf16.msra.mxu0 0
    %820 = vmatprep.subr.bf16.mxu0 0
    %821 = vmatpush2.bf16.msra.mxu0 0
    %822 = vmatprep.subr.bf16.mxu0 0
    %823 = vmatpush2.bf16.msra.mxu0 0
    %824 = vmatprep.mubr.bf16.mxu0 0
    %825 = vmatmul.mubr.bf16.gmra.mxu0 %v787
    %v826 = vpop.f32.mrf.mxu0
    %v827 = vadd.f32 0.0, %v826
    %v828 = vpop.f32.mrf.mxu0
    %v829 = vpop.f32.mrf.mxu0
    %v830 = vpop.f32.mrf.mxu0
    %831 = vdwg.mxu0
    %833 = vrot.lane.b32.xlu0 %v827, 8
    %v834 = vpop.permute.xlu0 %833
    %836 = vst.msk [vmem:[#allocation2 + $0x8] sm:$0xff] %vm374, %v834
    %837 = vrot.lane.b32.xlu0 %v610, 112
    %v838 = vpop.permute.xlu0 %837
    %839 = vrot.lane.b32.xlu0 %v610, 80
    %v840 = vpop.permute.xlu0 %839
    %v842 = vsel %vm149, %v838, 0
    %v845 = vsel %vm149, %v840, 0
    %847 = vmatprep.subr.bf16.mxu0 0
    %848 = vmatpush1.bf16.xpose.msra.mxu0 0
    %849 = vmatprep.subr.bf16.mxu0 0
    %850 = vmatpush1.bf16.xpose.msra.mxu0 0
    %851 = vmatprep.subr.bf16.mxu0 0
    %852 = vmatpush1.bf16.xpose.msra.mxu0 0
    %853 = vmatprep.subr.bf16.mxu0 0
    %854 = vmatpush1.bf16.xpose.msra.mxu0 0
    %855 = vmatprep.subr.bf16.mxu0 0
    %856 = vmatpush1.bf16.xpose.msra.mxu0 0
    %857 = vmatprep.subr.bf16.mxu0 0
    %858 = vmatpush1.bf16.xpose.msra.mxu0 0
    %859 = vmatprep.subr.bf16.mxu0 0
    %860 = vmatpush1.bf16.xpose.msra.mxu0 0
    %861 = vmatprep.subr.bf16.mxu0 0
    %862 = vmatpush1.bf16.xpose.msra.mxu0 %v845
    %863 = vmatprep.subr.bf16.mxu0 0
    %864 = vmatpush2.bf16.xpose.msra.mxu0 0
    %865 = vmatprep.subr.bf16.mxu0 0
    %866 = vmatpush2.bf16.xpose.msra.mxu0 0
    %867 = vmatprep.subr.bf16.mxu0 0
    %868 = vmatpush2.bf16.xpose.msra.mxu0 0
    %869 = vmatprep.subr.bf16.mxu0 0
    %870 = vmatpush2.bf16.xpose.msra.mxu0 0
    %871 = vmatprep.subr.bf16.mxu0 0
    %872 = vmatpush2.bf16.xpose.msra.mxu0 0
    %873 = vmatprep.subr.bf16.mxu0 0
    %874 = vmatpush2.bf16.xpose.msra.mxu0 0
    %875 = vmatprep.subr.bf16.mxu0 0
    %876 = vmatpush2.bf16.xpose.msra.mxu0 0
    %877 = vmatprep.subr.bf16.mxu0 0
    %878 = vmatpush2.bf16.xpose.msra.mxu0 0
    %879 = vmatprep.mubr.bf16.mxu0 0
    %880 = vmatmul.mubr.bf16.gmra.mxu0 %v842
    %v881 = vpop.f32.mrf.mxu0
    %v882 = vadd.f32 0.0, %v881
    %v883 = vpop.f32.mrf.mxu0
    %v884 = vpop.f32.mrf.mxu0
    %v885 = vpop.f32.mrf.mxu0
    %886 = vdwg.mxu0
    %v887 = vmul.f32 %v882, 0.35355338
    %v888 = vsel %vm149, %v887, -inf
    %889 = vmax.xlane.f32.xlu0 %v888
    %v890 = vpop.xlane.xlu0 %889
    %v891 = vsub.f32 %v887, %v890
    %v892 = vmul.f32 %v891, 1.442695
    %v893 = vpow.pop %v892
    %v894 = vsel %vm149, %v893, 0.0
    %895 = vadd.xlane.f32.xlu0 %v894
    %v896 = vpop.xlane.xlu0 %895
    %v897 = vrcp.pop %v896
    %v898 = vmul.f32 %v893, %v897
    %v899 = vpack.c.bf16 %v898, %v898
    %900 = vrot.lane.b32.xlu0 %v610, 48
    %v901 = vpop.permute.xlu0 %900
    %v903 = vsel %vm149, %v899, 0
    %v906 = vsel %vm214, %v901, 0
    %908 = vmatprep.subr.bf16.mxu0 0
    %909 = vmatpush1.bf16.msra.mxu0 0
    %910 = vmatprep.subr.bf16.mxu0 0
    %911 = vmatpush1.bf16.msra.mxu0 0
    %912 = vmatprep.subr.bf16.mxu0 0
    %913 = vmatpush1.bf16.msra.mxu0 0
    %914 = vmatprep.subr.bf16.mxu0 0
    %915 = vmatpush1.bf16.msra.mxu0 0
    %916 = vmatprep.subr.bf16.mxu0 0
    %917 = vmatpush1.bf16.msra.mxu0 0
    %918 = vmatprep.subr.bf16.mxu0 0
    %919 = vmatpush1.bf16.msra.mxu0 0
    %920 = vmatprep.subr.bf16.mxu0 0
    %921 = vmatpush1.bf16.msra.mxu0 0
    %922 = vmatprep.subr.bf16.mxu0 0
    %923 = vmatpush1.bf16.msra.mxu0 %v906
    %924 = vmatprep.subr.bf16.mxu0 0
    %925 = vmatpush2.bf16.msra.mxu0 0
    %926 = vmatprep.subr.bf16.mxu0 0
    %927 = vmatpush2.bf16.msra.mxu0 0
    %928 = vmatprep.subr.bf16.mxu0 0
    %929 = vmatpush2.bf16.msra.mxu0 0
    %930 = vmatprep.subr.bf16.mxu0 0
    %931 = vmatpush2.bf16.msra.mxu0 0
    %932 = vmatprep.subr.bf16.mxu0 0
    %933 = vmatpush2.bf16.msra.mxu0 0
    %934 = vmatprep.subr.bf16.mxu0 0
    %935 = vmatpush2.bf16.msra.mxu0 0
    %936 = vmatprep.subr.bf16.mxu0 0
    %937 = vmatpush2.bf16.msra.mxu0 0
    %938 = vmatprep.subr.bf16.mxu0 0
    %939 = vmatpush2.bf16.msra.mxu0 0
    %940 = vmatprep.mubr.bf16.mxu0 0
    %941 = vmatmul.mubr.bf16.gmra.mxu0 %v903
    %v942 = vpop.f32.mrf.mxu0
    %v943 = vadd.f32 0.0, %v942
    %v944 = vpop.f32.mrf.mxu0
    %v945 = vpop.f32.mrf.mxu0
    %v946 = vpop.f32.mrf.mxu0
    %947 = vdwg.mxu0
    %949 = vrot.lane.b32.xlu0 %v943, 16
    %v950 = vpop.permute.xlu0 %949
    %952 = vst.msk [vmem:[#allocation2 + $0x8] sm:$0xff] %vm491, %v950
    %953 = vrot.lane.b32.xlu0 %v610, 104
    %v954 = vpop.permute.xlu0 %953
    %955 = vrot.lane.b32.xlu0 %v610, 72
    %v956 = vpop.permute.xlu0 %955
    %v958 = vsel %vm149, %v954, 0
    %v961 = vsel %vm149, %v956, 0
    %963 = vmatprep.subr.bf16.mxu0 0
    %964 = vmatpush1.bf16.xpose.msra.mxu0 0
    %965 = vmatprep.subr.bf16.mxu0 0
    %966 = vmatpush1.bf16.xpose.msra.mxu0 0
    %967 = vmatprep.subr.bf16.mxu0 0
    %968 = vmatpush1.bf16.xpose.msra.mxu0 0
    %969 = vmatprep.subr.bf16.mxu0 0
    %970 = vmatpush1.bf16.xpose.msra.mxu0 0
    %971 = vmatprep.subr.bf16.mxu0 0
    %972 = vmatpush1.bf16.xpose.msra.mxu0 0
    %973 = vmatprep.subr.bf16.mxu0 0
    %974 = vmatpush1.bf16.xpose.msra.mxu0 0
    %975 = vmatprep.subr.bf16.mxu0 0
    %976 = vmatpush1.bf16.xpose.msra.mxu0 0
    %977 = vmatprep.subr.bf16.mxu0 0
    %978 = vmatpush1.bf16.xpose.msra.mxu0 %v961
    %979 = vmatprep.subr.bf16.mxu0 0
    %980 = vmatpush2.bf16.xpose.msra.mxu0 0
    %981 = vmatprep.subr.bf16.mxu0 0
    %982 = vmatpush2.bf16.xpose.msra.mxu0 0
    %983 = vmatprep.subr.bf16.mxu0 0
    %984 = vmatpush2.bf16.xpose.msra.mxu0 0
    %985 = vmatprep.subr.bf16.mxu0 0
    %986 = vmatpush2.bf16.xpose.msra.mxu0 0
    %987 = vmatprep.subr.bf16.mxu0 0
    %988 = vmatpush2.bf16.xpose.msra.mxu0 0
    %989 = vmatprep.subr.bf16.mxu0 0
    %990 = vmatpush2.bf16.xpose.msra.mxu0 0
    %991 = vmatprep.subr.bf16.mxu0 0
    %992 = vmatpush2.bf16.xpose.msra.mxu0 0
    %993 = vmatprep.subr.bf16.mxu0 0
    %994 = vmatpush2.bf16.xpose.msra.mxu0 0
    %995 = vmatprep.mubr.bf16.mxu0 0
    %996 = vmatmul.mubr.bf16.gmra.mxu0 %v958
    %v997 = vpop.f32.mrf.mxu0
    %v998 = vadd.f32 0.0, %v997
    %v999 = vpop.f32.mrf.mxu0
    %v1000 = vpop.f32.mrf.mxu0
    %v1001 = vpop.f32.mrf.mxu0
    %1002 = vdwg.mxu0
    %v1003 = vmul.f32 %v998, 0.35355338
    %v1004 = vsel %vm149, %v1003, -inf
    %1005 = vmax.xlane.f32.xlu0 %v1004
    %v1006 = vpop.xlane.xlu0 %1005
    %v1007 = vsub.f32 %v1003, %v1006
    %v1008 = vmul.f32 %v1007, 1.442695
    %v1009 = vpow.pop %v1008
    %v1010 = vsel %vm149, %v1009, 0.0
    %1011 = vadd.xlane.f32.xlu0 %v1010
    %v1012 = vpop.xlane.xlu0 %1011
    %v1013 = vrcp.pop %v1012
    %v1014 = vmul.f32 %v1009, %v1013
    %v1015 = vpack.c.bf16 %v1014, %v1014
    %1016 = vrot.lane.b32.xlu0 %v610, 40
    %v1017 = vpop.permute.xlu0 %1016
    %v1019 = vsel %vm149, %v1015, 0
    %v1022 = vsel %vm214, %v1017, 0
    %1024 = vmatprep.subr.bf16.mxu0 0
    %1025 = vmatpush1.bf16.msra.mxu0 0
    %1026 = vmatprep.subr.bf16.mxu0 0
    %1027 = vmatpush1.bf16.msra.mxu0 0
    %1028 = vmatprep.subr.bf16.mxu0 0
    %1029 = vmatpush1.bf16.msra.mxu0 0
    %1030 = vmatprep.subr.bf16.mxu0 0
    %1031 = vmatpush1.bf16.msra.mxu0 0
    %1032 = vmatprep.subr.bf16.mxu0 0
    %1033 = vmatpush1.bf16.msra.mxu0 0
    %1034 = vmatprep.subr.bf16.mxu0 0
    %1035 = vmatpush1.bf16.msra.mxu0 0
    %1036 = vmatprep.subr.bf16.mxu0 0
    %1037 = vmatpush1.bf16.msra.mxu0 0
    %1038 = vmatprep.subr.bf16.mxu0 0
    %1039 = vmatpush1.bf16.msra.mxu0 %v1022
    %1040 = vmatprep.subr.bf16.mxu0 0
    %1041 = vmatpush2.bf16.msra.mxu0 0
    %1042 = vmatprep.subr.bf16.mxu0 0
    %1043 = vmatpush2.bf16.msra.mxu0 0
    %1044 = vmatprep.subr.bf16.mxu0 0
    %1045 = vmatpush2.bf16.msra.mxu0 0
    %1046 = vmatprep.subr.bf16.mxu0 0
    %1047 = vmatpush2.bf16.msra.mxu0 0
    %1048 = vmatprep.subr.bf16.mxu0 0
    %1049 = vmatpush2.bf16.msra.mxu0 0
    %1050 = vmatprep.subr.bf16.mxu0 0
    %1051 = vmatpush2.bf16.msra.mxu0 0
    %1052 = vmatprep.subr.bf16.mxu0 0
    %1053 = vmatpush2.bf16.msra.mxu0 0
    %1054 = vmatprep.subr.bf16.mxu0 0
    %1055 = vmatpush2.bf16.msra.mxu0 0
    %1056 = vmatprep.mubr.bf16.mxu0 0
    %1057 = vmatmul.mubr.bf16.gmra.mxu0 %v1019
    %v1058 = vpop.f32.mrf.mxu0
    %v1059 = vadd.f32 0.0, %v1058
    %v1060 = vpop.f32.mrf.mxu0
    %v1061 = vpop.f32.mrf.mxu0
    %v1062 = vpop.f32.mrf.mxu0
    %1063 = vdwg.mxu0
    %1065 = vrot.lane.b32.xlu0 %v1059, 24
    %v1066 = vpop.permute.xlu0 %1065
    %1068 = vst.msk [vmem:[#allocation2 + $0x8] sm:$0xff] %vm608, %v1066
    %v1069 = vld [vmem:[#allocation2] sm:$0xff]
    %v1070 = vld [vmem:[#allocation2 + $0x8] sm:$0xff]
    %v1071 = vpack.c.bf16 %v1070, %v1069
    %1072 = vrot.lane.b32.xlu0 %v96, 32
    %v1073 = vpop.permute.xlu0 %1072
    %1074 = vrot.lane.b32.xlu0 %v97, 32
    %v1075 = vpop.permute.xlu0 %1074
    %1079 = vrot.lane.b32.xlu0 %v87, 32
    %v1080 = vpop.permute.xlu0 %1079
    %v1083 = vsel %vm100, %v1071, 0
    %1085 = vmatprep.subr.bf16.mxu0 0
    %1086 = vmatpush1.bf16.msra.mxu0 0
    %1087 = vmatprep.subr.bf16.mxu0 0
    %1088 = vmatpush1.bf16.msra.mxu0 0
    %1089 = vmatprep.subr.bf16.mxu0 0
    %1090 = vmatpush1.bf16.msra.mxu0 0
    %1091 = vmatprep.subr.bf16.mxu0 0
    %1092 = vmatpush1.bf16.msra.mxu0 0
    %1093 = vmatprep.subr.bf16.mxu0 0
    %1094 = vmatpush1.bf16.msra.mxu0 0
    %1095 = vmatprep.subr.bf16.mxu0 0
    %1096 = vmatpush1.bf16.msra.mxu0 0
    %1097 = vmatprep.subr.bf16.mxu0 0
    %1098 = vmatpush1.bf16.msra.mxu0 %v1075
    %1099 = vmatprep.subr.bf16.mxu0 0
    %1100 = vmatpush1.bf16.msra.mxu0 %v1073
    %1101 = vmatprep.subr.bf16.mxu0 0
    %1102 = vmatpush2.bf16.msra.mxu0 0
    %1103 = vmatprep.subr.bf16.mxu0 0
    %1104 = vmatpush2.bf16.msra.mxu0 0
    %1105 = vmatprep.subr.bf16.mxu0 0
    %1106 = vmatpush2.bf16.msra.mxu0 0
    %1107 = vmatprep.subr.bf16.mxu0 0
    %1108 = vmatpush2.bf16.msra.mxu0 0
    %1109 = vmatprep.subr.bf16.mxu0 0
    %1110 = vmatpush2.bf16.msra.mxu0 0
    %1111 = vmatprep.subr.bf16.mxu0 0
    %1112 = vmatpush2.bf16.msra.mxu0 0
    %1113 = vmatprep.subr.bf16.mxu0 0
    %1114 = vmatpush2.bf16.msra.mxu0 0
    %1115 = vmatprep.subr.bf16.mxu0 0
    %1116 = vmatpush2.bf16.msra.mxu0 0
    %1117 = vmatprep.mubr.bf16.mxu0 0
    %1118 = vmatmul.mubr.bf16.gmra.mxu0 %v1083
    %v1119 = vpop.f32.mrf.mxu0
    %v1120 = vadd.f32 %v1080, %v1119
    %v1121 = vpop.f32.mrf.mxu0
    %v1122 = vpop.f32.mrf.mxu0
    %v1123 = vadd.f32 %v1080, %v1122
    %v1124 = vpop.f32.mrf.mxu0
    %1125 = vdwg.mxu0
    %v1126 = vadd.f32 %v65, %v1120
    %v1127 = vadd.f32 %v66, %v1123
    %v1128 = vsel %vm100, %v1126, 0.0
    %1129 = vadd.xlane.f32.xlu0 %v1128
    %v1130 = vpop.xlane.xlu0 %1129
    %v1131 = vsel %vm100, %v1127, 0.0
    %1132 = vadd.xlane.f32.xlu0 %v1131
    %v1133 = vpop.xlane.xlu0 %1132
    %v1134 = vrcp.pop 32.0
    %v1135 = vmul.f32 %v1130, %v1134
    %v1136 = vmul.f32 %v1133, %v1134
    %v1137 = vmul.f32 %v1126, %v1126
    %v1138 = vmul.f32 %v1127, %v1127
    %v1139 = vsel %vm100, %v1137, 0.0
    %1140 = vadd.xlane.f32.xlu0 %v1139
    %v1141 = vpop.xlane.xlu0 %1140
    %v1142 = vsel %vm100, %v1138, 0.0
    %1143 = vadd.xlane.f32.xlu0 %v1142
    %v1144 = vpop.xlane.xlu0 %1143
    %v1145 = vmul.f32 %v1141, %v1134
    %v1146 = vmul.f32 %v1144, %v1134
    %v1147 = vsub.f32 %v1126, %v1135
    %v1148 = vsub.f32 %v1127, %v1136
    %v1149 = vmul.f32 %v1135, %v1135
    %v1150 = vmul.f32 %v1136, %v1136
    %v1151 = vsub.f32 %v1145, %v1149
    %v1152 = vsub.f32 %v1146, %v1150
    %v1153 = vadd.f32 %v1151, 1e-05
    %v1154 = vadd.f32 %v1152, 1e-05
    %v1155 = vrsqrt.pop %v1153
    %v1156 = vrsqrt.pop %v1154
    %v1157 = vmul.f32 %v1147, %v1155
    %v1158 = vmul.f32 %v1148, %v1156
    %v1159 = vlaneseq
    %v1160 = vshrl.u32 %v1159, 7
    %v1161 = vsub.s32 5, %v1160
    %v1162 = vrot.slane %v47, %v1161
    %v1163 = vmul.f32 %v1157, %v1162
    %v1164 = vmul.f32 %v1158, %v1162
    %1166 = vrot.lane.b32.xlu0 %v1162, 96
    %v1167 = vpop.permute.xlu0 %1166
    %v1169 = vadd.f32 %v1163, %v1167
    %v1170 = vadd.f32 %v1164, %v1167
    %v1171 = vpack.c.bf16 %v1170, %v1169
    %v1172 = vlaneseq
    %v1173 = vshrl.u32 %v1172, 7
    %v1174 = vsub.s32 4, %v1173
    %v1175 = vrot.slane %v47, %v1174
    %v1180 = vunpack.c.l.b16 %v71
    %v1181 = vunpack.c.l.b16 %v72
    %v1182 = vunpack.c.l.b16 %v73
    %v1183 = vunpack.c.l.b16 %v74
    %v1184 = vpack.c.b16 %v1181, %v1180
    %v1185 = vpack.c.b16 %v1183, %v1182
    %v1189 = vsel %vm100, %v1171, 0
    %1191 = vmatprep.subr.bf16.mxu0 0
    %1192 = vmatpush1.bf16.msra.mxu0 0
    %1193 = vmatprep.subr.bf16.mxu0 0
    %1194 = vmatpush1.bf16.msra.mxu0 0
    %1195 = vmatprep.subr.bf16.mxu0 0
    %1196 = vmatpush1.bf16.msra.mxu0 0
    %1197 = vmatprep.subr.bf16.mxu0 0
    %1198 = vmatpush1.bf16.msra.mxu0 0
    %1199 = vmatprep.subr.bf16.mxu0 0
    %1200 = vmatpush1.bf16.msra.mxu0 0
    %1201 = vmatprep.subr.bf16.mxu0 0
    %1202 = vmatpush1.bf16.msra.mxu0 0
    %1203 = vmatprep.subr.bf16.mxu0 0
    %1204 = vmatpush1.bf16.msra.mxu0 %v1185
    %1205 = vmatprep.subr.bf16.mxu0 0
    %1206 = vmatpush1.bf16.msra.mxu0 %v1184
    %1207 = vmatprep.subr.bf16.mxu0 0
    %1208 = vmatpush2.bf16.msra.mxu0 0
    %1209 = vmatprep.subr.bf16.mxu0 0
    %1210 = vmatpush2.bf16.msra.mxu0 0
    %1211 = vmatprep.subr.bf16.mxu0 0
    %1212 = vmatpush2.bf16.msra.mxu0 0
    %1213 = vmatprep.subr.bf16.mxu0 0
    %1214 = vmatpush2.bf16.msra.mxu0 0
    %1215 = vmatprep.subr.bf16.mxu0 0
    %1216 = vmatpush2.bf16.msra.mxu0 0
    %1217 = vmatprep.subr.bf16.mxu0 0
    %1218 = vmatpush2.bf16.msra.mxu0 0
    %1219 = vmatprep.subr.bf16.mxu0 0
    %1220 = vmatpush2.bf16.msra.mxu0 0
    %1221 = vmatprep.subr.bf16.mxu0 0
    %1222 = vmatpush2.bf16.msra.mxu0 0
    %1223 = vmatprep.mubr.bf16.mxu0 0
    %1224 = vmatmul.mubr.bf16.gmra.mxu0 %v1189
    %v1225 = vpop.f32.mrf.mxu0
    %v1226 = vadd.f32 %v1175, %v1225
    %v1227 = vpop.f32.mrf.mxu0
    %v1228 = vpop.f32.mrf.mxu0
    %v1229 = vadd.f32 %v1175, %v1228
    %v1230 = vpop.f32.mrf.mxu0
    %1231 = vdwg.mxu0
    %v1232 = vmax.f32 %v1226, 0.0
    %v1233 = vmax.f32 %v1229, 0.0
    %v1234 = vpack.c.bf16 %v1233, %v1232
    %v1243 = vunpack.c.l.b16 %v75
    %v1244 = vunpack.c.l.b16 %v76
    %v1245 = vunpack.c.l.b16 %v77
    %v1246 = vunpack.c.l.b16 %v78
    %v1247 = vunpack.c.l.b16 %v79
    %v1248 = vunpack.c.l.b16 %v80
    %v1249 = vunpack.c.l.b16 %v81
    %v1250 = vunpack.c.l.b16 %v82
    %v1251 = vpack.c.b16 %v1244, %v1243
    %v1252 = vpack.c.b16 %v1246, %v1245
    %v1253 = vpack.c.b16 %v1248, %v1247
    %v1254 = vpack.c.b16 %v1250, %v1249
    %1260 = vrot.lane.b32.xlu0 %v1175, 64
    %v1261 = vpop.permute.xlu0 %1260
    %vm1263 = vcmask 523264
    %v1265 = vsel %vm1263, %v1234, 0
    %1267 = vmatprep.subr.bf16.mxu0 0
    %1268 = vmatpush1.bf16.msra.mxu0 0
    %1269 = vmatprep.subr.bf16.mxu0 0
    %1270 = vmatpush1.bf16.msra.mxu0 0
    %1271 = vmatprep.subr.bf16.mxu0 0
    %1272 = vmatpush1.bf16.msra.mxu0 0
    %1273 = vmatprep.subr.bf16.mxu0 0
    %1274 = vmatpush1.bf16.msra.mxu0 0
    %1275 = vmatprep.subr.bf16.mxu0 0
    %1276 = vmatpush1.bf16.msra.mxu0 %v1254
    %1277 = vmatprep.subr.bf16.mxu0 0
    %1278 = vmatpush1.bf16.msra.mxu0 %v1253
    %1279 = vmatprep.subr.bf16.mxu0 0
    %1280 = vmatpush1.bf16.msra.mxu0 %v1252
    %1281 = vmatprep.subr.bf16.mxu0 0
    %1282 = vmatpush1.bf16.msra.mxu0 %v1251
    %1283 = vmatprep.subr.bf16.mxu0 0
    %1284 = vmatpush2.bf16.msra.mxu0 0
    %1285 = vmatprep.subr.bf16.mxu0 0
    %1286 = vmatpush2.bf16.msra.mxu0 0
    %1287 = vmatprep.subr.bf16.mxu0 0
    %1288 = vmatpush2.bf16.msra.mxu0 0
    %1289 = vmatprep.subr.bf16.mxu0 0
    %1290 = vmatpush2.bf16.msra.mxu0 0
    %1291 = vmatprep.subr.bf16.mxu0 0
    %1292 = vmatpush2.bf16.msra.mxu0 0
    %1293 = vmatprep.subr.bf16.mxu0 0
    %1294 = vmatpush2.bf16.msra.mxu0 0
    %1295 = vmatprep.subr.bf16.mxu0 0
    %1296 = vmatpush2.bf16.msra.mxu0 0
    %1297 = vmatprep.subr.bf16.mxu0 0
    %1298 = vmatpush2.bf16.msra.mxu0 0
    %1299 = vmatprep.mubr.bf16.mxu0 0
    %1300 = vmatmul.mubr.bf16.gmra.mxu0 %v1265
    %v1301 = vpop.f32.mrf.mxu0
    %v1302 = vadd.f32 %v1261, %v1301
    %v1303 = vpop.f32.mrf.mxu0
    %v1304 = vpop.f32.mrf.mxu0
    %v1305 = vadd.f32 %v1261, %v1304
    %v1306 = vpop.f32.mrf.mxu0
    %1307 = vdwg.mxu0
    %v1308 = vadd.f32 %v1169, %v1302
    %v1309 = vadd.f32 %v1170, %v1305
    %v1310 = vsel %vm100, %v1308, 0.0
    %1311 = vadd.xlane.f32.xlu0 %v1310
    %v1312 = vpop.xlane.xlu0 %1311
    %v1313 = vsel %vm100, %v1309, 0.0
    %1314 = vadd.xlane.f32.xlu0 %v1313
    %v1315 = vpop.xlane.xlu0 %1314
    %v1316 = vmul.f32 %v1312, %v1134
    %v1317 = vmul.f32 %v1315, %v1134
    %v1318 = vmul.f32 %v1308, %v1308
    %v1319 = vmul.f32 %v1309, %v1309
    %v1320 = vsel %vm100, %v1318, 0.0
    %1321 = vadd.xlane.f32.xlu0 %v1320
    %v1322 = vpop.xlane.xlu0 %1321
    %v1323 = vsel %vm100, %v1319, 0.0
    %1324 = vadd.xlane.f32.xlu0 %v1323
    %v1325 = vpop.xlane.xlu0 %1324
    %v1326 = vmul.f32 %v1322, %v1134
    %v1327 = vmul.f32 %v1325, %v1134
    %v1328 = vsub.f32 %v1308, %v1316
    %v1329 = vsub.f32 %v1309, %v1317
    %v1330 = vmul.f32 %v1316, %v1316
    %v1331 = vmul.f32 %v1317, %v1317
    %v1332 = vsub.f32 %v1326, %v1330
    %v1333 = vsub.f32 %v1327, %v1331
    %v1334 = vadd.f32 %v1332, 1e-05
    %v1335 = vadd.f32 %v1333, 1e-05
    %v1336 = vrsqrt.pop %v1334
    %v1337 = vrsqrt.pop %v1335
    %v1338 = vmul.f32 %v1328, %v1336
    %v1339 = vmul.f32 %v1329, %v1337
    %1340 = vrot.lane.b32.xlu0 %v1162, 64
    %v1341 = vpop.permute.xlu0 %1340
    %v1343 = vmul.f32 %v1338, %v1341
    %v1344 = vmul.f32 %v1339, %v1341
    %1345 = vrot.lane.b32.xlu0 %v1162, 32
    %v1346 = vpop.permute.xlu0 %1345
    %v1348 = vadd.f32 %v1343, %v1346
    %v1349 = vadd.f32 %v1344, %v1346
    %v1350 = vld [vmem:[#allocation5 + $0x40] sm:$0xf]
    %v1351 = vld [vmem:[#allocation5 + $0x44] sm:$0xf]
    %v1352 = vld [vmem:[#allocation5 + $0x48] sm:$0xf]
    %v1353 = vld [vmem:[#allocation5 + $0x4c] sm:$0xf]
    %v1354 = vld [vmem:[#allocation5 + $0x50] sm:$0xf]
    %v1355 = vld [vmem:[#allocation5 + $0x54] sm:$0xf]
    %v1356 = vld [vmem:[#allocation5 + $0x58] sm:$0xf]
    %v1357 = vld [vmem:[#allocation5 + $0x5c] sm:$0xf]
    %v1358 = vld [vmem:[#allocation5 + $0x60] sm:$0xf]
    %v1359 = vld [vmem:[#allocation5 + $0x64] sm:$0xf]
    %v1360 = vld [vmem:[#allocation5 + $0x68] sm:$0xf]
    %v1361 = vld [vmem:[#allocation5 + $0x6c] sm:$0xf]
    %v1362 = vld [vmem:[#allocation5 + $0x70] sm:$0xf]
    %v1363 = vld [vmem:[#allocation5 + $0x74] sm:$0xf]
    %v1364 = vld [vmem:[#allocation5 + $0x78] sm:$0xf]
    %v1365 = vld [vmem:[#allocation5 + $0x7c] sm:$0xf]
    %v1366 = vpack.c.bf16 %v1349, %v1348
    %v1367 = vlaneseq
    %v1368 = vshrl.u32 %v1367, 7
    %v1369 = vsub.s32 6, %v1368
    %v1370 = vrot.slane %v47, %v1369
    %v1375 = vunpack.c.l.b16 %v1350
    %v1376 = vunpack.c.l.b16 %v1351
    %v1377 = vunpack.c.l.b16 %v1352
    %v1378 = vunpack.c.l.b16 %v1353
    %v1379 = vpack.c.b16 %v1376, %v1375
    %v1380 = vpack.c.b16 %v1378, %v1377
    %v1384 = vsel %vm100, %v1366, 0
    %1386 = vmatprep.subr.bf16.mxu0 0
    %1387 = vmatpush1.bf16.msra.mxu0 0
    %1388 = vmatprep.subr.bf16.mxu0 0
    %1389 = vmatpush1.bf16.msra.mxu0 0
    %1390 = vmatprep.subr.bf16.mxu0 0
    %1391 = vmatpush1.bf16.msra.mxu0 0
    %1392 = vmatprep.subr.bf16.mxu0 0
    %1393 = vmatpush1.bf16.msra.mxu0 0
    %1394 = vmatprep.subr.bf16.mxu0 0
    %1395 = vmatpush1.bf16.msra.mxu0 0
    %1396 = vmatprep.subr.bf16.mxu0 0
    %1397 = vmatpush1.bf16.msra.mxu0 0
    %1398 = vmatprep.subr.bf16.mxu0 0
    %1399 = vmatpush1.bf16.msra.mxu0 %v1380
    %1400 = vmatprep.subr.bf16.mxu0 0
    %1401 = vmatpush1.bf16.msra.mxu0 %v1379
    %1402 = vmatprep.subr.bf16.mxu0 0
    %1403 = vmatpush2.bf16.msra.mxu0 0
    %1404 = vmatprep.subr.bf16.mxu0 0
    %1405 = vmatpush2.bf16.msra.mxu0 0
    %1406 = vmatprep.subr.bf16.mxu0 0
    %1407 = vmatpush2.bf16.msra.mxu0 0
    %1408 = vmatprep.subr.bf16.mxu0 0
    %1409 = vmatpush2.bf16.msra.mxu0 0
    %1410 = vmatprep.subr.bf16.mxu0 0
    %1411 = vmatpush2.bf16.msra.mxu0 0
    %1412 = vmatprep.subr.bf16.mxu0 0
    %1413 = vmatpush2.bf16.msra.mxu0 0
    %1414 = vmatprep.subr.bf16.mxu0 0
    %1415 = vmatpush2.bf16.msra.mxu0 0
    %1416 = vmatprep.subr.bf16.mxu0 0
    %1417 = vmatpush2.bf16.msra.mxu0 0
    %1418 = vmatprep.mubr.bf16.mxu0 0
    %1419 = vmatmul.mubr.bf16.gmra.mxu0 %v1384
    %v1420 = vpop.f32.mrf.mxu0
    %v1421 = vadd.f32 %v1370, %v1420
    %v1422 = vpop.f32.mrf.mxu0
    %v1423 = vpop.f32.mrf.mxu0
    %v1424 = vadd.f32 %v1370, %v1423
    %v1425 = vpop.f32.mrf.mxu0
    %1426 = vdwg.mxu0
    %v1427 = vpack.c.bf16 %v1424, %v1421
    %1429 = vrot.lane.b32.xlu0 %v1427, 96
    %v1430 = vpop.permute.xlu0 %1429
    %v1432 = vsel %vm149, %v1427, 0
    %v1435 = vsel %vm149, %v1430, 0
    %1437 = vmatprep.subr.bf16.mxu0 0
    %1438 = vmatpush1.bf16.xpose.msra.mxu0 0
    %1439 = vmatprep.subr.bf16.mxu0 0
    %1440 = vmatpush1.bf16.xpose.msra.mxu0 0
    %1441 = vmatprep.subr.bf16.mxu0 0
    %1442 = vmatpush1.bf16.xpose.msra.mxu0 0
    %1443 = vmatprep.subr.bf16.mxu0 0
    %1444 = vmatpush1.bf16.xpose.msra.mxu0 0
    %1445 = vmatprep.subr.bf16.mxu0 0
    %1446 = vmatpush1.bf16.xpose.msra.mxu0 0
    %1447 = vmatprep.subr.bf16.mxu0 0
    %1448 = vmatpush1.bf16.xpose.msra.mxu0 0
    %1449 = vmatprep.subr.bf16.mxu0 0
    %1450 = vmatpush1.bf16.xpose.msra.mxu0 0
    %1451 = vmatprep.subr.bf16.mxu0 0
    %1452 = vmatpush1.bf16.xpose.msra.mxu0 %v1435
    %1453 = vmatprep.subr.bf16.mxu0 0
    %1454 = vmatpush2.bf16.xpose.msra.mxu0 0
    %1455 = vmatprep.subr.bf16.mxu0 0
    %1456 = vmatpush2.bf16.xpose.msra.mxu0 0
    %1457 = vmatprep.subr.bf16.mxu0 0
    %1458 = vmatpush2.bf16.xpose.msra.mxu0 0
    %1459 = vmatprep.subr.bf16.mxu0 0
    %1460 = vmatpush2.bf16.xpose.msra.mxu0 0
    %1461 = vmatprep.subr.bf16.mxu0 0
    %1462 = vmatpush2.bf16.xpose.msra.mxu0 0
    %1463 = vmatprep.subr.bf16.mxu0 0
    %1464 = vmatpush2.bf16.xpose.msra.mxu0 0
    %1465 = vmatprep.subr.bf16.mxu0 0
    %1466 = vmatpush2.bf16.xpose.msra.mxu0 0
    %1467 = vmatprep.subr.bf16.mxu0 0
    %1468 = vmatpush2.bf16.xpose.msra.mxu0 0
    %1469 = vmatprep.mubr.bf16.mxu0 0
    %1470 = vmatmul.mubr.bf16.gmra.mxu0 %v1432
    %v1471 = vpop.f32.mrf.mxu0
    %v1472 = vadd.f32 0.0, %v1471
    %v1473 = vpop.f32.mrf.mxu0
    %v1474 = vpop.f32.mrf.mxu0
    %v1475 = vpop.f32.mrf.mxu0
    %1476 = vdwg.mxu0
    %v1477 = vmul.f32 %v1472, 0.35355338
    %v1478 = vsel %vm149, %v1477, -inf
    %1479 = vmax.xlane.f32.xlu0 %v1478
    %v1480 = vpop.xlane.xlu0 %1479
    %v1481 = vsub.f32 %v1477, %v1480
    %v1482 = vmul.f32 %v1481, 1.442695
    %v1483 = vpow.pop %v1482
    %v1484 = vsel %vm149, %v1483, 0.0
    %1485 = vadd.xlane.f32.xlu0 %v1484
    %v1486 = vpop.xlane.xlu0 %1485
    %v1487 = vrcp.pop %v1486
    %v1488 = vmul.f32 %v1483, %v1487
    %v1489 = vpack.c.bf16 %v1488, %v1488
    %1490 = vrot.lane.b32.xlu0 %v1427, 64
    %v1491 = vpop.permute.xlu0 %1490
    %v1493 = vsel %vm149, %v1489, 0
    %v1496 = vsel %vm214, %v1491, 0
    %1498 = vmatprep.subr.bf16.mxu0 0
    %1499 = vmatpush1.bf16.msra.mxu0 0
    %1500 = vmatprep.subr.bf16.mxu0 0
    %1501 = vmatpush1.bf16.msra.mxu0 0
    %1502 = vmatprep.subr.bf16.mxu0 0
    %1503 = vmatpush1.bf16.msra.mxu0 0
    %1504 = vmatprep.subr.bf16.mxu0 0
    %1505 = vmatpush1.bf16.msra.mxu0 0
    %1506 = vmatprep.subr.bf16.mxu0 0
    %1507 = vmatpush1.bf16.msra.mxu0 0
    %1508 = vmatprep.subr.bf16.mxu0 0
    %1509 = vmatpush1.bf16.msra.mxu0 0
    %1510 = vmatprep.subr.bf16.mxu0 0
    %1511 = vmatpush1.bf16.msra.mxu0 0
    %1512 = vmatprep.subr.bf16.mxu0 0
    %1513 = vmatpush1.bf16.msra.mxu0 %v1496
    %1514 = vmatprep.subr.bf16.mxu0 0
    %1515 = vmatpush2.bf16.msra.mxu0 0
    %1516 = vmatprep.subr.bf16.mxu0 0
    %1517 = vmatpush2.bf16.msra.mxu0 0
    %1518 = vmatprep.subr.bf16.mxu0 0
    %1519 = vmatpush2.bf16.msra.mxu0 0
    %1520 = vmatprep.subr.bf16.mxu0 0
    %1521 = vmatpush2.bf16.msra.mxu0 0
    %1522 = vmatprep.subr.bf16.mxu0 0
    %1523 = vmatpush2.bf16.msra.mxu0 0
    %1524 = vmatprep.subr.bf16.mxu0 0
    %1525 = vmatpush2.bf16.msra.mxu0 0
    %1526 = vmatprep.subr.bf16.mxu0 0
    %1527 = vmatpush2.bf16.msra.mxu0 0
    %1528 = vmatprep.subr.bf16.mxu0 0
    %1529 = vmatpush2.bf16.msra.mxu0 0
    %1530 = vmatprep.mubr.bf16.mxu0 0
    %1531 = vmatmul.mubr.bf16.gmra.mxu0 %v1493
    %v1532 = vpop.f32.mrf.mxu0
    %v1533 = vadd.f32 0.0, %v1532
    %v1534 = vpop.f32.mrf.mxu0
    %v1535 = vpop.f32.mrf.mxu0
    %v1536 = vpop.f32.mrf.mxu0
    %1537 = vdwg.mxu0
    %1538 = vst.msk [vmem:[#allocation2] sm:$0xff] %vm149, %v1533
    %1539 = vrot.lane.b32.xlu0 %v1427, 120
    %v1540 = vpop.permute.xlu0 %1539
    %1541 = vrot.lane.b32.xlu0 %v1427, 88
    %v1542 = vpop.permute.xlu0 %1541
    %v1544 = vsel %vm149, %v1540, 0
    %v1547 = vsel %vm149, %v1542, 0
    %1549 = vmatprep.subr.bf16.mxu0 0
    %1550 = vmatpush1.bf16.xpose.msra.mxu0 0
    %1551 = vmatprep.subr.bf16.mxu0 0
    %1552 = vmatpush1.bf16.xpose.msra.mxu0 0
    %1553 = vmatprep.subr.bf16.mxu0 0
    %1554 = vmatpush1.bf16.xpose.msra.mxu0 0
    %1555 = vmatprep.subr.bf16.mxu0 0
    %1556 = vmatpush1.bf16.xpose.msra.mxu0 0
    %1557 = vmatprep.subr.bf16.mxu0 0
    %1558 = vmatpush1.bf16.xpose.msra.mxu0 0
    %1559 = vmatprep.subr.bf16.mxu0 0
    %1560 = vmatpush1.bf16.xpose.msra.mxu0 0
    %1561 = vmatprep.subr.bf16.mxu0 0
    %1562 = vmatpush1.bf16.xpose.msra.mxu0 0
    %1563 = vmatprep.subr.bf16.mxu0 0
    %1564 = vmatpush1.bf16.xpose.msra.mxu0 %v1547
    %1565 = vmatprep.subr.bf16.mxu0 0
    %1566 = vmatpush2.bf16.xpose.msra.mxu0 0
    %1567 = vmatprep.subr.bf16.mxu0 0
    %1568 = vmatpush2.bf16.xpose.msra.mxu0 0
    %1569 = vmatprep.subr.bf16.mxu0 0
    %1570 = vmatpush2.bf16.xpose.msra.mxu0 0
    %1571 = vmatprep.subr.bf16.mxu0 0
    %1572 = vmatpush2.bf16.xpose.msra.mxu0 0
    %1573 = vmatprep.subr.bf16.mxu0 0
    %1574 = vmatpush2.bf16.xpose.msra.mxu0 0
    %1575 = vmatprep.subr.bf16.mxu0 0
    %1576 = vmatpush2.bf16.xpose.msra.mxu0 0
    %1577 = vmatprep.subr.bf16.mxu0 0
    %1578 = vmatpush2.bf16.xpose.msra.mxu0 0
    %1579 = vmatprep.subr.bf16.mxu0 0
    %1580 = vmatpush2.bf16.xpose.msra.mxu0 0
    %1581 = vmatprep.mubr.bf16.mxu0 0
    %1582 = vmatmul.mubr.bf16.gmra.mxu0 %v1544
    %v1583 = vpop.f32.mrf.mxu0
    %v1584 = vadd.f32 0.0, %v1583
    %v1585 = vpop.f32.mrf.mxu0
    %v1586 = vpop.f32.mrf.mxu0
    %v1587 = vpop.f32.mrf.mxu0
    %1588 = vdwg.mxu0
    %v1589 = vmul.f32 %v1584, 0.35355338
    %v1590 = vsel %vm149, %v1589, -inf
    %1591 = vmax.xlane.f32.xlu0 %v1590
    %v1592 = vpop.xlane.xlu0 %1591
    %v1593 = vsub.f32 %v1589, %v1592
    %v1594 = vmul.f32 %v1593, 1.442695
    %v1595 = vpow.pop %v1594
    %v1596 = vsel %vm149, %v1595, 0.0
    %1597 = vadd.xlane.f32.xlu0 %v1596
    %v1598 = vpop.xlane.xlu0 %1597
    %v1599 = vrcp.pop %v1598
    %v1600 = vmul.f32 %v1595, %v1599
    %v1601 = vpack.c.bf16 %v1600, %v1600
    %1602 = vrot.lane.b32.xlu0 %v1427, 56
    %v1603 = vpop.permute.xlu0 %1602
    %v1605 = vsel %vm149, %v1601, 0
    %v1608 = vsel %vm214, %v1603, 0
    %1610 = vmatprep.subr.bf16.mxu0 0
    %1611 = vmatpush1.bf16.msra.mxu0 0
    %1612 = vmatprep.subr.bf16.mxu0 0
    %1613 = vmatpush1.bf16.msra.mxu0 0
    %1614 = vmatprep.subr.bf16.mxu0 0
    %1615 = vmatpush1.bf16.msra.mxu0 0
    %1616 = vmatprep.subr.bf16.mxu0 0
    %1617 = vmatpush1.bf16.msra.mxu0 0
    %1618 = vmatprep.subr.bf16.mxu0 0
    %1619 = vmatpush1.bf16.msra.mxu0 0
    %1620 = vmatprep.subr.bf16.mxu0 0
    %1621 = vmatpush1.bf16.msra.mxu0 0
    %1622 = vmatprep.subr.bf16.mxu0 0
    %1623 = vmatpush1.bf16.msra.mxu0 0
    %1624 = vmatprep.subr.bf16.mxu0 0
    %1625 = vmatpush1.bf16.msra.mxu0 %v1608
    %1626 = vmatprep.subr.bf16.mxu0 0
    %1627 = vmatpush2.bf16.msra.mxu0 0
    %1628 = vmatprep.subr.bf16.mxu0 0
    %1629 = vmatpush2.bf16.msra.mxu0 0
    %1630 = vmatprep.subr.bf16.mxu0 0
    %1631 = vmatpush2.bf16.msra.mxu0 0
    %1632 = vmatprep.subr.bf16.mxu0 0
    %1633 = vmatpush2.bf16.msra.mxu0 0
    %1634 = vmatprep.subr.bf16.mxu0 0
    %1635 = vmatpush2.bf16.msra.mxu0 0
    %1636 = vmatprep.subr.bf16.mxu0 0
    %1637 = vmatpush2.bf16.msra.mxu0 0
    %1638 = vmatprep.subr.bf16.mxu0 0
    %1639 = vmatpush2.bf16.msra.mxu0 0
    %1640 = vmatprep.subr.bf16.mxu0 0
    %1641 = vmatpush2.bf16.msra.mxu0 0
    %1642 = vmatprep.mubr.bf16.mxu0 0
    %1643 = vmatmul.mubr.bf16.gmra.mxu0 %v1605
    %v1644 = vpop.f32.mrf.mxu0
    %v1645 = vadd.f32 0.0, %v1644
    %v1646 = vpop.f32.mrf.mxu0
    %v1647 = vpop.f32.mrf.mxu0
    %v1648 = vpop.f32.mrf.mxu0
    %1649 = vdwg.mxu0
    %1651 = vrot.lane.b32.xlu0 %v1645, 8
    %v1652 = vpop.permute.xlu0 %1651
    %1654 = vst.msk [vmem:[#allocation2] sm:$0xff] %vm374, %v1652
    %1655 = vrot.lane.b32.xlu0 %v1427, 112
    %v1656 = vpop.permute.xlu0 %1655
    %1657 = vrot.lane.b32.xlu0 %v1427, 80
    %v1658 = vpop.permute.xlu0 %1657
    %v1660 = vsel %vm149, %v1656, 0
    %v1663 = vsel %vm149, %v1658, 0
    %1665 = vmatprep.subr.bf16.mxu0 0
    %1666 = vmatpush1.bf16.xpose.msra.mxu0 0
    %1667 = vmatprep.subr.bf16.mxu0 0
    %1668 = vmatpush1.bf16.xpose.msra.mxu0 0
    %1669 = vmatprep.subr.bf16.mxu0 0
    %1670 = vmatpush1.bf16.xpose.msra.mxu0 0
    %1671 = vmatprep.subr.bf16.mxu0 0
    %1672 = vmatpush1.bf16.xpose.msra.mxu0 0
    %1673 = vmatprep.subr.bf16.mxu0 0
    %1674 = vmatpush1.bf16.xpose.msra.mxu0 0
    %1675 = vmatprep.subr.bf16.mxu0 0
    %1676 = vmatpush1.bf16.xpose.msra.mxu0 0
    %1677 = vmatprep.subr.bf16.mxu0 0
    %1678 = vmatpush1.bf16.xpose.msra.mxu0 0
    %1679 = vmatprep.subr.bf16.mxu0 0
    %1680 = vmatpush1.bf16.xpose.msra.mxu0 %v1663
    %1681 = vmatprep.subr.bf16.mxu0 0
    %1682 = vmatpush2.bf16.xpose.msra.mxu0 0
    %1683 = vmatprep.subr.bf16.mxu0 0
    %1684 = vmatpush2.bf16.xpose.msra.mxu0 0
    %1685 = vmatprep.subr.bf16.mxu0 0
    %1686 = vmatpush2.bf16.xpose.msra.mxu0 0
    %1687 = vmatprep.subr.bf16.mxu0 0
    %1688 = vmatpush2.bf16.xpose.msra.mxu0 0
    %1689 = vmatprep.subr.bf16.mxu0 0
    %1690 = vmatpush2.bf16.xpose.msra.mxu0 0
    %1691 = vmatprep.subr.bf16.mxu0 0
    %1692 = vmatpush2.bf16.xpose.msra.mxu0 0
    %1693 = vmatprep.subr.bf16.mxu0 0
    %1694 = vmatpush2.bf16.xpose.msra.mxu0 0
    %1695 = vmatprep.subr.bf16.mxu0 0
    %1696 = vmatpush2.bf16.xpose.msra.mxu0 0
    %1697 = vmatprep.mubr.bf16.mxu0 0
    %1698 = vmatmul.mubr.bf16.gmra.mxu0 %v1660
    %v1699 = vpop.f32.mrf.mxu0
    %v1700 = vadd.f32 0.0, %v1699
    %v1701 = vpop.f32.mrf.mxu0
    %v1702 = vpop.f32.mrf.mxu0
    %v1703 = vpop.f32.mrf.mxu0
    %1704 = vdwg.mxu0
    %v1705 = vmul.f32 %v1700, 0.35355338
    %v1706 = vsel %vm149, %v1705, -inf
    %1707 = vmax.xlane.f32.xlu0 %v1706
    %v1708 = vpop.xlane.xlu0 %1707
    %v1709 = vsub.f32 %v1705, %v1708
    %v1710 = vmul.f32 %v1709, 1.442695
    %v1711 = vpow.pop %v1710
    %v1712 = vsel %vm149, %v1711, 0.0
    %1713 = vadd.xlane.f32.xlu0 %v1712
    %v1714 = vpop.xlane.xlu0 %1713
    %v1715 = vrcp.pop %v1714
    %v1716 = vmul.f32 %v1711, %v1715
    %v1717 = vpack.c.bf16 %v1716, %v1716
    %1718 = vrot.lane.b32.xlu0 %v1427, 48
    %v1719 = vpop.permute.xlu0 %1718
    %v1721 = vsel %vm149, %v1717, 0
    %v1724 = vsel %vm214, %v1719, 0
    %1726 = vmatprep.subr.bf16.mxu0 0
    %1727 = vmatpush1.bf16.msra.mxu0 0
    %1728 = vmatprep.subr.bf16.mxu0 0
    %1729 = vmatpush1.bf16.msra.mxu0 0
    %1730 = vmatprep.subr.bf16.mxu0 0
    %1731 = vmatpush1.bf16.msra.mxu0 0
    %1732 = vmatprep.subr.bf16.mxu0 0
    %1733 = vmatpush1.bf16.msra.mxu0 0
    %1734 = vmatprep.subr.bf16.mxu0 0
    %1735 = vmatpush1.bf16.msra.mxu0 0
    %1736 = vmatprep.subr.bf16.mxu0 0
    %1737 = vmatpush1.bf16.msra.mxu0 0
    %1738 = vmatprep.subr.bf16.mxu0 0
    %1739 = vmatpush1.bf16.msra.mxu0 0
    %1740 = vmatprep.subr.bf16.mxu0 0
    %1741 = vmatpush1.bf16.msra.mxu0 %v1724
    %1742 = vmatprep.subr.bf16.mxu0 0
    %1743 = vmatpush2.bf16.msra.mxu0 0
    %1744 = vmatprep.subr.bf16.mxu0 0
    %1745 = vmatpush2.bf16.msra.mxu0 0
    %1746 = vmatprep.subr.bf16.mxu0 0
    %1747 = vmatpush2.bf16.msra.mxu0 0
    %1748 = vmatprep.subr.bf16.mxu0 0
    %1749 = vmatpush2.bf16.msra.mxu0 0
    %1750 = vmatprep.subr.bf16.mxu0 0
    %1751 = vmatpush2.bf16.msra.mxu0 0
    %1752 = vmatprep.subr.bf16.mxu0 0
    %1753 = vmatpush2.bf16.msra.mxu0 0
    %1754 = vmatprep.subr.bf16.mxu0 0
    %1755 = vmatpush2.bf16.msra.mxu0 0
    %1756 = vmatprep.subr.bf16.mxu0 0
    %1757 = vmatpush2.bf16.msra.mxu0 0
    %1758 = vmatprep.mubr.bf16.mxu0 0
    %1759 = vmatmul.mubr.bf16.gmra.mxu0 %v1721
    %v1760 = vpop.f32.mrf.mxu0
    %v1761 = vadd.f32 0.0, %v1760
    %v1762 = vpop.f32.mrf.mxu0
    %v1763 = vpop.f32.mrf.mxu0
    %v1764 = vpop.f32.mrf.mxu0
    %1765 = vdwg.mxu0
    %1767 = vrot.lane.b32.xlu0 %v1761, 16
    %v1768 = vpop.permute.xlu0 %1767
    %1770 = vst.msk [vmem:[#allocation2] sm:$0xff] %vm491, %v1768
    %1771 = vrot.lane.b32.xlu0 %v1427, 104
    %v1772 = vpop.permute.xlu0 %1771
    %1773 = vrot.lane.b32.xlu0 %v1427, 72
    %v1774 = vpop.permute.xlu0 %1773
    %v1776 = vsel %vm149, %v1772, 0
    %v1779 = vsel %vm149, %v1774, 0
    %1781 = vmatprep.subr.bf16.mxu0 0
    %1782 = vmatpush1.bf16.xpose.msra.mxu0 0
    %1783 = vmatprep.subr.bf16.mxu0 0
    %1784 = vmatpush1.bf16.xpose.msra.mxu0 0
    %1785 = vmatprep.subr.bf16.mxu0 0
    %1786 = vmatpush1.bf16.xpose.msra.mxu0 0
    %1787 = vmatprep.subr.bf16.mxu0 0
    %1788 = vmatpush1.bf16.xpose.msra.mxu0 0
    %1789 = vmatprep.subr.bf16.mxu0 0
    %1790 = vmatpush1.bf16.xpose.msra.mxu0 0
    %1791 = vmatprep.subr.bf16.mxu0 0
    %1792 = vmatpush1.bf16.xpose.msra.mxu0 0
    %1793 = vmatprep.subr.bf16.mxu0 0
    %1794 = vmatpush1.bf16.xpose.msra.mxu0 0
    %1795 = vmatprep.subr.bf16.mxu0 0
    %1796 = vmatpush1.bf16.xpose.msra.mxu0 %v1779
    %1797 = vmatprep.subr.bf16.mxu0 0
    %1798 = vmatpush2.bf16.xpose.msra.mxu0 0
    %1799 = vmatprep.subr.bf16.mxu0 0
    %1800 = vmatpush2.bf16.xpose.msra.mxu0 0
    %1801 = vmatprep.subr.bf16.mxu0 0
    %1802 = vmatpush2.bf16.xpose.msra.mxu0 0
    %1803 = vmatprep.subr.bf16.mxu0 0
    %1804 = vmatpush2.bf16.xpose.msra.mxu0 0
    %1805 = vmatprep.subr.bf16.mxu0 0
    %1806 = vmatpush2.bf16.xpose.msra.mxu0 0
    %1807 = vmatprep.subr.bf16.mxu0 0
    %1808 = vmatpush2.bf16.xpose.msra.mxu0 0
    %1809 = vmatprep.subr.bf16.mxu0 0
    %1810 = vmatpush2.bf16.xpose.msra.mxu0 0
    %1811 = vmatprep.subr.bf16.mxu0 0
    %1812 = vmatpush2.bf16.xpose.msra.mxu0 0
    %1813 = vmatprep.mubr.bf16.mxu0 0
    %1814 = vmatmul.mubr.bf16.gmra.mxu0 %v1776
    %v1815 = vpop.f32.mrf.mxu0
    %v1816 = vadd.f32 0.0, %v1815
    %v1817 = vpop.f32.mrf.mxu0
    %v1818 = vpop.f32.mrf.mxu0
    %v1819 = vpop.f32.mrf.mxu0
    %1820 = vdwg.mxu0
    %v1821 = vmul.f32 %v1816, 0.35355338
    %v1822 = vsel %vm149, %v1821, -inf
    %1823 = vmax.xlane.f32.xlu0 %v1822
    %v1824 = vpop.xlane.xlu0 %1823
    %v1825 = vsub.f32 %v1821, %v1824
    %v1826 = vmul.f32 %v1825, 1.442695
    %v1827 = vpow.pop %v1826
    %v1828 = vsel %vm149, %v1827, 0.0
    %1829 = vadd.xlane.f32.xlu0 %v1828
    %v1830 = vpop.xlane.xlu0 %1829
    %v1831 = vrcp.pop %v1830
    %v1832 = vmul.f32 %v1827, %v1831
    %v1833 = vpack.c.bf16 %v1832, %v1832
    %1834 = vrot.lane.b32.xlu0 %v1427, 40
    %v1835 = vpop.permute.xlu0 %1834
    %v1837 = vsel %vm149, %v1833, 0
    %v1840 = vsel %vm214, %v1835, 0
    %1842 = vmatprep.subr.bf16.mxu0 0
    %1843 = vmatpush1.bf16.msra.mxu0 0
    %1844 = vmatprep.subr.bf16.mxu0 0
    %1845 = vmatpush1.bf16.msra.mxu0 0
    %1846 = vmatprep.subr.bf16.mxu0 0
    %1847 = vmatpush1.bf16.msra.mxu0 0
    %1848 = vmatprep.subr.bf16.mxu0 0
    %1849 = vmatpush1.bf16.msra.mxu0 0
    %1850 = vmatprep.subr.bf16.mxu0 0
    %1851 = vmatpush1.bf16.msra.mxu0 0
    %1852 = vmatprep.subr.bf16.mxu0 0
    %1853 = vmatpush1.bf16.msra.mxu0 0
    %1854 = vmatprep.subr.bf16.mxu0 0
    %1855 = vmatpush1.bf16.msra.mxu0 0
    %1856 = vmatprep.subr.bf16.mxu0 0
    %1857 = vmatpush1.bf16.msra.mxu0 %v1840
    %1858 = vmatprep.subr.bf16.mxu0 0
    %1859 = vmatpush2.bf16.msra.mxu0 0
    %1860 = vmatprep.subr.bf16.mxu0 0
    %1861 = vmatpush2.bf16.msra.mxu0 0
    %1862 = vmatprep.subr.bf16.mxu0 0
    %1863 = vmatpush2.bf16.msra.mxu0 0
    %1864 = vmatprep.subr.bf16.mxu0 0
    %1865 = vmatpush2.bf16.msra.mxu0 0
    %1866 = vmatprep.subr.bf16.mxu0 0
    %1867 = vmatpush2.bf16.msra.mxu0 0
    %1868 = vmatprep.subr.bf16.mxu0 0
    %1869 = vmatpush2.bf16.msra.mxu0 0
    %1870 = vmatprep.subr.bf16.mxu0 0
    %1871 = vmatpush2.bf16.msra.mxu0 0
    %1872 = vmatprep.subr.bf16.mxu0 0
    %1873 = vmatpush2.bf16.msra.mxu0 0
    %1874 = vmatprep.mubr.bf16.mxu0 0
    %1875 = vmatmul.mubr.bf16.gmra.mxu0 %v1837
    %v1876 = vpop.f32.mrf.mxu0
    %v1877 = vadd.f32 0.0, %v1876
    %v1878 = vpop.f32.mrf.mxu0
    %v1879 = vpop.f32.mrf.mxu0
    %v1880 = vpop.f32.mrf.mxu0
    %1881 = vdwg.mxu0
    %1883 = vrot.lane.b32.xlu0 %v1877, 24
    %v1884 = vpop.permute.xlu0 %1883
    %1886 = vst.msk [vmem:[#allocation2] sm:$0xff] %vm608, %v1884
    %v1887 = vrot.slane %v1427, 4
    %1888 = vrot.lane.b32.xlu0 %v1887, 96
    %v1889 = vpop.permute.xlu0 %1888
    %v1891 = vsel %vm149, %v1887, 0
    %v1894 = vsel %vm149, %v1889, 0
    %1896 = vmatprep.subr.bf16.mxu0 0
    %1897 = vmatpush1.bf16.xpose.msra.mxu0 0
    %1898 = vmatprep.subr.bf16.mxu0 0
    %1899 = vmatpush1.bf16.xpose.msra.mxu0 0
    %1900 = vmatprep.subr.bf16.mxu0 0
    %1901 = vmatpush1.bf16.xpose.msra.mxu0 0
    %1902 = vmatprep.subr.bf16.mxu0 0
    %1903 = vmatpush1.bf16.xpose.msra.mxu0 0
    %1904 = vmatprep.subr.bf16.mxu0 0
    %1905 = vmatpush1.bf16.xpose.msra.mxu0 0
    %1906 = vmatprep.subr.bf16.mxu0 0
    %1907 = vmatpush1.bf16.xpose.msra.mxu0 0
    %1908 = vmatprep.subr.bf16.mxu0 0
    %1909 = vmatpush1.bf16.xpose.msra.mxu0 0
    %1910 = vmatprep.subr.bf16.mxu0 0
    %1911 = vmatpush1.bf16.xpose.msra.mxu0 %v1894
    %1912 = vmatprep.subr.bf16.mxu0 0
    %1913 = vmatpush2.bf16.xpose.msra.mxu0 0
    %1914 = vmatprep.subr.bf16.mxu0 0
    %1915 = vmatpush2.bf16.xpose.msra.mxu0 0
    %1916 = vmatprep.subr.bf16.mxu0 0
    %1917 = vmatpush2.bf16.xpose.msra.mxu0 0
    %1918 = vmatprep.subr.bf16.mxu0 0
    %1919 = vmatpush2.bf16.xpose.msra.mxu0 0
    %1920 = vmatprep.subr.bf16.mxu0 0
    %1921 = vmatpush2.bf16.xpose.msra.mxu0 0
    %1922 = vmatprep.subr.bf16.mxu0 0
    %1923 = vmatpush2.bf16.xpose.msra.mxu0 0
    %1924 = vmatprep.subr.bf16.mxu0 0
    %1925 = vmatpush2.bf16.xpose.msra.mxu0 0
    %1926 = vmatprep.subr.bf16.mxu0 0
    %1927 = vmatpush2.bf16.xpose.msra.mxu0 0
    %1928 = vmatprep.mubr.bf16.mxu0 0
    %1929 = vmatmul.mubr.bf16.gmra.mxu0 %v1891
    %v1930 = vpop.f32.mrf.mxu0
    %v1931 = vadd.f32 0.0, %v1930
    %v1932 = vpop.f32.mrf.mxu0
    %v1933 = vpop.f32.mrf.mxu0
    %v1934 = vpop.f32.mrf.mxu0
    %1935 = vdwg.mxu0
    %v1936 = vmul.f32 %v1931, 0.35355338
    %v1937 = vsel %vm149, %v1936, -inf
    %1938 = vmax.xlane.f32.xlu0 %v1937
    %v1939 = vpop.xlane.xlu0 %1938
    %v1940 = vsub.f32 %v1936, %v1939
    %v1941 = vmul.f32 %v1940, 1.442695
    %v1942 = vpow.pop %v1941
    %v1943 = vsel %vm149, %v1942, 0.0
    %1944 = vadd.xlane.f32.xlu0 %v1943
    %v1945 = vpop.xlane.xlu0 %1944
    %v1946 = vrcp.pop %v1945
    %v1947 = vmul.f32 %v1942, %v1946
    %v1948 = vpack.c.bf16 %v1947, %v1947
    %1949 = vrot.lane.b32.xlu0 %v1887, 64
    %v1950 = vpop.permute.xlu0 %1949
    %v1952 = vsel %vm149, %v1948, 0
    %v1955 = vsel %vm214, %v1950, 0
    %1957 = vmatprep.subr.bf16.mxu0 0
    %1958 = vmatpush1.bf16.msra.mxu0 0
    %1959 = vmatprep.subr.bf16.mxu0 0
    %1960 = vmatpush1.bf16.msra.mxu0 0
    %1961 = vmatprep.subr.bf16.mxu0 0
    %1962 = vmatpush1.bf16.msra.mxu0 0
    %1963 = vmatprep.subr.bf16.mxu0 0
    %1964 = vmatpush1.bf16.msra.mxu0 0
    %1965 = vmatprep.subr.bf16.mxu0 0
    %1966 = vmatpush1.bf16.msra.mxu0 0
    %1967 = vmatprep.subr.bf16.mxu0 0
    %1968 = vmatpush1.bf16.msra.mxu0 0
    %1969 = vmatprep.subr.bf16.mxu0 0
    %1970 = vmatpush1.bf16.msra.mxu0 0
    %1971 = vmatprep.subr.bf16.mxu0 0
    %1972 = vmatpush1.bf16.msra.mxu0 %v1955
    %1973 = vmatprep.subr.bf16.mxu0 0
    %1974 = vmatpush2.bf16.msra.mxu0 0
    %1975 = vmatprep.subr.bf16.mxu0 0
    %1976 = vmatpush2.bf16.msra.mxu0 0
    %1977 = vmatprep.subr.bf16.mxu0 0
    %1978 = vmatpush2.bf16.msra.mxu0 0
    %1979 = vmatprep.subr.bf16.mxu0 0
    %1980 = vmatpush2.bf16.msra.mxu0 0
    %1981 = vmatprep.subr.bf16.mxu0 0
    %1982 = vmatpush2.bf16.msra.mxu0 0
    %1983 = vmatprep.subr.bf16.mxu0 0
    %1984 = vmatpush2.bf16.msra.mxu0 0
    %1985 = vmatprep.subr.bf16.mxu0 0
    %1986 = vmatpush2.bf16.msra.mxu0 0
    %1987 = vmatprep.subr.bf16.mxu0 0
    %1988 = vmatpush2.bf16.msra.mxu0 0
    %1989 = vmatprep.mubr.bf16.mxu0 0
    %1990 = vmatmul.mubr.bf16.gmra.mxu0 %v1952
    %v1991 = vpop.f32.mrf.mxu0
    %v1992 = vadd.f32 0.0, %v1991
    %v1993 = vpop.f32.mrf.mxu0
    %v1994 = vpop.f32.mrf.mxu0
    %v1995 = vpop.f32.mrf.mxu0
    %1996 = vdwg.mxu0
    %1997 = vst.msk [vmem:[#allocation2 + $0x8] sm:$0xff] %vm149, %v1992
    %1998 = vrot.lane.b32.xlu0 %v1887, 120
    %v1999 = vpop.permute.xlu0 %1998
    %2000 = vrot.lane.b32.xlu0 %v1887, 88
    %v2001 = vpop.permute.xlu0 %2000
    %v2003 = vsel %vm149, %v1999, 0
    %v2006 = vsel %vm149, %v2001, 0
    %2008 = vmatprep.subr.bf16.mxu0 0
    %2009 = vmatpush1.bf16.xpose.msra.mxu0 0
    %2010 = vmatprep.subr.bf16.mxu0 0
    %2011 = vmatpush1.bf16.xpose.msra.mxu0 0
    %2012 = vmatprep.subr.bf16.mxu0 0
    %2013 = vmatpush1.bf16.xpose.msra.mxu0 0
    %2014 = vmatprep.subr.bf16.mxu0 0
    %2015 = vmatpush1.bf16.xpose.msra.mxu0 0
    %2016 = vmatprep.subr.bf16.mxu0 0
    %2017 = vmatpush1.bf16.xpose.msra.mxu0 0
    %2018 = vmatprep.subr.bf16.mxu0 0
    %2019 = vmatpush1.bf16.xpose.msra.mxu0 0
    %2020 = vmatprep.subr.bf16.mxu0 0
    %2021 = vmatpush1.bf16.xpose.msra.mxu0 0
    %2022 = vmatprep.subr.bf16.mxu0 0
    %2023 = vmatpush1.bf16.xpose.msra.mxu0 %v2006
    %2024 = vmatprep.subr.bf16.mxu0 0
    %2025 = vmatpush2.bf16.xpose.msra.mxu0 0
    %2026 = vmatprep.subr.bf16.mxu0 0
    %2027 = vmatpush2.bf16.xpose.msra.mxu0 0
    %2028 = vmatprep.subr.bf16.mxu0 0
    %2029 = vmatpush2.bf16.xpose.msra.mxu0 0
    %2030 = vmatprep.subr.bf16.mxu0 0
    %2031 = vmatpush2.bf16.xpose.msra.mxu0 0
    %2032 = vmatprep.subr.bf16.mxu0 0
    %2033 = vmatpush2.bf16.xpose.msra.mxu0 0
    %2034 = vmatprep.subr.bf16.mxu0 0
    %2035 = vmatpush2.bf16.xpose.msra.mxu0 0
    %2036 = vmatprep.subr.bf16.mxu0 0
    %2037 = vmatpush2.bf16.xpose.msra.mxu0 0
    %2038 = vmatprep.subr.bf16.mxu0 0
    %2039 = vmatpush2.bf16.xpose.msra.mxu0 0
    %2040 = vmatprep.mubr.bf16.mxu0 0
    %2041 = vmatmul.mubr.bf16.gmra.mxu0 %v2003
    %v2042 = vpop.f32.mrf.mxu0
    %v2043 = vadd.f32 0.0, %v2042
    %v2044 = vpop.f32.mrf.mxu0
    %v2045 = vpop.f32.mrf.mxu0
    %v2046 = vpop.f32.mrf.mxu0
    %2047 = vdwg.mxu0
    %v2048 = vmul.f32 %v2043, 0.35355338
    %v2049 = vsel %vm149, %v2048, -inf
    %2050 = vmax.xlane.f32.xlu0 %v2049
    %v2051 = vpop.xlane.xlu0 %2050
    %v2052 = vsub.f32 %v2048, %v2051
    %v2053 = vmul.f32 %v2052, 1.442695
    %v2054 = vpow.pop %v2053
    %v2055 = vsel %vm149, %v2054, 0.0
    %2056 = vadd.xlane.f32.xlu0 %v2055
    %v2057 = vpop.xlane.xlu0 %2056
    %v2058 = vrcp.pop %v2057
    %v2059 = vmul.f32 %v2054, %v2058
    %v2060 = vpack.c.bf16 %v2059, %v2059
    %2061 = vrot.lane.b32.xlu0 %v1887, 56
    %v2062 = vpop.permute.xlu0 %2061
    %v2064 = vsel %vm149, %v2060, 0
    %v2067 = vsel %vm214, %v2062, 0
    %2069 = vmatprep.subr.bf16.mxu0 0
    %2070 = vmatpush1.bf16.msra.mxu0 0
    %2071 = vmatprep.subr.bf16.mxu0 0
    %2072 = vmatpush1.bf16.msra.mxu0 0
    %2073 = vmatprep.subr.bf16.mxu0 0
    %2074 = vmatpush1.bf16.msra.mxu0 0
    %2075 = vmatprep.subr.bf16.mxu0 0
    %2076 = vmatpush1.bf16.msra.mxu0 0
    %2077 = vmatprep.subr.bf16.mxu0 0
    %2078 = vmatpush1.bf16.msra.mxu0 0
    %2079 = vmatprep.subr.bf16.mxu0 0
    %2080 = vmatpush1.bf16.msra.mxu0 0
    %2081 = vmatprep.subr.bf16.mxu0 0
    %2082 = vmatpush1.bf16.msra.mxu0 0
    %2083 = vmatprep.subr.bf16.mxu0 0
    %2084 = vmatpush1.bf16.msra.mxu0 %v2067
    %2085 = vmatprep.subr.bf16.mxu0 0
    %2086 = vmatpush2.bf16.msra.mxu0 0
    %2087 = vmatprep.subr.bf16.mxu0 0
    %2088 = vmatpush2.bf16.msra.mxu0 0
    %2089 = vmatprep.subr.bf16.mxu0 0
    %2090 = vmatpush2.bf16.msra.mxu0 0
    %2091 = vmatprep.subr.bf16.mxu0 0
    %2092 = vmatpush2.bf16.msra.mxu0 0
    %2093 = vmatprep.subr.bf16.mxu0 0
    %2094 = vmatpush2.bf16.msra.mxu0 0
    %2095 = vmatprep.subr.bf16.mxu0 0
    %2096 = vmatpush2.bf16.msra.mxu0 0
    %2097 = vmatprep.subr.bf16.mxu0 0
    %2098 = vmatpush2.bf16.msra.mxu0 0
    %2099 = vmatprep.subr.bf16.mxu0 0
    %2100 = vmatpush2.bf16.msra.mxu0 0
    %2101 = vmatprep.mubr.bf16.mxu0 0
    %2102 = vmatmul.mubr.bf16.gmra.mxu0 %v2064
    %v2103 = vpop.f32.mrf.mxu0
    %v2104 = vadd.f32 0.0, %v2103
    %v2105 = vpop.f32.mrf.mxu0
    %v2106 = vpop.f32.mrf.mxu0
    %v2107 = vpop.f32.mrf.mxu0
    %2108 = vdwg.mxu0
    %2110 = vrot.lane.b32.xlu0 %v2104, 8
    %v2111 = vpop.permute.xlu0 %2110
    %2113 = vst.msk [vmem:[#allocation2 + $0x8] sm:$0xff] %vm374, %v2111
    %2114 = vrot.lane.b32.xlu0 %v1887, 112
    %v2115 = vpop.permute.xlu0 %2114
    %2116 = vrot.lane.b32.xlu0 %v1887, 80
    %v2117 = vpop.permute.xlu0 %2116
    %v2119 = vsel %vm149, %v2115, 0
    %v2122 = vsel %vm149, %v2117, 0
    %2124 = vmatprep.subr.bf16.mxu0 0
    %2125 = vmatpush1.bf16.xpose.msra.mxu0 0
    %2126 = vmatprep.subr.bf16.mxu0 0
    %2127 = vmatpush1.bf16.xpose.msra.mxu0 0
    %2128 = vmatprep.subr.bf16.mxu0 0
    %2129 = vmatpush1.bf16.xpose.msra.mxu0 0
    %2130 = vmatprep.subr.bf16.mxu0 0
    %2131 = vmatpush1.bf16.xpose.msra.mxu0 0
    %2132 = vmatprep.subr.bf16.mxu0 0
    %2133 = vmatpush1.bf16.xpose.msra.mxu0 0
    %2134 = vmatprep.subr.bf16.mxu0 0
    %2135 = vmatpush1.bf16.xpose.msra.mxu0 0
    %2136 = vmatprep.subr.bf16.mxu0 0
    %2137 = vmatpush1.bf16.xpose.msra.mxu0 0
    %2138 = vmatprep.subr.bf16.mxu0 0
    %2139 = vmatpush1.bf16.xpose.msra.mxu0 %v2122
    %2140 = vmatprep.subr.bf16.mxu0 0
    %2141 = vmatpush2.bf16.xpose.msra.mxu0 0
    %2142 = vmatprep.subr.bf16.mxu0 0
    %2143 = vmatpush2.bf16.xpose.msra.mxu0 0
    %2144 = vmatprep.subr.bf16.mxu0 0
    %2145 = vmatpush2.bf16.xpose.msra.mxu0 0
    %2146 = vmatprep.subr.bf16.mxu0 0
    %2147 = vmatpush2.bf16.xpose.msra.mxu0 0
    %2148 = vmatprep.subr.bf16.mxu0 0
    %2149 = vmatpush2.bf16.xpose.msra.mxu0 0
    %2150 = vmatprep.subr.bf16.mxu0 0
    %2151 = vmatpush2.bf16.xpose.msra.mxu0 0
    %2152 = vmatprep.subr.bf16.mxu0 0
    %2153 = vmatpush2.bf16.xpose.msra.mxu0 0
    %2154 = vmatprep.subr.bf16.mxu0 0
    %2155 = vmatpush2.bf16.xpose.msra.mxu0 0
    %2156 = vmatprep.mubr.bf16.mxu0 0
    %2157 = vmatmul.mubr.bf16.gmra.mxu0 %v2119
    %v2158 = vpop.f32.mrf.mxu0
    %v2159 = vadd.f32 0.0, %v2158
    %v2160 = vpop.f32.mrf.mxu0
    %v2161 = vpop.f32.mrf.mxu0
    %v2162 = vpop.f32.mrf.mxu0
    %2163 = vdwg.mxu0
    %v2164 = vmul.f32 %v2159, 0.35355338
    %v2165 = vsel %vm149, %v2164, -inf
    %2166 = vmax.xlane.f32.xlu0 %v2165
    %v2167 = vpop.xlane.xlu0 %2166
    %v2168 = vsub.f32 %v2164, %v2167
    %v2169 = vmul.f32 %v2168, 1.442695
    %v2170 = vpow.pop %v2169
    %v2171 = vsel %vm149, %v2170, 0.0
    %2172 = vadd.xlane.f32.xlu0 %v2171
    %v2173 = vpop.xlane.xlu0 %2172
    %v2174 = vrcp.pop %v2173
    %v2175 = vmul.f32 %v2170, %v2174
    %v2176 = vpack.c.bf16 %v2175, %v2175
    %2177 = vrot.lane.b32.xlu0 %v1887, 48
    %v2178 = vpop.permute.xlu0 %2177
    %v2180 = vsel %vm149, %v2176, 0
    %v2183 = vsel %vm214, %v2178, 0
    %2185 = vmatprep.subr.bf16.mxu0 0
    %2186 = vmatpush1.bf16.msra.mxu0 0
    %2187 = vmatprep.subr.bf16.mxu0 0
    %2188 = vmatpush1.bf16.msra.mxu0 0
    %2189 = vmatprep.subr.bf16.mxu0 0
    %2190 = vmatpush1.bf16.msra.mxu0 0
    %2191 = vmatprep.subr.bf16.mxu0 0
    %2192 = vmatpush1.bf16.msra.mxu0 0
    %2193 = vmatprep.subr.bf16.mxu0 0
    %2194 = vmatpush1.bf16.msra.mxu0 0
    %2195 = vmatprep.subr.bf16.mxu0 0
    %2196 = vmatpush1.bf16.msra.mxu0 0
    %2197 = vmatprep.subr.bf16.mxu0 0
    %2198 = vmatpush1.bf16.msra.mxu0 0
    %2199 = vmatprep.subr.bf16.mxu0 0
    %2200 = vmatpush1.bf16.msra.mxu0 %v2183
    %2201 = vmatprep.subr.bf16.mxu0 0
    %2202 = vmatpush2.bf16.msra.mxu0 0
    %2203 = vmatprep.subr.bf16.mxu0 0
    %2204 = vmatpush2.bf16.msra.mxu0 0
    %2205 = vmatprep.subr.bf16.mxu0 0
    %2206 = vmatpush2.bf16.msra.mxu0 0
    %2207 = vmatprep.subr.bf16.mxu0 0
    %2208 = vmatpush2.bf16.msra.mxu0 0
    %2209 = vmatprep.subr.bf16.mxu0 0
    %2210 = vmatpush2.bf16.msra.mxu0 0
    %2211 = vmatprep.subr.bf16.mxu0 0
    %2212 = vmatpush2.bf16.msra.mxu0 0
    %2213 = vmatprep.subr.bf16.mxu0 0
    %2214 = vmatpush2.bf16.msra.mxu0 0
    %2215 = vmatprep.subr.bf16.mxu0 0
    %2216 = vmatpush2.bf16.msra.mxu0 0
    %2217 = vmatprep.mubr.bf16.mxu0 0
    %2218 = vmatmul.mubr.bf16.gmra.mxu0 %v2180
    %v2219 = vpop.f32.mrf.mxu0
    %v2220 = vadd.f32 0.0, %v2219
    %v2221 = vpop.f32.mrf.mxu0
    %v2222 = vpop.f32.mrf.mxu0
    %v2223 = vpop.f32.mrf.mxu0
    %2224 = vdwg.mxu0
    %2226 = vrot.lane.b32.xlu0 %v2220, 16
    %v2227 = vpop.permute.xlu0 %2226
    %2229 = vst.msk [vmem:[#allocation2 + $0x8] sm:$0xff] %vm491, %v2227
    %2230 = vrot.lane.b32.xlu0 %v1887, 104
    %v2231 = vpop.permute.xlu0 %2230
    %2232 = vrot.lane.b32.xlu0 %v1887, 72
    %v2233 = vpop.permute.xlu0 %2232
    %v2235 = vsel %vm149, %v2231, 0
    %v2238 = vsel %vm149, %v2233, 0
    %2240 = vmatprep.subr.bf16.mxu0 0
    %2241 = vmatpush1.bf16.xpose.msra.mxu0 0
    %2242 = vmatprep.subr.bf16.mxu0 0
    %2243 = vmatpush1.bf16.xpose.msra.mxu0 0
    %2244 = vmatprep.subr.bf16.mxu0 0
    %2245 = vmatpush1.bf16.xpose.msra.mxu0 0
    %2246 = vmatprep.subr.bf16.mxu0 0
    %2247 = vmatpush1.bf16.xpose.msra.mxu0 0
    %2248 = vmatprep.subr.bf16.mxu0 0
    %2249 = vmatpush1.bf16.xpose.msra.mxu0 0
    %2250 = vmatprep.subr.bf16.mxu0 0
    %2251 = vmatpush1.bf16.xpose.msra.mxu0 0
    %2252 = vmatprep.subr.bf16.mxu0 0
    %2253 = vmatpush1.bf16.xpose.msra.mxu0 0
    %2254 = vmatprep.subr.bf16.mxu0 0
    %2255 = vmatpush1.bf16.xpose.msra.mxu0 %v2238
    %2256 = vmatprep.subr.bf16.mxu0 0
    %2257 = vmatpush2.bf16.xpose.msra.mxu0 0
    %2258 = vmatprep.subr.bf16.mxu0 0
    %2259 = vmatpush2.bf16.xpose.msra.mxu0 0
    %2260 = vmatprep.subr.bf16.mxu0 0
    %2261 = vmatpush2.bf16.xpose.msra.mxu0 0
    %2262 = vmatprep.subr.bf16.mxu0 0
    %2263 = vmatpush2.bf16.xpose.msra.mxu0 0
    %2264 = vmatprep.subr.bf16.mxu0 0
    %2265 = vmatpush2.bf16.xpose.msra.mxu0 0
    %2266 = vmatprep.subr.bf16.mxu0 0
    %2267 = vmatpush2.bf16.xpose.msra.mxu0 0
    %2268 = vmatprep.subr.bf16.mxu0 0
    %2269 = vmatpush2.bf16.xpose.msra.mxu0 0
    %2270 = vmatprep.subr.bf16.mxu0 0
    %2271 = vmatpush2.bf16.xpose.msra.mxu0 0
    %2272 = vmatprep.mubr.bf16.mxu0 0
    %2273 = vmatmul.mubr.bf16.gmra.mxu0 %v2235
    %v2274 = vpop.f32.mrf.mxu0
    %v2275 = vadd.f32 0.0, %v2274
    %v2276 = vpop.f32.mrf.mxu0
    %v2277 = vpop.f32.mrf.mxu0
    %v2278 = vpop.f32.mrf.mxu0
    %2279 = vdwg.mxu0
    %v2280 = vmul.f32 %v2275, 0.35355338
    %v2281 = vsel %vm149, %v2280, -inf
    %2282 = vmax.xlane.f32.xlu0 %v2281
    %v2283 = vpop.xlane.xlu0 %2282
    %v2284 = vsub.f32 %v2280, %v2283
    %v2285 = vmul.f32 %v2284, 1.442695
    %v2286 = vpow.pop %v2285
    %v2287 = vsel %vm149, %v2286, 0.0
    %2288 = vadd.xlane.f32.xlu0 %v2287
    %v2289 = vpop.xlane.xlu0 %2288
    %v2290 = vrcp.pop %v2289
    %v2291 = vmul.f32 %v2286, %v2290
    %v2292 = vpack.c.bf16 %v2291, %v2291
    %2293 = vrot.lane.b32.xlu0 %v1887, 40
    %v2294 = vpop.permute.xlu0 %2293
    %v2296 = vsel %vm149, %v2292, 0
    %v2299 = vsel %vm214, %v2294, 0
    %2301 = vmatprep.subr.bf16.mxu0 0
    %2302 = vmatpush1.bf16.msra.mxu0 0
    %2303 = vmatprep.subr.bf16.mxu0 0
    %2304 = vmatpush1.bf16.msra.mxu0 0
    %2305 = vmatprep.subr.bf16.mxu0 0
    %2306 = vmatpush1.bf16.msra.mxu0 0
    %2307 = vmatprep.subr.bf16.mxu0 0
    %2308 = vmatpush1.bf16.msra.mxu0 0
    %2309 = vmatprep.subr.bf16.mxu0 0
    %2310 = vmatpush1.bf16.msra.mxu0 0
    %2311 = vmatprep.subr.bf16.mxu0 0
    %2312 = vmatpush1.bf16.msra.mxu0 0
    %2313 = vmatprep.subr.bf16.mxu0 0
    %2314 = vmatpush1.bf16.msra.mxu0 0
    %2315 = vmatprep.subr.bf16.mxu0 0
    %2316 = vmatpush1.bf16.msra.mxu0 %v2299
    %2317 = vmatprep.subr.bf16.mxu0 0
    %2318 = vmatpush2.bf16.msra.mxu0 0
    %2319 = vmatprep.subr.bf16.mxu0 0
    %2320 = vmatpush2.bf16.msra.mxu0 0
    %2321 = vmatprep.subr.bf16.mxu0 0
    %2322 = vmatpush2.bf16.msra.mxu0 0
    %2323 = vmatprep.subr.bf16.mxu0 0
    %2324 = vmatpush2.bf16.msra.mxu0 0
    %2325 = vmatprep.subr.bf16.mxu0 0
    %2326 = vmatpush2.bf16.msra.mxu0 0
    %2327 = vmatprep.subr.bf16.mxu0 0
    %2328 = vmatpush2.bf16.msra.mxu0 0
    %2329 = vmatprep.subr.bf16.mxu0 0
    %2330 = vmatpush2.bf16.msra.mxu0 0
    %2331 = vmatprep.subr.bf16.mxu0 0
    %2332 = vmatpush2.bf16.msra.mxu0 0
    %2333 = vmatprep.mubr.bf16.mxu0 0
    %2334 = vmatmul.mubr.bf16.gmra.mxu0 %v2296
    %v2335 = vpop.f32.mrf.mxu0
    %v2336 = vadd.f32 0.0, %v2335
    %v2337 = vpop.f32.mrf.mxu0
    %v2338 = vpop.f32.mrf.mxu0
    %v2339 = vpop.f32.mrf.mxu0
    %2340 = vdwg.mxu0
    %2342 = vrot.lane.b32.xlu0 %v2336, 24
    %v2343 = vpop.permute.xlu0 %2342
    %2345 = vst.msk [vmem:[#allocation2 + $0x8] sm:$0xff] %vm608, %v2343
    %v2346 = vld [vmem:[#allocation2] sm:$0xff]
    %v2347 = vld [vmem:[#allocation2 + $0x8] sm:$0xff]
    %v2348 = vpack.c.bf16 %v2347, %v2346
    %2349 = vrot.lane.b32.xlu0 %v1379, 32
    %v2350 = vpop.permute.xlu0 %2349
    %2351 = vrot.lane.b32.xlu0 %v1380, 32
    %v2352 = vpop.permute.xlu0 %2351
    %2356 = vrot.lane.b32.xlu0 %v1370, 32
    %v2357 = vpop.permute.xlu0 %2356
    %v2360 = vsel %vm100, %v2348, 0
    %2362 = vmatprep.subr.bf16.mxu0 0
    %2363 = vmatpush1.bf16.msra.mxu0 0
    %2364 = vmatprep.subr.bf16.mxu0 0
    %2365 = vmatpush1.bf16.msra.mxu0 0
    %2366 = vmatprep.subr.bf16.mxu0 0
    %2367 = vmatpush1.bf16.msra.mxu0 0
    %2368 = vmatprep.subr.bf16.mxu0 0
    %2369 = vmatpush1.bf16.msra.mxu0 0
    %2370 = vmatprep.subr.bf16.mxu0 0
    %2371 = vmatpush1.bf16.msra.mxu0 0
    %2372 = vmatprep.subr.bf16.mxu0 0
    %2373 = vmatpush1.bf16.msra.mxu0 0
    %2374 = vmatprep.subr.bf16.mxu0 0
    %2375 = vmatpush1.bf16.msra.mxu0 %v2352
    %2376 = vmatprep.subr.bf16.mxu0 0
    %2377 = vmatpush1.bf16.msra.mxu0 %v2350
    %2378 = vmatprep.subr.bf16.mxu0 0
    %2379 = vmatpush2.bf16.msra.mxu0 0
    %2380 = vmatprep.subr.bf16.mxu0 0
    %2381 = vmatpush2.bf16.msra.mxu0 0
    %2382 = vmatprep.subr.bf16.mxu0 0
    %2383 = vmatpush2.bf16.msra.mxu0 0
    %2384 = vmatprep.subr.bf16.mxu0 0
    %2385 = vmatpush2.bf16.msra.mxu0 0
    %2386 = vmatprep.subr.bf16.mxu0 0
    %2387 = vmatpush2.bf16.msra.mxu0 0
    %2388 = vmatprep.subr.bf16.mxu0 0
    %2389 = vmatpush2.bf16.msra.mxu0 0
    %2390 = vmatprep.subr.bf16.mxu0 0
    %2391 = vmatpush2.bf16.msra.mxu0 0
    %2392 = vmatprep.subr.bf16.mxu0 0
    %2393 = vmatpush2.bf16.msra.mxu0 0
    %2394 = vmatprep.mubr.bf16.mxu0 0
    %2395 = vmatmul.mubr.bf16.gmra.mxu0 %v2360
    %v2396 = vpop.f32.mrf.mxu0
    %v2397 = vadd.f32 %v2357, %v2396
    %v2398 = vpop.f32.mrf.mxu0
    %v2399 = vpop.f32.mrf.mxu0
    %v2400 = vadd.f32 %v2357, %v2399
    %v2401 = vpop.f32.mrf.mxu0
    %2402 = vdwg.mxu0
    %v2403 = vadd.f32 %v1348, %v2397
    %v2404 = vadd.f32 %v1349, %v2400
    %v2405 = vsel %vm100, %v2403, 0.0
    %2406 = vadd.xlane.f32.xlu0 %v2405
    %v2407 = vpop.xlane.xlu0 %2406
    %v2408 = vsel %vm100, %v2404, 0.0
    %2409 = vadd.xlane.f32.xlu0 %v2408
    %v2410 = vpop.xlane.xlu0 %2409
    %v2411 = vmul.f32 %v2407, %v1134
    %v2412 = vmul.f32 %v2410, %v1134
    %v2413 = vmul.f32 %v2403, %v2403
    %v2414 = vmul.f32 %v2404, %v2404
    %v2415 = vsel %vm100, %v2413, 0.0
    %2416 = vadd.xlane.f32.xlu0 %v2415
    %v2417 = vpop.xlane.xlu0 %2416
    %v2418 = vsel %vm100, %v2414, 0.0
    %2419 = vadd.xlane.f32.xlu0 %v2418
    %v2420 = vpop.xlane.xlu0 %2419
    %v2421 = vmul.f32 %v2417, %v1134
    %v2422 = vmul.f32 %v2420, %v1134
    %v2423 = vsub.f32 %v2403, %v2411
    %v2424 = vsub.f32 %v2404, %v2412
    %v2425 = vmul.f32 %v2411, %v2411
    %v2426 = vmul.f32 %v2412, %v2412
    %v2427 = vsub.f32 %v2421, %v2425
    %v2428 = vsub.f32 %v2422, %v2426
    %v2429 = vadd.f32 %v2427, 1e-05
    %v2430 = vadd.f32 %v2428, 1e-05
    %v2431 = vrsqrt.pop %v2429
    %v2432 = vrsqrt.pop %v2430
    %v2433 = vmul.f32 %v2423, %v2431
    %v2434 = vmul.f32 %v2424, %v2432
    %v2435 = vlaneseq
    %v2436 = vshrl.u32 %v2435, 7
    %v2437 = vsub.s32 0, %v2436
    %v2438 = vrot.slane %v48, %v2437
    %v2439 = vmul.f32 %v2433, %v2438
    %v2440 = vmul.f32 %v2434, %v2438
    %2442 = vrot.lane.b32.xlu0 %v2438, 96
    %v2443 = vpop.permute.xlu0 %2442
    %v2445 = vadd.f32 %v2439, %v2443
    %v2446 = vadd.f32 %v2440, %v2443
    %v2447 = vpack.c.bf16 %v2446, %v2445
    %v2448 = vlaneseq
    %v2449 = vshrl.u32 %v2448, 7
    %v2450 = vsub.s32 7, %v2449
    %v2451 = vrot.slane %v47, %v2450
    %v2456 = vunpack.c.l.b16 %v1354
    %v2457 = vunpack.c.l.b16 %v1355
    %v2458 = vunpack.c.l.b16 %v1356
    %v2459 = vunpack.c.l.b16 %v1357
    %v2460 = vpack.c.b16 %v2457, %v2456
    %v2461 = vpack.c.b16 %v2459, %v2458
    %v2465 = vsel %vm100, %v2447, 0
    %2467 = vmatprep.subr.bf16.mxu0 0
    %2468 = vmatpush1.bf16.msra.mxu0 0
    %2469 = vmatprep.subr.bf16.mxu0 0
    %2470 = vmatpush1.bf16.msra.mxu0 0
    %2471 = vmatprep.subr.bf16.mxu0 0
    %2472 = vmatpush1.bf16.msra.mxu0 0
    %2473 = vmatprep.subr.bf16.mxu0 0
    %2474 = vmatpush1.bf16.msra.mxu0 0
    %2475 = vmatprep.subr.bf16.mxu0 0
    %2476 = vmatpush1.bf16.msra.mxu0 0
    %2477 = vmatprep.subr.bf16.mxu0 0
    %2478 = vmatpush1.bf16.msra.mxu0 0
    %2479 = vmatprep.subr.bf16.mxu0 0
    %2480 = vmatpush1.bf16.msra.mxu0 %v2461
    %2481 = vmatprep.subr.bf16.mxu0 0
    %2482 = vmatpush1.bf16.msra.mxu0 %v2460
    %2483 = vmatprep.subr.bf16.mxu0 0
    %2484 = vmatpush2.bf16.msra.mxu0 0
    %2485 = vmatprep.subr.bf16.mxu0 0
    %2486 = vmatpush2.bf16.msra.mxu0 0
    %2487 = vmatprep.subr.bf16.mxu0 0
    %2488 = vmatpush2.bf16.msra.mxu0 0
    %2489 = vmatprep.subr.bf16.mxu0 0
    %2490 = vmatpush2.bf16.msra.mxu0 0
    %2491 = vmatprep.subr.bf16.mxu0 0
    %2492 = vmatpush2.bf16.msra.mxu0 0
    %2493 = vmatprep.subr.bf16.mxu0 0
    %2494 = vmatpush2.bf16.msra.mxu0 0
    %2495 = vmatprep.subr.bf16.mxu0 0
    %2496 = vmatpush2.bf16.msra.mxu0 0
    %2497 = vmatprep.subr.bf16.mxu0 0
    %2498 = vmatpush2.bf16.msra.mxu0 0
    %2499 = vmatprep.mubr.bf16.mxu0 0
    %2500 = vmatmul.mubr.bf16.gmra.mxu0 %v2465
    %v2501 = vpop.f32.mrf.mxu0
    %v2502 = vadd.f32 %v2451, %v2501
    %v2503 = vpop.f32.mrf.mxu0
    %v2504 = vpop.f32.mrf.mxu0
    %v2505 = vadd.f32 %v2451, %v2504
    %v2506 = vpop.f32.mrf.mxu0
    %2507 = vdwg.mxu0
    %v2508 = vmax.f32 %v2502, 0.0
    %v2509 = vmax.f32 %v2505, 0.0
    %v2510 = vpack.c.bf16 %v2509, %v2508
    %v2519 = vunpack.c.l.b16 %v1358
    %v2520 = vunpack.c.l.b16 %v1359
    %v2521 = vunpack.c.l.b16 %v1360
    %v2522 = vunpack.c.l.b16 %v1361
    %v2523 = vunpack.c.l.b16 %v1362
    %v2524 = vunpack.c.l.b16 %v1363
    %v2525 = vunpack.c.l.b16 %v1364
    %v2526 = vunpack.c.l.b16 %v1365
    %v2527 = vpack.c.b16 %v2520, %v2519
    %v2528 = vpack.c.b16 %v2522, %v2521
    %v2529 = vpack.c.b16 %v2524, %v2523
    %v2530 = vpack.c.b16 %v2526, %v2525
    %2536 = vrot.lane.b32.xlu0 %v2451, 64
    %v2537 = vpop.permute.xlu0 %2536
    %v2540 = vsel %vm1263, %v2510, 0
    %2542 = vmatprep.subr.bf16.mxu0 0
    %2543 = vmatpush1.bf16.msra.mxu0 0
    %2544 = vmatprep.subr.bf16.mxu0 0
    %2545 = vmatpush1.bf16.msra.mxu0 0
    %2546 = vmatprep.subr.bf16.mxu0 0
    %2547 = vmatpush1.bf16.msra.mxu0 0
    %2548 = vmatprep.subr.bf16.mxu0 0
    %2549 = vmatpush1.bf16.msra.mxu0 0
    %2550 = vmatprep.subr.bf16.mxu0 0
    %2551 = vmatpush1.bf16.msra.mxu0 %v2530
    %2552 = vmatprep.subr.bf16.mxu0 0
    %2553 = vmatpush1.bf16.msra.mxu0 %v2529
    %2554 = vmatprep.subr.bf16.mxu0 0
    %2555 = vmatpush1.bf16.msra.mxu0 %v2528
    %2556 = vmatprep.subr.bf16.mxu0 0
    %2557 = vmatpush1.bf16.msra.mxu0 %v2527
    %2558 = vmatprep.subr.bf16.mxu0 0
    %2559 = vmatpush2.bf16.msra.mxu0 0
    %2560 = vmatprep.subr.bf16.mxu0 0
    %2561 = vmatpush2.bf16.msra.mxu0 0
    %2562 = vmatprep.subr.bf16.mxu0 0
    %2563 = vmatpush2.bf16.msra.mxu0 0
    %2564 = vmatprep.subr.bf16.mxu0 0
    %2565 = vmatpush2.bf16.msra.mxu0 0
    %2566 = vmatprep.subr.bf16.mxu0 0
    %2567 = vmatpush2.bf16.msra.mxu0 0
    %2568 = vmatprep.subr.bf16.mxu0 0
    %2569 = vmatpush2.bf16.msra.mxu0 0
    %2570 = vmatprep.subr.bf16.mxu0 0
    %2571 = vmatpush2.bf16.msra.mxu0 0
    %2572 = vmatprep.subr.bf16.mxu0 0
    %2573 = vmatpush2.bf16.msra.mxu0 0
    %2574 = vmatprep.mubr.bf16.mxu0 0
    %2575 = vmatmul.mubr.bf16.gmra.mxu0 %v2540
    %v2576 = vpop.f32.mrf.mxu0
    %v2577 = vadd.f32 %v2537, %v2576
    %v2578 = vpop.f32.mrf.mxu0
    %v2579 = vpop.f32.mrf.mxu0
    %v2580 = vadd.f32 %v2537, %v2579
    %v2581 = vpop.f32.mrf.mxu0
    %2582 = vdwg.mxu0
    %v2583 = vadd.f32 %v2445, %v2577
    %v2584 = vadd.f32 %v2446, %v2580
    %v2585 = vsel %vm100, %v2583, 0.0
    %2586 = vadd.xlane.f32.xlu0 %v2585
    %v2587 = vpop.xlane.xlu0 %2586
    %v2588 = vsel %vm100, %v2584, 0.0
    %2589 = vadd.xlane.f32.xlu0 %v2588
    %v2590 = vpop.xlane.xlu0 %2589
    %v2591 = vmul.f32 %v2587, %v1134
    %v2592 = vmul.f32 %v2590, %v1134
    %v2593 = vmul.f32 %v2583, %v2583
    %v2594 = vmul.f32 %v2584, %v2584
    %v2595 = vsel %vm100, %v2593, 0.0
    %2596 = vadd.xlane.f32.xlu0 %v2595
    %v2597 = vpop.xlane.xlu0 %2596
    %v2598 = vsel %vm100, %v2594, 0.0
    %2599 = vadd.xlane.f32.xlu0 %v2598
    %v2600 = vpop.xlane.xlu0 %2599
    %v2601 = vmul.f32 %v2597, %v1134
    %v2602 = vmul.f32 %v2600, %v1134
    %v2603 = vsub.f32 %v2583, %v2591
    %v2604 = vsub.f32 %v2584, %v2592
    %v2605 = vmul.f32 %v2591, %v2591
    %v2606 = vmul.f32 %v2592, %v2592
    %v2607 = vsub.f32 %v2601, %v2605
    %v2608 = vsub.f32 %v2602, %v2606
    %v2609 = vadd.f32 %v2607, 1e-05
    %v2610 = vadd.f32 %v2608, 1e-05
    %v2611 = vrsqrt.pop %v2609
    %v2612 = vrsqrt.pop %v2610
    %v2613 = vmul.f32 %v2603, %v2611
    %v2614 = vmul.f32 %v2604, %v2612
    %2615 = vrot.lane.b32.xlu0 %v2438, 64
    %v2616 = vpop.permute.xlu0 %2615
    %v2618 = vmul.f32 %v2613, %v2616
    %v2619 = vmul.f32 %v2614, %v2616
    %2620 = vrot.lane.b32.xlu0 %v2438, 32
    %v2621 = vpop.permute.xlu0 %2620
    %v2623 = vadd.f32 %v2618, %v2621
    %v2624 = vadd.f32 %v2619, %v2621
    %v2625 = vlaneseq
    %v2626 = vshrl.u32 %v2625, 7
    %v2627 = vsub.s32 1, %v2626
    %v2628 = vrot.slane %v47, %v2627
    %v2629 = vmul.f32 %v2623, %v2628
    %v2630 = vmul.f32 %v2624, %v2628
    %v2631 = vsel %vm100, %v2629, 0.0
    %2632 = vadd.xlane.f32.xlu0 %v2631
    %v2633 = vpop.xlane.xlu0 %2632
    %v2634 = vsel %vm100, %v2630, 0.0
    %2635 = vadd.xlane.f32.xlu0 %v2634
    %v2636 = vpop.xlane.xlu0 %2635
    %v2637 = vlaneseq
    %v2638 = vshrl.u32 %v2637, 7
    %v2639 = vsub.s32 2, %v2638
    %v2640 = vrot.slane %v47, %v2639
    %v2641 = vadd.f32 %v2633, %v2640
    %v2642 = vadd.f32 %v2636, %v2640
    %vm2643 = vcmask 7175
    %2644 = vst.msk [vmem:[%s3 - $0x7] sm:$0x80] %vm2643, %v2641
    %2645 = vst.msk [vmem:[%s3 - $0x6] sm:$0x80] %vm2643, %v2642
    // Predicated region
    $region22: #{forward.1} parent=1 // pred_check
      _
    $region23: #{forward.1} parent=1 // pred_check_branch
      %2647 = sbr.rel (0) target = $region25
    $region24: #{forward.1} parent=1 // pred_region
      _
    $region25: #{forward.1} parent=1 // pred_fallthru
      _
    // Predicated region
    $region26: #{forward.1} parent=1 // pred_check
      _
    $region27: #{forward.1} parent=1 // pred_check_branch
      %2649 = sbr.rel (0) target = $region29
    $region28: #{forward.1} parent=1 // pred_region
      _
    $region29: #{forward.1} parent=1 // pred_fallthru
      _
    %2650 = vsyncpa [#allocation4], 1
    %2651 = vsyncpa [#allocation6], 1

</llo_original>
